<compile_context>
chip_gen: v7x
topology: tpu7x:2x2x1
jax: 0.10.0
libtpu: 0.0.40
codegen_flags: <defaults>
</compile_context>

<pallas_src>
import functools

import jax
import jax.numpy as jnp
from jax import lax
from jax.experimental import pallas as pl
from jax.experimental.pallas import tpu as pltpu

_VMEM_LIMIT = 64 * 1024 * 1024


# ----------------------------------------------------------------------------- helpers

def _divisor_tile(n, cap, quantum):
    """Largest multiple-of-`quantum` divisor of n that is <= cap, else None."""
    best = None
    t = quantum
    while t <= min(n, cap):
        if n % t == 0:
            best = t
        t += quantum
    return best


def _row_grid(m, cap):
    """Row tile + grid size; falls back to a cdiv grid with a padded last block."""
    tm = _divisor_tile(m, cap, 8)
    if tm is None:
        tm = min(cap, ((m + 7) // 8) * 8)
    return tm, pl.cdiv(m, tm)


# ----------------------------------------------------------------------------- kernels

def _linear_kernel(x_ref, w_ref, o_ref):
    # y = x @ Wt ; bf16 operands, f32 accumulation (weights already stored in bf16).
    o_ref[...] = jnp.dot(x_ref[...].astype(jnp.bfloat16), w_ref[...],
                         preferred_element_type=jnp.float32)


def linear(x2d, wt_bf16, *, row_cap=512):
    m, k = x2d.shape
    n = wt_bf16.shape[1]
    tm, gm = _row_grid(m, row_cap)
    return pl.pallas_call(
        _linear_kernel,
        grid=(gm,),
        in_specs=[pl.BlockSpec((tm, k), lambda i: (i, 0)),
                  pl.BlockSpec((k, n), lambda i: (0, 0))],
        out_specs=pl.BlockSpec((tm, n), lambda i: (i, 0)),
        out_shape=jax.ShapeDtypeStruct((m, n), jnp.float32),
        compiler_params=pltpu.CompilerParams(
            dimension_semantics=("parallel",),
            vmem_limit_bytes=_VMEM_LIMIT),
        cost_estimate=pl.CostEstimate(flops=int(2 * m * k * n), transcendentals=0,
                                      bytes_accessed=int(4 * m * k + 2 * k * n + 4 * m * n)),
    )(x2d, wt_bf16)


def _attn_kernel(q_ref, k_ref, v_ref, rk_ref, rwb_ref, rrb_ref, o_ref, *,
                 scale, tq, klen, qlen):
    # Fused per-(batch, head, q-tile) relative attention:
    #   AC = (q + r_w_bias) @ k.T
    #   BD = rel_shift((q + r_r_bias) @ r_k'.T)  via strided roll; the q-tile row
    #        offset is absorbed by windowing the duplicated r_k buffer with pl.ds.
    #   score = (AC + BD) * scale ; causal mask ; softmax (exact) ; out = P @ v
    q0 = pl.program_id(2) * tq
    q = q_ref[...]                                    # (tq, Dh)  f32
    k = k_ref[...].astype(jnp.bfloat16)               # (K, Dh)
    v = v_ref[...].astype(jnp.bfloat16)               # (K, Dh)
    rw = rwb_ref[...]                                 # (1, Dh)   f32
    rr = rrb_ref[...]                                 # (1, Dh)   f32

    start = pl.multiple_of(klen - q0, 8)              # row window into duplicated r_k
    rk = rk_ref[pl.ds(start, klen), :].astype(jnp.bfloat16)   # (K, Dh)

    ac = lax.dot_general((q + rw).astype(jnp.bfloat16), k,
                         (((1,), (1,)), ((), ())),
                         preferred_element_type=jnp.float32)            # (tq, K)
    bd_raw = lax.dot_general((q + rr).astype(jnp.bfloat16), rk,
                             (((1,), (1,)), ((), ())),
                             preferred_element_type=jnp.float32)        # (tq, K)
    # Transformer-XL rel-shift: local row l is rotated by l along the lane axis.
    bd = pltpu.roll(bd_raw, 0, 1, stride=1, stride_axis=0)

    score = (ac + bd) * scale
    row = lax.broadcasted_iota(jnp.int32, (tq, klen), 0) + q0
    col = lax.broadcasted_iota(jnp.int32, (tq, klen), 1)
    # Causal mask (also hides the rel-shift wrap-around positions).
    score = jnp.where(col > row + (klen - qlen), -1e30, score)

    m = jnp.max(score, axis=-1, keepdims=True)
    e = jnp.exp(score - m)
    denom = jnp.sum(e, axis=-1, keepdims=True)
    prob = e / denom                                  # exact divide (approx recip drifted)
    o_ref[...] = jnp.dot(prob.astype(jnp.bfloat16), v,
                         preferred_element_type=jnp.float32)


def attention(qkv, rk_ext, rwb3, rrb3, *, n_head, d_head, scale, q_tile=256):
    bsz, qlen, _ = qkv.shape
    klen = qlen
    tq = _divisor_tile(qlen, min(q_tile, qlen), 8) or qlen
    nq = qlen // tq
    kern = functools.partial(_attn_kernel, scale=scale, tq=tq, klen=klen, qlen=qlen)
    flops = int(6 * bsz * n_head * qlen * klen * d_head)
    bytes_accessed = int(4 * (qkv.size + rk_ext.size + bsz * qlen * n_head * d_head))
    return pl.pallas_call(
        kern,
        grid=(bsz, n_head, nq),          # q-tiles innermost: k/v/rk stay resident
        in_specs=[
            # q / k / v: column blocks of the (bsz, qlen, 3*H*Dh) projection output.
            pl.BlockSpec((None, tq, d_head), lambda b, h, qi: (b, qi, h)),
            pl.BlockSpec((None, klen, d_head), lambda b, h, qi: (b, 0, n_head + h)),
            pl.BlockSpec((None, klen, d_head), lambda b, h, qi: (b, 0, 2 * n_head + h)),
            # per-head slice of the duplicated relative-key projection (2*klen, H*Dh)
            pl.BlockSpec((2 * klen, d_head), lambda b, h, qi: (0, h)),
            # per-head biases, shaped (H, 1, Dh)
            pl.BlockSpec((None, 1, d_head), lambda b, h, qi: (h, 0, 0)),
            pl.BlockSpec((None, 1, d_head), lambda b, h, qi: (h, 0, 0)),
        ],
        out_specs=pl.BlockSpec((None, tq, d_head), lambda b, h, qi: (b, qi, h)),
        out_shape=jax.ShapeDtypeStruct((bsz, qlen, n_head * d_head), jnp.float32),
        compiler_params=pltpu.CompilerParams(
            dimension_semantics=("parallel", "parallel", "parallel"),
            vmem_limit_bytes=_VMEM_LIMIT),
        cost_estimate=pl.CostEstimate(flops=flops,
                                      transcendentals=int(bsz * n_head * qlen * klen),
                                      bytes_accessed=bytes_accessed),
    )(qkv, qkv, qkv, rk_ext, rwb3, rrb3)


def _oproj_ln_kernel(a_ref, w_ref, res_ref, g_ref, b_ref, o_ref, *, eps):
    # x1 = LayerNorm(resid + attn_vec @ o_wT)
    y = jnp.dot(a_ref[...].astype(jnp.bfloat16), w_ref[...],
                preferred_element_type=jnp.float32)
    z = res_ref[...] + y
    mu = jnp.mean(z, axis=-1, keepdims=True)
    var = jnp.mean(jnp.square(z - mu), axis=-1, keepdims=True)
    o_ref[...] = (z - mu) * lax.rsqrt(var + eps) * g_ref[...] + b_ref[...]


def oproj_residual_ln(attn2d, o_wt, resid2d, gamma, beta, *, eps=1e-5, row_cap=512):
    m, hd = attn2d.shape
    d_model = o_wt.shape[1]
    tm, gm = _row_grid(m, row_cap)
    kern = functools.partial(_oproj_ln_kernel, eps=eps)
    return pl.pallas_call(
        kern,
        grid=(gm,),
        in_specs=[pl.BlockSpec((tm, hd), lambda i: (i, 0)),
                  pl.BlockSpec((hd, d_model), lambda i: (0, 0)),
                  pl.BlockSpec((tm, d_model), lambda i: (i, 0)),
                  pl.BlockSpec((1, d_model), lambda i: (0, 0)),
                  pl.BlockSpec((1, d_model), lambda i: (0, 0))],
        out_specs=pl.BlockSpec((tm, d_model), lambda i: (i, 0)),
        out_shape=jax.ShapeDtypeStruct((m, d_model), jnp.float32),
        compiler_params=pltpu.CompilerParams(
            dimension_semantics=("parallel",),
            vmem_limit_bytes=_VMEM_LIMIT),
        cost_estimate=pl.CostEstimate(flops=int(2 * m * hd * d_model), transcendentals=0,
                                      bytes_accessed=int(4 * m * hd + 2 * hd * d_model
                                                         + 8 * m * d_model)),
    )(attn2d, o_wt, resid2d, gamma, beta)


def _ff_ln_kernel(x_ref, w1_ref, b1_ref, w2_ref, b2_ref, g_ref, bb_ref, o_ref, acc_ref,
                  *, eps):
    # out = LayerNorm(x + (relu(x @ w1T + b1) @ w2T + b2)); d_inner is chunked and
    # accumulated in an f32 VMEM scratch (ReLU is elementwise, so chunking is exact).
    c = pl.program_id(1)

    @pl.when(c == 0)
    def _():
        acc_ref[...] = jnp.zeros_like(acc_ref)

    x = x_ref[...]
    h = jnp.dot(x.astype(jnp.bfloat16), w1_ref[...],
                preferred_element_type=jnp.float32) + b1_ref[...]
    h = jnp.maximum(h, 0.0)
    acc_ref[...] += jnp.dot(h.astype(jnp.bfloat16), w2_ref[...],
                            preferred_element_type=jnp.float32)

    @pl.when(c == pl.num_programs(1) - 1)
    def _():
        z = x + acc_ref[...] + b2_ref[...]
        mu = jnp.mean(z, axis=-1, keepdims=True)
        var = jnp.mean(jnp.square(z - mu), axis=-1, keepdims=True)
        o_ref[...] = (z - mu) * lax.rsqrt(var + eps) * g_ref[...] + bb_ref[...]


def ff_residual_ln(x2d, w1t, b1, w2t, b2, gamma, beta, *, eps=1e-5,
                   row_cap=256, inner_cap=512):
    m, d_model = x2d.shape
    d_inner = w1t.shape[1]
    tm, gm = _row_grid(m, row_cap)
    tc = _divisor_tile(d_inner, min(inner_cap, d_inner), 128) or d_inner
    nc = d_inner // tc
    kern = functools.partial(_ff_ln_kernel, eps=eps)
    return pl.pallas_call(
        kern,
        grid=(gm, nc),
        in_specs=[pl.BlockSpec((tm, d_model), lambda i, c: (i, 0)),
                  pl.BlockSpec((d_model, tc), lambda i, c: (0, c)),
                  pl.BlockSpec((1, tc), lambda i, c: (0, c)),
                  pl.BlockSpec((tc, d_model), lambda i, c: (c, 0)),
                  pl.BlockSpec((1, d_model), lambda i, c: (0, 0)),
                  pl.BlockSpec((1, d_model), lambda i, c: (0, 0)),
                  pl.BlockSpec((1, d_model), lambda i, c: (0, 0))],
        out_specs=pl.BlockSpec((tm, d_model), lambda i, c: (i, 0)),
        out_shape=jax.ShapeDtypeStruct((m, d_model), jnp.float32),
        scratch_shapes=[pltpu.VMEM((tm, d_model), jnp.float32)],
        compiler_params=pltpu.CompilerParams(
            dimension_semantics=("parallel", "arbitrary"),
            vmem_limit_bytes=_VMEM_LIMIT),
        cost_estimate=pl.CostEstimate(flops=int(4 * m * d_model * d_inner), transcendentals=0,
                                      bytes_accessed=int(12 * m * d_model
                                                         + 4 * d_model * d_inner)),
    )(x2d, w1t, b1, w2t, b2, gamma, beta)


# ----------------------------------------------------------------------------- wrapper

def prepare_params(params):
    """One-time weight layout prep: transpose Linear weights to (in, out) and store them
    in bf16 (MXU-native operands, half the DMA bytes / VMEM); biases / LN params in f32."""
    wt = lambda w: jnp.asarray(w, jnp.float32).T.astype(jnp.bfloat16)
    f32row = lambda v: jnp.asarray(v, jnp.float32).reshape(1, -1)
    return dict(
        qkv_wt=wt(params['qkv_w']),          # (d_model, 3*H*Dh)  bf16
        r_wt=wt(params['r_w']),              # (d_model, H*Dh)    bf16
        o_wt=wt(params['o_w']),              # (H*Dh, d_model)    bf16
        ff_w1t=wt(params['ff_w1']),          # (d_model, d_inner) bf16
        ff_w2t=wt(params['ff_w2']),          # (d_inner, d_model) bf16
        ff_b1=f32row(params['ff_b1']), ff_b2=f32row(params['ff_b2']),
        ln1_g=f32row(params['ln1_g']), ln1_b=f32row(params['ln1_b']),
        ln2_g=f32row(params['ln2_g']), ln2_b=f32row(params['ln2_b']),
    )


def rel_partial_decoder_layer(prep, dec_inp, r, r_w_bias, r_r_bias, *,
                              q_tile=256, ff_inner_tile=512, row_cap=512):
    qlen, bsz, d_model = dec_inp.shape
    n_head, d_head = r_w_bias.shape
    rlen = r.shape[0]
    klen = qlen                      # mems=None
    assert rlen == klen, "rel-shift formulation here assumes rlen == klen (mems=None)"
    assert d_head % 128 == 0, "kernels assume lane-aligned d_head (multiple of 128)"
    assert qlen % 8 == 0, "qlen must be a multiple of 8"
    scale = 1.0 / (d_head ** 0.5)

    # Batch-major activations: (bsz, qlen, d_model) -> flattened rows (bsz*qlen, d_model).
    x_bm = jnp.transpose(dec_inp, (1, 0, 2))
    x2d = x_bm.reshape(bsz * qlen, d_model)

    # Projections (no bias).  r is pre-rolled by +1 row so the in-kernel strided roll
    # reproduces the Transformer-XL rel-shift at all unmasked positions; the result is
    # duplicated so each q-tile can window it with a pl.ds slice.
    w_heads = linear(x2d, prep['qkv_wt'], row_cap=row_cap)             # (M, 3*H*Dh)
    r_head_k = linear(jnp.roll(r, 1, axis=0), prep['r_wt'], row_cap=row_cap)
    rk_ext = jnp.concatenate([r_head_k, r_head_k], axis=0)             # (2*rlen, H*Dh)

    qkv = w_heads.reshape(bsz, qlen, 3 * n_head * d_head)

    # Fused relative attention (AC + BD + rel-shift + causal mask + softmax + PV).
    attn_bm = attention(qkv, rk_ext,
                        r_w_bias.reshape(n_head, 1, d_head).astype(jnp.float32),
                        r_r_bias.reshape(n_head, 1, d_head).astype(jnp.float32),
                        n_head=n_head, d_head=d_head, scale=scale, q_tile=q_tile)
    attn2d = attn_bm.reshape(bsz * qlen, n_head * d_head)

    # o-projection + residual + LayerNorm (post-lnorm), fused.
    x1 = oproj_residual_ln(attn2d, prep['o_wt'], x2d, prep['ln1_g'], prep['ln1_b'],
                           row_cap=row_cap)

    # Position-wise FF (+ residual + LayerNorm), fused, with d_inner chunking.
    out2d = ff_residual_ln(x1, prep['ff_w1t'], prep['ff_b1'],
                           prep['ff_w2t'], prep['ff_b2'],
                           prep['ln2_g'], prep['ln2_b'],
                           row_cap=min(row_cap, 256), inner_cap=ff_inner_tile)

    return jnp.transpose(out2d.reshape(bsz, qlen, d_model), (1, 0, 2))


# ----------------------------------------------------------------------------- reference

def reference_forward(params, dec_inp, r, r_w_bias, r_r_bias, attn_mask, *, bf16_matmuls):
    """Pure-JAX reference.  bf16_matmuls=True mirrors the kernel's bf16-operand /
    f32-accumulate MXU path; False is the exact f32 (HIGHEST precision) module math."""
    if bf16_matmuls:
        c = lambda a: a.astype(jnp.bfloat16)
        mm_kw = dict(preferred_element_type=jnp.float32)
    else:
        c = lambda a: a
        mm_kw = dict(precision=lax.Precision.HIGHEST, preferred_element_type=jnp.float32)

    def mm(a, b):
        return jnp.dot(c(a), c(b), **mm_kw)

    qlen, bsz, d_model = dec_inp.shape
    n_head, d_head = r_w_bias.shape
    scale = 1.0 / d_head ** 0.5

    w_heads = mm(dec_inp.reshape(-1, d_model), params['qkv_w'].T).reshape(qlen, bsz, -1)
    r_head_k = mm(r, params['r_w'].T).reshape(-1, n_head, d_head)
    wh = w_heads.reshape(qlen, bsz, 3, n_head, d_head)
    q_, k_, v_ = wh[:, :, 0], wh[:, :, 1], wh[:, :, 2]
    AC = jnp.einsum('ibnd,jbnd->ijbn', c(q_ + r_w_bias), c(k_), **mm_kw)
    BD = jnp.einsum('ibnd,jnd->ijbn', c(q_ + r_r_bias), c(r_head_k), **mm_kw)
    # Exact Transformer-XL rel-shift (zero-pad + reshape), as in the PyTorch module.
    Q, R = BD.shape[0], BD.shape[1]
    zp = jnp.zeros((Q, 1, bsz, n_head), BD.dtype)
    BD = jnp.concatenate([zp, BD], axis=1).reshape(R + 1, Q, bsz, n_head)[1:]
    BD = BD.reshape(Q, R, bsz, n_head)
    score = (AC + BD) * scale
    score = jnp.where(attn_mask[:, :, :, None], -1e30, score)
    m = score.max(axis=1, keepdims=True)
    e = jnp.exp(score - m)
    prob = e / e.sum(axis=1, keepdims=True)
    attn_vec = jnp.einsum('ijbn,jbnd->ibnd', c(prob), c(v_), **mm_kw)
    attn_vec = attn_vec.reshape(qlen, bsz, n_head * d_head)
    attn_out = mm(attn_vec.reshape(-1, n_head * d_head),
                  params['o_w'].T).reshape(qlen, bsz, d_model)

    def ln(x, g, b):
        mu = x.mean(-1, keepdims=True)
        var = ((x - mu) ** 2).mean(-1, keepdims=True)
        return (x - mu) * lax.rsqrt(var + 1e-5) * g + b

    x1 = ln(dec_inp + attn_out, params['ln1_g'], params['ln1_b'])
    x1f = x1.reshape(-1, d_model)
    h = jnp.maximum(mm(x1f, params['ff_w1'].T) + params['ff_b1'], 0.0)
    core = mm(h, params['ff_w2'].T) + params['ff_b2']
    out = ln(x1f + core, params['ln2_g'], params['ln2_b'])
    return out.reshape(qlen, bsz, d_model)


# ----------------------------------------------------------------------------- main

if __name__ == "__main__":
    # Small but lane-aligned shapes; tile params chosen so the q-tiling (2 tiles) and
    # d_inner chunking (2 chunks) paths are actually exercised at demo scale.
    n_head, d_model, d_head, d_inner = 2, 128, 128, 256
    qlen, bsz = 128, 2
    rlen = klen = qlen

    key = jax.random.PRNGKey(0)
    ks = jax.random.split(key, 12)

    def nrm(k, shape, s=0.1):
        return (s * jax.random.normal(k, shape)).astype(jnp.float32)

    params = dict(
        qkv_w=nrm(ks[0], (3 * n_head * d_head, d_model)),
        r_w=nrm(ks[1], (n_head * d_head, d_model)),
        o_w=nrm(ks[2], (d_model, n_head * d_head)),
        ln1_g=jnp.ones((d_model,), jnp.float32),
        ln1_b=jnp.zeros((d_model,), jnp.float32),
        ff_w1=nrm(ks[3], (d_inner, d_model)),
        ff_b1=nrm(ks[4], (d_inner,)),
        ff_w2=nrm(ks[5], (d_model, d_inner)),
        ff_b2=nrm(ks[6], (d_model,)),
        ln2_g=jnp.ones((d_model,), jnp.float32),
        ln2_b=jnp.zeros((d_model,), jnp.float32),
    )

    r_w_bias = nrm(ks[7], (n_head, d_head))
    r_r_bias = nrm(ks[8], (n_head, d_head))
    dec_inp = jax.random.normal(ks[9], (qlen, bsz, d_model), jnp.float32)
    r_pos = jax.random.normal(ks[10], (rlen, d_model), jnp.float32)
    dec_attn_mask = jnp.triu(jnp.ones((qlen, klen), bool), k=1)[:, :, None]

    prep = prepare_params(params)
    fwd = jax.jit(functools.partial(rel_partial_decoder_layer,
                                    q_tile=64, ff_inner_tile=128))
    out = jax.block_until_ready(fwd(prep, dec_inp, r_pos, r_w_bias, r_r_bias))

    assert out.shape == (qlen, bsz, d_model)
    assert bool(jnp.all(jnp.isfinite(out)))

    # Parity vs. a reference that uses the same bf16-operand / f32-accumulate MXU path.
    ref_bf16 = reference_forward(params, dec_inp, r_pos, r_w_bias, r_r_bias,
                                 dec_attn_mask, bf16_matmuls=True)
    err_bf16 = float(jnp.max(jnp.abs(out - ref_bf16)))
    assert err_bf16 < 2.5e-2, f"mismatch vs bf16-matmul reference (max abs err {err_bf16})"

    # Drift vs. the exact f32 module math stays within expected bf16-pipeline bounds.
    ref_f32 = reference_forward(params, dec_inp, r_pos, r_w_bias, r_r_bias,
                                dec_attn_mask, bf16_matmuls=False)
    err_f32 = float(jnp.max(jnp.abs(out - ref_f32)))
    assert err_f32 < 7.5e-2, f"drift vs f32 reference too large (max abs err {err_f32})"

    print("KERNEL_OK")
</pallas_src>

<mosaic_0001>
module attributes {stable_mosaic.version = 11 : i64} {
  func.func @_linear_kernel(%arg0: i32, %arg1: memref<128x128xf32, #tpu.memory_space<vmem>>, %arg2: memref<128x256xbf16, #tpu.memory_space<vmem>>, %arg3: memref<128x256xf32, #tpu.memory_space<vmem>>) attributes {dimension_semantics = [#tpu.dimension_semantics<parallel>], iteration_bounds = array<i64: 1>, scalar_prefetch = 0 : i64, scratch_operands = 0 : i64, tpu.core_type = #tpu.core_type<tc>, window_params = [{transform_indices = @transform_0, window_bounds = array<i64: 128, 128>}, {pipeline_mode = #tpu.pipeline_mode<synchronous>, transform_indices = @transform_1, window_bounds = array<i64: 128, 256>}, {transform_indices = @transform_2, window_bounds = array<i64: 128, 256>}]} {
    %c0 = arith.constant 0 : index
    %c0_0 = arith.constant 0 : index
    %0 = vector.load %arg1[%c0, %c0_0] : memref<128x128xf32, #tpu.memory_space<vmem>>, vector<128x128xf32>
    %1 = arith.truncf %0 : vector<128x128xf32> to vector<128x128xbf16>
    %c0_1 = arith.constant 0 : index
    %c0_2 = arith.constant 0 : index
    %2 = vector.load %arg2[%c0_1, %c0_2] : memref<128x256xbf16, #tpu.memory_space<vmem>>, vector<128x256xbf16>
    %cst = arith.constant dense<0.000000e+00> : vector<128x256xf32>
    %3 = tpu.matmul %1, %2, %cst {dimension_numbers = #tpu.dot_dimension_numbers<[1], [0], [0], [1], [0, 0, 1, 1], [], []>} : vector<128x128xbf16>, vector<128x256xbf16>, vector<128x256xf32> -> vector<128x256xf32>
    %c0_3 = arith.constant 0 : index
    %c0_4 = arith.constant 0 : index
    %4 = vector.load %arg3[%c0_3, %c0_4] : memref<128x256xf32, #tpu.memory_space<vmem>>, vector<128x256xf32>
    tpu.vector_store %arg3[%c0_3, %c0_4], %3 {strides = array<i32>} : memref<128x256xf32, #tpu.memory_space<vmem>>, vector<128x256xf32>,
    return
  }
  func.func @transform_0(%arg0: i32) -> (i32, i32) {
    %c0_i32 = arith.constant 0 : i32
    %c0_i32_0 = arith.constant 0 : i32
    return %arg0, %c0_i32 : i32, i32
  }
  func.func @transform_1(%arg0: i32) -> (i32, i32) {
    %c0_i32 = arith.constant 0 : i32
    %c0_i32_0 = arith.constant 0 : i32
    %c0_i32_1 = arith.constant 0 : i32
    return %c0_i32, %c0_i32_0 : i32, i32
  }
  func.func @transform_2(%arg0: i32) -> (i32, i32) {
    %c0_i32 = arith.constant 0 : i32
    %c0_i32_0 = arith.constant 0 : i32
    return %arg0, %c0_i32 : i32, i32
  }
}

module attributes {stable_mosaic.version = 11 : i64} {
  func.func @_linear_kernel(%arg0: i32, %arg1: memref<256x128xf32, #tpu.memory_space<vmem>>, %arg2: memref<128x768xbf16, #tpu.memory_space<vmem>>, %arg3: memref<256x768xf32, #tpu.memory_space<vmem>>) attributes {dimension_semantics = [#tpu.dimension_semantics<parallel>], iteration_bounds = array<i64: 1>, scalar_prefetch = 0 : i64, scratch_operands = 0 : i64, tpu.core_type = #tpu.core_type<tc>, window_params = [{transform_indices = @transform_0, window_bounds = array<i64: 256, 128>}, {pipeline_mode = #tpu.pipeline_mode<synchronous>, transform_indices = @transform_1, window_bounds = array<i64: 128, 768>}, {transform_indices = @transform_2, window_bounds = array<i64: 256, 768>}]} {
    %c0 = arith.constant 0 : index
    %c0_0 = arith.constant 0 : index
    %0 = vector.load %arg1[%c0, %c0_0] : memref<256x128xf32, #tpu.memory_space<vmem>>, vector<256x128xf32>
    %1 = arith.truncf %0 : vector<256x128xf32> to vector<256x128xbf16>
    %c0_1 = arith.constant 0 : index
    %c0_2 = arith.constant 0 : index
    %2 = vector.load %arg2[%c0_1, %c0_2] : memref<128x768xbf16, #tpu.memory_space<vmem>>, vector<128x768xbf16>
    %cst = arith.constant dense<0.000000e+00> : vector<256x768xf32>
    %3 = tpu.matmul %1, %2, %cst {dimension_numbers = #tpu.dot_dimension_numbers<[1], [0], [0], [1], [0, 0, 1, 1], [], []>} : vector<256x128xbf16>, vector<128x768xbf16>, vector<256x768xf32> -> vector<256x768xf32>
    %c0_3 = arith.constant 0 : index
    %c0_4 = arith.constant 0 : index
    %4 = vector.load %arg3[%c0_3, %c0_4] : memref<256x768xf32, #tpu.memory_space<vmem>>, vector<256x768xf32>
    tpu.vector_store %arg3[%c0_3, %c0_4], %3 {strides = array<i32>} : memref<256x768xf32, #tpu.memory_space<vmem>>, vector<256x768xf32>,
    return
  }
  func.func @transform_0(%arg0: i32) -> (i32, i32) {
    %c0_i32 = arith.constant 0 : i32
    %c0_i32_0 = arith.constant 0 : i32
    return %arg0, %c0_i32 : i32, i32
  }
  func.func @transform_1(%arg0: i32) -> (i32, i32) {
    %c0_i32 = arith.constant 0 : i32
    %c0_i32_0 = arith.constant 0 : i32
    %c0_i32_1 = arith.constant 0 : i32
    return %c0_i32, %c0_i32_0 : i32, i32
  }
  func.func @transform_2(%arg0: i32) -> (i32, i32) {
    %c0_i32 = arith.constant 0 : i32
    %c0_i32_0 = arith.constant 0 : i32
    return %arg0, %c0_i32 : i32, i32
  }
}

module attributes {stable_mosaic.version = 11 : i64} {
  func.func @_oproj_ln_kernel(%arg0: i32, %arg1: memref<256x256xf32, #tpu.memory_space<vmem>>, %arg2: memref<256x128xbf16, #tpu.memory_space<vmem>>, %arg3: memref<256x128xf32, #tpu.memory_space<vmem>>, %arg4: memref<1x128xf32, #tpu.memory_space<vmem>>, %arg5: memref<1x128xf32, #tpu.memory_space<vmem>>, %arg6: memref<256x128xf32, #tpu.memory_space<vmem>>) attributes {dimension_semantics = [#tpu.dimension_semantics<parallel>], iteration_bounds = array<i64: 1>, scalar_prefetch = 0 : i64, scratch_operands = 0 : i64, tpu.core_type = #tpu.core_type<tc>, window_params = [{transform_indices = @transform_0, window_bounds = array<i64: 256, 256>}, {pipeline_mode = #tpu.pipeline_mode<synchronous>, transform_indices = @transform_1, window_bounds = array<i64: 256, 128>}, {transform_indices = @transform_2, window_bounds = array<i64: 256, 128>}, {pipeline_mode = #tpu.pipeline_mode<synchronous>, transform_indices = @transform_3, window_bounds = array<i64: 1, 128>}, {pipeline_mode = #tpu.pipeline_mode<synchronous>, transform_indices = @transform_4, window_bounds = array<i64: 1, 128>}, {transform_indices = @transform_5, window_bounds = array<i64: 256, 128>}]} {
    %c0 = arith.constant 0 : index
    %c0_0 = arith.constant 0 : index
    %0 = vector.load %arg1[%c0, %c0_0] : memref<256x256xf32, #tpu.memory_space<vmem>>, vector<256x256xf32>
    %1 = arith.truncf %0 : vector<256x256xf32> to vector<256x256xbf16>
    %c0_1 = arith.constant 0 : index
    %c0_2 = arith.constant 0 : index
    %2 = vector.load %arg2[%c0_1, %c0_2] : memref<256x128xbf16, #tpu.memory_space<vmem>>, vector<256x128xbf16>
    %cst = arith.constant dense<0.000000e+00> : vector<256x128xf32>
    %3 = tpu.matmul %1, %2, %cst {dimension_numbers = #tpu.dot_dimension_numbers<[1], [0], [0], [1], [0, 0, 1, 1], [], []>} : vector<256x256xbf16>, vector<256x128xbf16>, vector<256x128xf32> -> vector<256x128xf32>
    %c0_3 = arith.constant 0 : index
    %c0_4 = arith.constant 0 : index
    %4 = vector.load %arg3[%c0_3, %c0_4] : memref<256x128xf32, #tpu.memory_space<vmem>>, vector<256x128xf32>
    %5 = arith.addf %4, %3 : vector<256x128xf32>
    %cst_5 = arith.constant dense<0.000000e+00> : vector<256xf32>
    %6 = vector.multi_reduction <add>, %5, %cst_5 [1] : vector<256x128xf32> to vector<256xf32>
    %7 = vector.shape_cast %6 : vector<256xf32> to vector<256x1xf32>
    %cst_6 = arith.constant 1.280000e+02 : f32
    %8 = vector.broadcast %cst_6 : f32 to vector<256x1xf32>
    %9 = arith.divf %7, %8 : vector<256x1xf32>
    %10 = vector.broadcast %9 : vector<256x1xf32> to vector<256x128xf32>
    %11 = arith.subf %5, %10 : vector<256x128xf32>
    %12 = arith.mulf %11, %11 : vector<256x128xf32>
    %cst_7 = arith.constant dense<0.000000e+00> : vector<256xf32>
    %13 = vector.multi_reduction <add>, %12, %cst_7 [1] : vector<256x128xf32> to vector<256xf32>
    %14 = vector.shape_cast %13 : vector<256xf32> to vector<256x1xf32>
    %cst_8 = arith.constant 1.280000e+02 : f32
    %15 = vector.broadcast %cst_8 : f32 to vector<256x1xf32>
    %16 = arith.divf %14, %15 : vector<256x1xf32>
    %17 = vector.broadcast %9 : vector<256x1xf32> to vector<256x128xf32>
    %18 = arith.subf %5, %17 : vector<256x128xf32>
    %cst_9 = arith.constant 9.99999974E-6 : f32
    %19 = vector.broadcast %cst_9 : f32 to vector<256x1xf32>
    %20 = arith.addf %16, %19 : vector<256x1xf32>
    %21 = math.rsqrt %20 : vector<256x1xf32>
    %22 = vector.broadcast %21 : vector<256x1xf32> to vector<256x128xf32>
    %23 = arith.mulf %18, %22 : vector<256x128xf32>
    %c0_10 = arith.constant 0 : index
    %c0_11 = arith.constant 0 : index
    %24 = vector.load %arg4[%c0_10, %c0_11] : memref<1x128xf32, #tpu.memory_space<vmem>>, vector<1x128xf32>
    %25 = vector.broadcast %24 : vector<1x128xf32> to vector<256x128xf32>
    %26 = arith.mulf %23, %25 : vector<256x128xf32>
    %c0_12 = arith.constant 0 : index
    %c0_13 = arith.constant 0 : index
    %27 = vector.load %arg5[%c0_12, %c0_13] : memref<1x128xf32, #tpu.memory_space<vmem>>, vector<1x128xf32>
    %28 = vector.broadcast %27 : vector<1x128xf32> to vector<256x128xf32>
    %29 = arith.addf %26, %28 : vector<256x128xf32>
    %c0_14 = arith.constant 0 : index
    %c0_15 = arith.constant 0 : index
    %30 = vector.load %arg6[%c0_14, %c0_15] : memref<256x128xf32, #tpu.memory_space<vmem>>, vector<256x128xf32>
    tpu.vector_store %arg6[%c0_14, %c0_15], %29 {strides = array<i32>} : memref<256x128xf32, #tpu.memory_space<vmem>>, vector<256x128xf32>,
    return
  }
  func.func @transform_0(%arg0: i32) -> (i32, i32) {
    %c0_i32 = arith.constant 0 : i32
    %c0_i32_0 = arith.constant 0 : i32
    return %arg0, %c0_i32 : i32, i32
  }
  func.func @transform_1(%arg0: i32) -> (i32, i32) {
    %c0_i32 = arith.constant 0 : i32
    %c0_i32_0 = arith.constant 0 : i32
    %c0_i32_1 = arith.constant 0 : i32
    return %c0_i32, %c0_i32_0 : i32, i32
  }
  func.func @transform_2(%arg0: i32) -> (i32, i32) {
    %c0_i32 = arith.constant 0 : i32
    %c0_i32_0 = arith.constant 0 : i32
    return %arg0, %c0_i32 : i32, i32
  }
  func.func @transform_3(%arg0: i32) -> (i32, i32) {
    %c0_i32 = arith.constant 0 : i32
    %c0_i32_0 = arith.constant 0 : i32
    %c0_i32_1 = arith.constant 0 : i32
    return %c0_i32, %c0_i32_0 : i32, i32
  }
  func.func @transform_4(%arg0: i32) -> (i32, i32) {
    %c0_i32 = arith.constant 0 : i32
    %c0_i32_0 = arith.constant 0 : i32
    %c0_i32_1 = arith.constant 0 : i32
    return %c0_i32, %c0_i32_0 : i32, i32
  }
  func.func @transform_5(%arg0: i32) -> (i32, i32) {
    %c0_i32 = arith.constant 0 : i32
    %c0_i32_0 = arith.constant 0 : i32
    return %arg0, %c0_i32 : i32, i32
  }
}

module attributes {stable_mosaic.version = 11 : i64} {
  func.func @_attn_kernel(%arg0: i32, %arg1: i32, %arg2: i32, %arg3: memref<1x64x128xf32, #tpu.memory_space<vmem>>, %arg4: memref<1x128x128xf32, #tpu.memory_space<vmem>>, %arg5: memref<1x128x128xf32, #tpu.memory_space<vmem>>, %arg6: memref<256x128xf32, #tpu.memory_space<vmem>>, %arg7: memref<1x1x128xf32, #tpu.memory_space<vmem>>, %arg8: memref<1x1x128xf32, #tpu.memory_space<vmem>>, %arg9: memref<1x64x128xf32, #tpu.memory_space<vmem>>) attributes {dimension_semantics = [#tpu.dimension_semantics<parallel>, #tpu.dimension_semantics<parallel>, #tpu.dimension_semantics<parallel>], iteration_bounds = array<i64: 2, 2, 2>, scalar_prefetch = 0 : i64, scratch_operands = 0 : i64, tpu.core_type = #tpu.core_type<tc>, window_params = [{transform_indices = @transform_0, window_bounds = array<i64: 1, 64, 128>}, {transform_indices = @transform_1, window_bounds = array<i64: 1, 128, 128>}, {transform_indices = @transform_2, window_bounds = array<i64: 1, 128, 128>}, {transform_indices = @transform_3, window_bounds = array<i64: 256, 128>}, {transform_indices = @transform_4, window_bounds = array<i64: 1, 1, 128>}, {transform_indices = @transform_5, window_bounds = array<i64: 1, 1, 128>}, {transform_indices = @transform_6, window_bounds = array<i64: 1, 64, 128>}]} {
    %c64_i32 = arith.constant 64 : i32
    %0 = arith.muli %arg2, %c64_i32 : i32
    %c0 = arith.constant 0 : index
    %c0_0 = arith.constant 0 : index
    %c0_1 = arith.constant 0 : index
    %1 = vector.load %arg3[%c0, %c0_0, %c0_1] : memref<1x64x128xf32, #tpu.memory_space<vmem>>, vector<1x64x128xf32>
    %2 = vector.shape_cast %1 : vector<1x64x128xf32> to vector<64x128xf32>
    %c0_2 = arith.constant 0 : index
    %c0_3 = arith.constant 0 : index
    %c0_4 = arith.constant 0 : index
    %3 = vector.load %arg4[%c0_2, %c0_3, %c0_4] : memref<1x128x128xf32, #tpu.memory_space<vmem>>, vector<1x128x128xf32>
    %4 = vector.shape_cast %3 : vector<1x128x128xf32> to vector<128x128xf32>
    %5 = arith.truncf %4 : vector<128x128xf32> to vector<128x128xbf16>
    %c0_5 = arith.constant 0 : index
    %c0_6 = arith.constant 0 : index
    %c0_7 = arith.constant 0 : index
    %6 = vector.load %arg5[%c0_5, %c0_6, %c0_7] : memref<1x128x128xf32, #tpu.memory_space<vmem>>, vector<1x128x128xf32>
    %7 = vector.shape_cast %6 : vector<1x128x128xf32> to vector<128x128xf32>
    %8 = arith.truncf %7 : vector<128x128xf32> to vector<128x128xbf16>
    %c0_8 = arith.constant 0 : index
    %c0_9 = arith.constant 0 : index
    %c0_10 = arith.constant 0 : index
    %9 = vector.load %arg7[%c0_8, %c0_9, %c0_10] : memref<1x1x128xf32, #tpu.memory_space<vmem>>, vector<1x1x128xf32>
    %10 = vector.shape_cast %9 : vector<1x1x128xf32> to vector<1x128xf32>
    %c0_11 = arith.constant 0 : index
    %c0_12 = arith.constant 0 : index
    %c0_13 = arith.constant 0 : index
    %11 = vector.load %arg8[%c0_11, %c0_12, %c0_13] : memref<1x1x128xf32, #tpu.memory_space<vmem>>, vector<1x1x128xf32>
    %12 = vector.shape_cast %11 : vector<1x1x128xf32> to vector<1x128xf32>
    %c128_i32 = arith.constant 128 : i32
    %13 = arith.subi %c128_i32, %0 : i32
    %14 = tpu.assume_multiple %13, 8 : i32
    %15 = arith.index_cast %14 : i32 to index
    %c0_14 = arith.constant 0 : index
    %16 = vector.load %arg6[%15, %c0_14] : memref<256x128xf32, #tpu.memory_space<vmem>>, vector<128x128xf32>
    %17 = arith.truncf %16 : vector<128x128xf32> to vector<128x128xbf16>
    %18 = vector.broadcast %10 : vector<1x128xf32> to vector<64x128xf32>
    %19 = arith.addf %2, %18 : vector<64x128xf32>
    %20 = arith.truncf %19 : vector<64x128xf32> to vector<64x128xbf16>
    %cst = arith.constant dense<0.000000e+00> : vector<64x128xf32>
    %21 = tpu.matmul %20, %5, %cst {dimension_numbers = #tpu.dot_dimension_numbers<[1], [1], [0], [0], [0, 0, 1, 0], [], []>} : vector<64x128xbf16>, vector<128x128xbf16>, vector<64x128xf32> -> vector<64x128xf32>
    %22 = vector.broadcast %12 : vector<1x128xf32> to vector<64x128xf32>
    %23 = arith.addf %2, %22 : vector<64x128xf32>
    %24 = arith.truncf %23 : vector<64x128xf32> to vector<64x128xbf16>
    %cst_15 = arith.constant dense<0.000000e+00> : vector<64x128xf32>
    %25 = tpu.matmul %24, %17, %cst_15 {dimension_numbers = #tpu.dot_dimension_numbers<[1], [1], [0], [0], [0, 0, 1, 0], [], []>} : vector<64x128xbf16>, vector<128x128xbf16>, vector<64x128xf32> -> vector<64x128xf32>
    %c0_i32 = arith.constant 0 : i32
    %26 = tpu.dynamic_rotate %25 by %c0_i32 dim 1 {stride = 1 : si32, stride_dimension = 0 : si32} : vector<64x128xf32>, i32 -> vector<64x128xf32>
    %27 = arith.addf %21, %26 : vector<64x128xf32>
    %cst_16 = arith.constant 0.0883883461 : f32
    %28 = vector.broadcast %cst_16 : f32 to vector<64x128xf32>
    %29 = arith.mulf %27, %28 : vector<64x128xf32>
    %30 = tpu.iota {dimensions = array<i32: 0>} : vector<64x128xi32>
    %31 = vector.broadcast %0 : i32 to vector<64x128xi32>
    %32 = arith.addi %30, %31 : vector<64x128xi32>
    %33 = tpu.iota {dimensions = array<i32: 1>} : vector<64x128xi32>
    %c0_i32_17 = arith.constant 0 : i32
    %34 = vector.broadcast %c0_i32_17 : i32 to vector<64x128xi32>
    %35 = arith.addi %32, %34 : vector<64x128xi32>
    %36 = arith.cmpi sgt, %33, %35 : vector<64x128xi32>
    %cst_18 = arith.constant -1.000000e+30 : f32
    %37 = vector.broadcast %cst_18 : f32 to vector<64x128xf32>
    %38 = arith.select %36, %37, %29 : vector<64x128xi1>, vector<64x128xf32>
    %cst_19 = arith.constant dense<0xFF800000> : vector<64xf32>
    %39 = vector.multi_reduction <maximumf>, %38, %cst_19 [1] : vector<64x128xf32> to vector<64xf32>
    %40 = vector.shape_cast %39 : vector<64xf32> to vector<64x1xf32>
    %41 = vector.broadcast %40 : vector<64x1xf32> to vector<64x128xf32>
    %42 = arith.subf %38, %41 : vector<64x128xf32>
    %43 = math.exp %42 : vector<64x128xf32>
    %cst_20 = arith.constant dense<0.000000e+00> : vector<64xf32>
    %44 = vector.multi_reduction <add>, %43, %cst_20 [1] : vector<64x128xf32> to vector<64xf32>
    %45 = vector.shape_cast %44 : vector<64xf32> to vector<64x1xf32>
    %46 = vector.broadcast %45 : vector<64x1xf32> to vector<64x128xf32>
    %47 = arith.divf %43, %46 : vector<64x128xf32>
    %48 = arith.truncf %47 : vector<64x128xf32> to vector<64x128xbf16>
    %cst_21 = arith.constant dense<0.000000e+00> : vector<64x128xf32>
    %49 = tpu.matmul %48, %8, %cst_21 {dimension_numbers = #tpu.dot_dimension_numbers<[1], [0], [0], [1], [0, 0, 1, 1], [], []>} : vector<64x128xbf16>, vector<128x128xbf16>, vector<64x128xf32> -> vector<64x128xf32>
    %c0_22 = arith.constant 0 : index
    %c0_23 = arith.constant 0 : index
    %c0_24 = arith.constant 0 : index
    %50 = vector.load %arg9[%c0_22, %c0_23, %c0_24] : memref<1x64x128xf32, #tpu.memory_space<vmem>>, vector<1x64x128xf32>
    %51 = vector.shape_cast %50 : vector<1x64x128xf32> to vector<64x128xf32>
    %52 = vector.shape_cast %49 : vector<64x128xf32> to vector<1x64x128xf32>
    tpu.vector_store %arg9[%c0_22, %c0_23, %c0_24], %52 {strides = array<i32>} : memref<1x64x128xf32, #tpu.memory_space<vmem>>, vector<1x64x128xf32>,
    return
  }
  func.func @transform_0(%arg0: i32, %arg1: i32, %arg2: i32) -> (i32, i32, i32) {
    %c0_i32 = arith.constant 0 : i32
    return %arg0, %arg2, %arg1 : i32, i32, i32
  }
  func.func @transform_1(%arg0: i32, %arg1: i32, %arg2: i32) -> (i32, i32, i32) {
    %c2_i32 = arith.constant 2 : i32
    %0 = arith.addi %c2_i32, %arg1 : i32
    %c0_i32 = arith.constant 0 : i32
    %c0_i32_0 = arith.constant 0 : i32
    return %arg0, %c0_i32, %0 : i32, i32, i32
  }
  func.func @transform_2(%arg0: i32, %arg1: i32, %arg2: i32) -> (i32, i32, i32) {
    %c4_i32 = arith.constant 4 : i32
    %0 = arith.addi %c4_i32, %arg1 : i32
    %c0_i32 = arith.constant 0 : i32
    %c0_i32_0 = arith.constant 0 : i32
    return %arg0, %c0_i32, %0 : i32, i32, i32
  }
  func.func @transform_3(%arg0: i32, %arg1: i32, %arg2: i32) -> (i32, i32) {
    %c0_i32 = arith.constant 0 : i32
    %c0_i32_0 = arith.constant 0 : i32
    return %c0_i32, %arg1 : i32, i32
  }
  func.func @transform_4(%arg0: i32, %arg1: i32, %arg2: i32) -> (i32, i32, i32) {
    %c0_i32 = arith.constant 0 : i32
    %c0_i32_0 = arith.constant 0 : i32
    %c0_i32_1 = arith.constant 0 : i32
    return %arg1, %c0_i32, %c0_i32_0 : i32, i32, i32
  }
  func.func @transform_5(%arg0: i32, %arg1: i32, %arg2: i32) -> (i32, i32, i32) {
    %c0_i32 = arith.constant 0 : i32
    %c0_i32_0 = arith.constant 0 : i32
    %c0_i32_1 = arith.constant 0 : i32
    return %arg1, %c0_i32, %c0_i32_0 : i32, i32, i32
  }
  func.func @transform_6(%arg0: i32, %arg1: i32, %arg2: i32) -> (i32, i32, i32) {
    %c0_i32 = arith.constant 0 : i32
    return %arg0, %arg2, %arg1 : i32, i32, i32
  }
}

module attributes {stable_mosaic.version = 11 : i64} {
  func.func @_ff_ln_kernel(%arg0: i32, %arg1: i32, %arg2: memref<256x128xf32, #tpu.memory_space<vmem>>, %arg3: memref<128x128xbf16, #tpu.memory_space<vmem>>, %arg4: memref<1x128xf32, #tpu.memory_space<vmem>>, %arg5: memref<128x128xbf16, #tpu.memory_space<vmem>>, %arg6: memref<1x128xf32, #tpu.memory_space<vmem>>, %arg7: memref<1x128xf32, #tpu.memory_space<vmem>>, %arg8: memref<1x128xf32, #tpu.memory_space<vmem>>, %arg9: memref<256x128xf32, #tpu.memory_space<vmem>>, %arg10: memref<256x128xf32, #tpu.memory_space<vmem>>) attributes {dimension_semantics = [#tpu.dimension_semantics<parallel>, #tpu.dimension_semantics<arbitrary>], iteration_bounds = array<i64: 1, 2>, scalar_prefetch = 0 : i64, scratch_operands = 1 : i64, tpu.core_type = #tpu.core_type<tc>, window_params = [{transform_indices = @transform_0, window_bounds = array<i64: 256, 128>}, {transform_indices = @transform_1, window_bounds = array<i64: 128, 128>}, {transform_indices = @transform_2, window_bounds = array<i64: 1, 128>}, {transform_indices = @transform_3, window_bounds = array<i64: 128, 128>}, {pipeline_mode = #tpu.pipeline_mode<synchronous>, transform_indices = @transform_4, window_bounds = array<i64: 1, 128>}, {pipeline_mode = #tpu.pipeline_mode<synchronous>, transform_indices = @transform_5, window_bounds = array<i64: 1, 128>}, {pipeline_mode = #tpu.pipeline_mode<synchronous>, transform_indices = @transform_6, window_bounds = array<i64: 1, 128>}, {transform_indices = @transform_7, window_bounds = array<i64: 256, 128>}]} {
    %c0_i32 = arith.constant 0 : i32
    %0 = arith.cmpi eq, %arg1, %c0_i32 : i32
    %1 = arith.extui %0 : i1 to i32
    %c0_i32_0 = arith.constant 0 : i32
    %2 = arith.cmpi ne, %1, %c0_i32_0 : i32
    scf.if %2 {
      %cst_15 = arith.constant 0.000000e+00 : f32
      %21 = vector.broadcast %cst_15 : f32 to vector<256x128xf32>
      %c0_16 = arith.constant 0 : index
      %c0_17 = arith.constant 0 : index
      %22 = vector.load %arg10[%c0_16, %c0_17] : memref<256x128xf32, #tpu.memory_space<vmem>>, vector<256x128xf32>
      tpu.vector_store %arg10[%c0_16, %c0_17], %21 {strides = array<i32>} : memref<256x128xf32, #tpu.memory_space<vmem>>, vector<256x128xf32>,
    } else {
    }
    %c0 = arith.constant 0 : index
    %c0_1 = arith.constant 0 : index
    %3 = vector.load %arg2[%c0, %c0_1] : memref<256x128xf32, #tpu.memory_space<vmem>>, vector<256x128xf32>
    %4 = arith.truncf %3 : vector<256x128xf32> to vector<256x128xbf16>
    %c0_2 = arith.constant 0 : index
    %c0_3 = arith.constant 0 : index
    %5 = vector.load %arg3[%c0_2, %c0_3] : memref<128x128xbf16, #tpu.memory_space<vmem>>, vector<128x128xbf16>
    %cst = arith.constant dense<0.000000e+00> : vector<256x128xf32>
    %6 = tpu.matmul %4, %5, %cst {dimension_numbers = #tpu.dot_dimension_numbers<[1], [0], [0], [1], [0, 0, 1, 1], [], []>} : vector<256x128xbf16>, vector<128x128xbf16>, vector<256x128xf32> -> vector<256x128xf32>
    %c0_4 = arith.constant 0 : index
    %c0_5 = arith.constant 0 : index
    %7 = vector.load %arg4[%c0_4, %c0_5] : memref<1x128xf32, #tpu.memory_space<vmem>>, vector<1x128xf32>
    %8 = vector.broadcast %7 : vector<1x128xf32> to vector<256x128xf32>
    %9 = arith.addf %6, %8 : vector<256x128xf32>
    %cst_6 = arith.constant 0.000000e+00 : f32
    %10 = vector.broadcast %cst_6 : f32 to vector<256x128xf32>
    %11 = arith.maximumf %9, %10 : vector<256x128xf32>
    %c0_7 = arith.constant 0 : index
    %c0_8 = arith.constant 0 : index
    %12 = vector.load %arg10[%c0_7, %c0_8] : memref<256x128xf32, #tpu.memory_space<vmem>>, vector<256x128xf32>
    %13 = arith.truncf %11 : vector<256x128xf32> to vector<256x128xbf16>
    %c0_9 = arith.constant 0 : index
    %c0_10 = arith.constant 0 : index
    %14 = vector.load %arg5[%c0_9, %c0_10] : memref<128x128xbf16, #tpu.memory_space<vmem>>, vector<128x128xbf16>
    %cst_11 = arith.constant dense<0.000000e+00> : vector<256x128xf32>
    %15 = tpu.matmul %13, %14, %cst_11 {dimension_numbers = #tpu.dot_dimension_numbers<[1], [0], [0], [1], [0, 0, 1, 1], [], []>} : vector<256x128xbf16>, vector<128x128xbf16>, vector<256x128xf32> -> vector<256x128xf32>
    %16 = arith.addf %12, %15 : vector<256x128xf32>
    %c0_12 = arith.constant 0 : index
    %c0_13 = arith.constant 0 : index
    %17 = vector.load %arg10[%c0_12, %c0_13] : memref<256x128xf32, #tpu.memory_space<vmem>>, vector<256x128xf32>
    tpu.vector_store %arg10[%c0_12, %c0_13], %16 {strides = array<i32>} : memref<256x128xf32, #tpu.memory_space<vmem>>, vector<256x128xf32>,
    %c1_i32 = arith.constant 1 : i32
    %18 = arith.cmpi eq, %arg1, %c1_i32 : i32
    %19 = arith.extui %18 : i1 to i32
    %c0_i32_14 = arith.constant 0 : i32
    %20 = arith.cmpi ne, %19, %c0_i32_14 : i32
    scf.if %20 {
      %c0_15 = arith.constant 0 : index
      %c0_16 = arith.constant 0 : index
      %21 = vector.load %arg10[%c0_15, %c0_16] : memref<256x128xf32, #tpu.memory_space<vmem>>, vector<256x128xf32>
      %22 = arith.addf %3, %21 : vector<256x128xf32>
      %c0_17 = arith.constant 0 : index
      %c0_18 = arith.constant 0 : index
      %23 = vector.load %arg6[%c0_17, %c0_18] : memref<1x128xf32, #tpu.memory_space<vmem>>, vector<1x128xf32>
      %24 = vector.broadcast %23 : vector<1x128xf32> to vector<256x128xf32>
      %25 = arith.addf %22, %24 : vector<256x128xf32>
      %cst_19 = arith.constant dense<0.000000e+00> : vector<256xf32>
      %26 = vector.multi_reduction <add>, %25, %cst_19 [1] : vector<256x128xf32> to vector<256xf32>
      %27 = vector.shape_cast %26 : vector<256xf32> to vector<256x1xf32>
      %cst_20 = arith.constant 1.280000e+02 : f32
      %28 = vector.broadcast %cst_20 : f32 to vector<256x1xf32>
      %29 = arith.divf %27, %28 : vector<256x1xf32>
      %30 = vector.broadcast %29 : vector<256x1xf32> to vector<256x128xf32>
      %31 = arith.subf %25, %30 : vector<256x128xf32>
      %32 = arith.mulf %31, %31 : vector<256x128xf32>
      %cst_21 = arith.constant dense<0.000000e+00> : vector<256xf32>
      %33 = vector.multi_reduction <add>, %32, %cst_21 [1] : vector<256x128xf32> to vector<256xf32>
      %34 = vector.shape_cast %33 : vector<256xf32> to vector<256x1xf32>
      %cst_22 = arith.constant 1.280000e+02 : f32
      %35 = vector.broadcast %cst_22 : f32 to vector<256x1xf32>
      %36 = arith.divf %34, %35 : vector<256x1xf32>
      %37 = vector.broadcast %29 : vector<256x1xf32> to vector<256x128xf32>
      %38 = arith.subf %25, %37 : vector<256x128xf32>
      %cst_23 = arith.constant 9.99999974E-6 : f32
      %39 = vector.broadcast %cst_23 : f32 to vector<256x1xf32>
      %40 = arith.addf %36, %39 : vector<256x1xf32>
      %41 = math.rsqrt %40 : vector<256x1xf32>
      %42 = vector.broadcast %41 : vector<256x1xf32> to vector<256x128xf32>
      %43 = arith.mulf %38, %42 : vector<256x128xf32>
      %c0_24 = arith.constant 0 : index
      %c0_25 = arith.constant 0 : index
      %44 = vector.load %arg7[%c0_24, %c0_25] : memref<1x128xf32, #tpu.memory_space<vmem>>, vector<1x128xf32>
      %45 = vector.broadcast %44 : vector<1x128xf32> to vector<256x128xf32>
      %46 = arith.mulf %43, %45 : vector<256x128xf32>
      %c0_26 = arith.constant 0 : index
      %c0_27 = arith.constant 0 : index
      %47 = vector.load %arg8[%c0_26, %c0_27] : memref<1x128xf32, #tpu.memory_space<vmem>>, vector<1x128xf32>
      %48 = vector.broadcast %47 : vector<1x128xf32> to vector<256x128xf32>
      %49 = arith.addf %46, %48 : vector<256x128xf32>
      %c0_28 = arith.constant 0 : index
      %c0_29 = arith.constant 0 : index
      %50 = vector.load %arg9[%c0_28, %c0_29] : memref<256x128xf32, #tpu.memory_space<vmem>>, vector<256x128xf32>
      tpu.vector_store %arg9[%c0_28, %c0_29], %49 {strides = array<i32>} : memref<256x128xf32, #tpu.memory_space<vmem>>, vector<256x128xf32>,
    } else {
    }
    return
  }
  func.func @transform_0(%arg0: i32, %arg1: i32) -> (i32, i32) {
    %c0_i32 = arith.constant 0 : i32
    %c0_i32_0 = arith.constant 0 : i32
    return %arg0, %c0_i32 : i32, i32
  }
  func.func @transform_1(%arg0: i32, %arg1: i32) -> (i32, i32) {
    %c0_i32 = arith.constant 0 : i32
    %c0_i32_0 = arith.constant 0 : i32
    return %c0_i32, %arg1 : i32, i32
  }
  func.func @transform_2(%arg0: i32, %arg1: i32) -> (i32, i32) {
    %c0_i32 = arith.constant 0 : i32
    %c0_i32_0 = arith.constant 0 : i32
    return %c0_i32, %arg1 : i32, i32
  }
  func.func @transform_3(%arg0: i32, %arg1: i32) -> (i32, i32) {
    %c0_i32 = arith.constant 0 : i32
    %c0_i32_0 = arith.constant 0 : i32
    return %arg1, %c0_i32 : i32, i32
  }
  func.func @transform_4(%arg0: i32, %arg1: i32) -> (i32, i32) {
    %c0_i32 = arith.constant 0 : i32
    %c0_i32_0 = arith.constant 0 : i32
    %c0_i32_1 = arith.constant 0 : i32
    return %c0_i32, %c0_i32_0 : i32, i32
  }
  func.func @transform_5(%arg0: i32, %arg1: i32) -> (i32, i32) {
    %c0_i32 = arith.constant 0 : i32
    %c0_i32_0 = arith.constant 0 : i32
    %c0_i32_1 = arith.constant 0 : i32
    return %c0_i32, %c0_i32_0 : i32, i32
  }
  func.func @transform_6(%arg0: i32, %arg1: i32) -> (i32, i32) {
    %c0_i32 = arith.constant 0 : i32
    %c0_i32_0 = arith.constant 0 : i32
    %c0_i32_1 = arith.constant 0 : i32
    return %c0_i32, %c0_i32_0 : i32, i32
  }
  func.func @transform_7(%arg0: i32, %arg1: i32) -> (i32, i32) {
    %c0_i32 = arith.constant 0 : i32
    %c0_i32_0 = arith.constant 0 : i32
    return %arg0, %c0_i32 : i32, i32
  }
}

</mosaic_0001>

<llo_original>
// kernel: rel_partial_decoder_layer.6
$region0: #{rel_partial_decoder_layer.6}
  #allocation0 [shape = 'u32[]', space=smem, size = 0x4, offset = 0x4, fixed_abs, tag = 'smem constant byte address 0x4 - core index']
  #allocation1 [shape = 'u32[144,128]{1,0:T(1,128)}', space=vmem, size = 0x12000, scoped, tag = 'internal scratch']
  %s0 = inlined_call_operand.hbm [shape: f32[128,128], index: 0, kind: input, shape index: {}]
  %s1 = inlined_call_operand.hbm [shape: bf16[128,256], index: 1, kind: input, shape index: {}]
  %s2 = inlined_call_operand.hbm [shape: f32[128,256], index: 2, kind: output, shape index: {}]
  %s3 = sld [smem:[#allocation0]]
  $region26: #{rel_partial_decoder_layer.6} parent=0
    _
  %s5 = ssub.s32 1, %s3
  %s6 = scalar_select 0, %s5, %s3
  $region1: #{rel_partial_decoder_layer.6} parent=0
    #allocation2 [shape = 'u8[65536]{0}', space=vmem, size = 0x10000, scoped, tag = 'input window, operand 0, single buffered']
    #allocation3 [shape = 's32[1]{0}', space=sflag, size = 0x4, scoped, tag = 'scoped memory for rel_partial_decoder_layer.6']
    #allocation4 [shape = 's32[1]{0}', space=sflag, size = 0x4, scoped, tag = 'scoped memory for rel_partial_decoder_layer.6']
    #allocation5 [shape = 'u8[65536]{0}', space=vmem, size = 0x10000, scoped, tag = 'input window, operand 1, single buffered']
    #allocation6 [shape = 's32[1]{0}', space=sflag, size = 0x4, scoped, tag = 'scoped memory for rel_partial_decoder_layer.6']
    #allocation7 [shape = 'u8[131072]{0}', space=vmem, size = 0x20000, scoped, tag = 'output window, operand 0, single buffered']
    %7 = vsyncpa [#allocation3], 0
    %8 = vsyncpa [#allocation6], 0
    %9 = vsyncpa [#allocation4], 0
    // Predicated region
    $region2: #{rel_partial_decoder_layer.6} parent=1 // pred_check
      _
    $region3: #{rel_partial_decoder_layer.6} parent=1 // pred_check_branch
      %11 = sbr.rel (0) target = $region5
    $region4: #{rel_partial_decoder_layer.6} parent=1 // pred_region
      %s13 = ssub.s32 2048, 2048
      %14 = vsyncadd [#allocation3], %s13
      %s15 = sshll.u32 [#allocation2], 4
      %s16 = int_to_ptr.vmem [resolvable:$true] %s15
      %21 = dma.hbm_to_vmem [thread:$0]  %s0, 2048, %s16, [#allocation3], 128, 128, 8
    $region5: #{rel_partial_decoder_layer.6} parent=1 // pred_fallthru
      _
    // Predicated region
    $region6: #{rel_partial_decoder_layer.6} parent=1 // pred_check
      _
    $region7: #{rel_partial_decoder_layer.6} parent=1 // pred_check_branch
      %23 = sbr.rel (0) target = $region9
    $region8: #{rel_partial_decoder_layer.6} parent=1 // pred_region
      %s25 = ssub.s32 2048, 2048
      %26 = vsyncadd [#allocation6], %s25
      %s27 = sshll.u32 [#allocation5], 4
      %s28 = int_to_ptr.vmem [resolvable:$true] %s27
      %33 = dma.hbm_to_vmem [thread:$0]  %s1, 2048, %s28, [#allocation6], 128, 128, 8
    $region9: #{rel_partial_decoder_layer.6} parent=1 // pred_fallthru
      _
    // Predicated region
    $region10: #{rel_partial_decoder_layer.6} parent=1 // pred_check
      _
    $region11: #{rel_partial_decoder_layer.6} parent=1 // pred_check_branch
      %35 = sbr.rel (0) target = $region13
    $region12: #{rel_partial_decoder_layer.6} parent=1 // pred_region
      %36 = dma.done [#allocation3], 2048
    $region13: #{rel_partial_decoder_layer.6} parent=1 // pred_fallthru
      _
    // Predicated region
    $region14: #{rel_partial_decoder_layer.6} parent=1 // pred_check
      _
    $region15: #{rel_partial_decoder_layer.6} parent=1 // pred_check_branch
      %38 = sbr.rel (0) target = $region17
    $region16: #{rel_partial_decoder_layer.6} parent=1 // pred_region
      %39 = dma.done [#allocation6], 2048
    $region17: #{rel_partial_decoder_layer.6} parent=1 // pred_fallthru
      _
    %v41 = vld [vmem:[#allocation2] sm:$0xff]
    %v42 = vld [vmem:[#allocation2 + $0x8] sm:$0xff]
    %v43 = vld [vmem:[#allocation2 + $0x10] sm:$0xff]
    %v44 = vld [vmem:[#allocation2 + $0x18] sm:$0xff]
    %v45 = vld [vmem:[#allocation2 + $0x20] sm:$0xff]
    %v46 = vld [vmem:[#allocation2 + $0x28] sm:$0xff]
    %v47 = vld [vmem:[#allocation2 + $0x30] sm:$0xff]
    %v48 = vld [vmem:[#allocation2 + $0x38] sm:$0xff]
    %v49 = vld [vmem:[#allocation2 + $0x40] sm:$0xff]
    %v50 = vld [vmem:[#allocation2 + $0x48] sm:$0xff]
    %v51 = vld [vmem:[#allocation2 + $0x50] sm:$0xff]
    %v52 = vld [vmem:[#allocation2 + $0x58] sm:$0xff]
    %v53 = vld [vmem:[#allocation2 + $0x60] sm:$0xff]
    %v54 = vld [vmem:[#allocation2 + $0x68] sm:$0xff]
    %v55 = vld [vmem:[#allocation2 + $0x70] sm:$0xff]
    %v56 = vld [vmem:[#allocation2 + $0x78] sm:$0xff]
    %v57 = vpack.c.bf16 %v42, %v41
    %v58 = vpack.c.bf16 %v44, %v43
    %v59 = vpack.c.bf16 %v46, %v45
    %v60 = vpack.c.bf16 %v48, %v47
    %v61 = vpack.c.bf16 %v50, %v49
    %v62 = vpack.c.bf16 %v52, %v51
    %v63 = vpack.c.bf16 %v54, %v53
    %v64 = vpack.c.bf16 %v56, %v55
    %v65 = vld [vmem:[#allocation5] sm:$0xff]
    %v66 = vld [vmem:[#allocation5 + $0x8] sm:$0xff]
    %v67 = vld [vmem:[#allocation5 + $0x10] sm:$0xff]
    %v68 = vld [vmem:[#allocation5 + $0x18] sm:$0xff]
    %v69 = vld [vmem:[#allocation5 + $0x20] sm:$0xff]
    %v70 = vld [vmem:[#allocation5 + $0x28] sm:$0xff]
    %v71 = vld [vmem:[#allocation5 + $0x30] sm:$0xff]
    %v72 = vld [vmem:[#allocation5 + $0x38] sm:$0xff]
    %v73 = vld [vmem:[#allocation5 + $0x40] sm:$0xff]
    %v74 = vld [vmem:[#allocation5 + $0x48] sm:$0xff]
    %v75 = vld [vmem:[#allocation5 + $0x50] sm:$0xff]
    %v76 = vld [vmem:[#allocation5 + $0x58] sm:$0xff]
    %v77 = vld [vmem:[#allocation5 + $0x60] sm:$0xff]
    %v78 = vld [vmem:[#allocation5 + $0x68] sm:$0xff]
    %v79 = vld [vmem:[#allocation5 + $0x70] sm:$0xff]
    %v80 = vld [vmem:[#allocation5 + $0x78] sm:$0xff]
    %v97 = vunpack.c.l.b16 %v65
    %v98 = vunpack.c.h.b16 %v65
    %v99 = vunpack.c.l.b16 %v66
    %v100 = vunpack.c.h.b16 %v66
    %v101 = vunpack.c.l.b16 %v67
    %v102 = vunpack.c.h.b16 %v67
    %v103 = vunpack.c.l.b16 %v68
    %v104 = vunpack.c.h.b16 %v68
    %v105 = vunpack.c.l.b16 %v69
    %v106 = vunpack.c.h.b16 %v69
    %v107 = vunpack.c.l.b16 %v70
    %v108 = vunpack.c.h.b16 %v70
    %v109 = vunpack.c.l.b16 %v71
    %v110 = vunpack.c.h.b16 %v71
    %v111 = vunpack.c.l.b16 %v72
    %v112 = vunpack.c.h.b16 %v72
    %v113 = vunpack.c.l.b16 %v73
    %v114 = vunpack.c.h.b16 %v73
    %v115 = vunpack.c.l.b16 %v74
    %v116 = vunpack.c.h.b16 %v74
    %v117 = vunpack.c.l.b16 %v75
    %v118 = vunpack.c.h.b16 %v75
    %v119 = vunpack.c.l.b16 %v76
    %v120 = vunpack.c.h.b16 %v76
    %v121 = vunpack.c.l.b16 %v77
    %v122 = vunpack.c.h.b16 %v77
    %v123 = vunpack.c.l.b16 %v78
    %v124 = vunpack.c.h.b16 %v78
    %v125 = vunpack.c.l.b16 %v79
    %v126 = vunpack.c.h.b16 %v79
    %v127 = vunpack.c.l.b16 %v80
    %v128 = vunpack.c.h.b16 %v80
    %v129 = vpack.c.b16 %v99, %v97
    %v130 = vpack.c.b16 %v100, %v98
    %v131 = vpack.c.b16 %v103, %v101
    %v132 = vpack.c.b16 %v104, %v102
    %v133 = vpack.c.b16 %v107, %v105
    %v134 = vpack.c.b16 %v108, %v106
    %v135 = vpack.c.b16 %v111, %v109
    %v136 = vpack.c.b16 %v112, %v110
    %v137 = vpack.c.b16 %v115, %v113
    %v138 = vpack.c.b16 %v116, %v114
    %v139 = vpack.c.b16 %v119, %v117
    %v140 = vpack.c.b16 %v120, %v118
    %v141 = vpack.c.b16 %v123, %v121
    %v142 = vpack.c.b16 %v124, %v122
    %v143 = vpack.c.b16 %v127, %v125
    %v144 = vpack.c.b16 %v128, %v126
    %161 = vmatprep.subr.bf16.mxu0 %v130
    %162 = vmatpush1.bf16.msra.mxu0 %v129
    %163 = vmatprep.subr.bf16.mxu0 %v132
    %164 = vmatpush1.bf16.msra.mxu0 %v131
    %165 = vmatprep.subr.bf16.mxu0 %v134
    %166 = vmatpush1.bf16.msra.mxu0 %v133
    %167 = vmatprep.subr.bf16.mxu0 %v136
    %168 = vmatpush1.bf16.msra.mxu0 %v135
    %169 = vmatprep.subr.bf16.mxu0 %v138
    %170 = vmatpush1.bf16.msra.mxu0 %v137
    %171 = vmatprep.subr.bf16.mxu0 %v140
    %172 = vmatpush1.bf16.msra.mxu0 %v139
    %173 = vmatprep.subr.bf16.mxu0 %v142
    %174 = vmatpush1.bf16.msra.mxu0 %v141
    %175 = vmatprep.subr.bf16.mxu0 %v144
    %176 = vmatpush1.bf16.msra.mxu0 %v143
    %177 = vmatprep.subr.bf16.mxu0 0
    %178 = vmatpush1.bf16.msra.mxu0 0
    %179 = vmatprep.subr.bf16.mxu0 0
    %180 = vmatpush1.bf16.msra.mxu0 0
    %181 = vmatprep.subr.bf16.mxu0 0
    %182 = vmatpush1.bf16.msra.mxu0 0
    %183 = vmatprep.subr.bf16.mxu0 0
    %184 = vmatpush1.bf16.msra.mxu0 0
    %185 = vmatprep.subr.bf16.mxu0 0
    %186 = vmatpush1.bf16.msra.mxu0 0
    %187 = vmatprep.subr.bf16.mxu0 0
    %188 = vmatpush1.bf16.msra.mxu0 0
    %189 = vmatprep.subr.bf16.mxu0 0
    %190 = vmatpush1.bf16.msra.mxu0 0
    %191 = vmatprep.subr.bf16.mxu0 0
    %192 = vmatpush1.bf16.msra.mxu0 0
    %193 = vmatprep.mubr.bf16.mxu0 0
    %194 = vmatmul.mubr.bf16.gmra.mrb[0].mxu0 %v57
    %v195 = vpop.f32.mrb[0].mxu0
    %v196 = vadd.f32 0.0, %v195
    %v197 = vpop.f32.mrb[0].mxu0
    %v198 = vadd.f32 0.0, %v197
    %v199 = vpop.f32.mrb[0].mxu0
    %v200 = vadd.f32 0.0, %v199
    %v201 = vpop.f32.mrb[0].mxu0
    %v202 = vadd.f32 0.0, %v201
    %203 = vmatprep.mubr.bf16.mxu0 0
    %204 = vmatmul.mubr.bf16.gmra.mrb[0].mxu0 %v58
    %v205 = vpop.f32.mrb[0].mxu0
    %v206 = vadd.f32 0.0, %v205
    %v207 = vpop.f32.mrb[0].mxu0
    %v208 = vadd.f32 0.0, %v207
    %v209 = vpop.f32.mrb[0].mxu0
    %v210 = vadd.f32 0.0, %v209
    %v211 = vpop.f32.mrb[0].mxu0
    %v212 = vadd.f32 0.0, %v211
    %213 = vmatprep.mubr.bf16.mxu0 0
    %214 = vmatmul.mubr.bf16.gmra.mrb[0].mxu0 %v59
    %v215 = vpop.f32.mrb[0].mxu0
    %v216 = vadd.f32 0.0, %v215
    %v217 = vpop.f32.mrb[0].mxu0
    %v218 = vadd.f32 0.0, %v217
    %v219 = vpop.f32.mrb[0].mxu0
    %v220 = vadd.f32 0.0, %v219
    %v221 = vpop.f32.mrb[0].mxu0
    %v222 = vadd.f32 0.0, %v221
    %223 = vmatprep.mubr.bf16.mxu0 0
    %224 = vmatmul.mubr.bf16.gmra.mrb[0].mxu0 %v60
    %v225 = vpop.f32.mrb[0].mxu0
    %v226 = vadd.f32 0.0, %v225
    %v227 = vpop.f32.mrb[0].mxu0
    %v228 = vadd.f32 0.0, %v227
    %v229 = vpop.f32.mrb[0].mxu0
    %v230 = vadd.f32 0.0, %v229
    %v231 = vpop.f32.mrb[0].mxu0
    %v232 = vadd.f32 0.0, %v231
    %233 = vmatprep.mubr.bf16.mxu0 0
    %234 = vmatmul.mubr.bf16.gmra.mrb[0].mxu0 %v61
    %v235 = vpop.f32.mrb[0].mxu0
    %v236 = vadd.f32 0.0, %v235
    %v237 = vpop.f32.mrb[0].mxu0
    %v238 = vadd.f32 0.0, %v237
    %v239 = vpop.f32.mrb[0].mxu0
    %v240 = vadd.f32 0.0, %v239
    %v241 = vpop.f32.mrb[0].mxu0
    %v242 = vadd.f32 0.0, %v241
    %243 = vmatprep.mubr.bf16.mxu0 0
    %244 = vmatmul.mubr.bf16.gmra.mrb[0].mxu0 %v62
    %v245 = vpop.f32.mrb[0].mxu0
    %v246 = vadd.f32 0.0, %v245
    %v247 = vpop.f32.mrb[0].mxu0
    %v248 = vadd.f32 0.0, %v247
    %v249 = vpop.f32.mrb[0].mxu0
    %v250 = vadd.f32 0.0, %v249
    %v251 = vpop.f32.mrb[0].mxu0
    %v252 = vadd.f32 0.0, %v251
    %253 = vmatprep.mubr.bf16.mxu0 0
    %254 = vmatmul.mubr.bf16.gmra.mrb[0].mxu0 %v63
    %v255 = vpop.f32.mrb[0].mxu0
    %v256 = vadd.f32 0.0, %v255
    %v257 = vpop.f32.mrb[0].mxu0
    %v258 = vadd.f32 0.0, %v257
    %v259 = vpop.f32.mrb[0].mxu0
    %v260 = vadd.f32 0.0, %v259
    %v261 = vpop.f32.mrb[0].mxu0
    %v262 = vadd.f32 0.0, %v261
    %263 = vmatprep.mubr.bf16.mxu0 0
    %264 = vmatmul.mubr.bf16.gmra.mrb[0].mxu0 %v64
    %v265 = vpop.f32.mrb[0].mxu0
    %v266 = vadd.f32 0.0, %v265
    %v267 = vpop.f32.mrb[0].mxu0
    %v268 = vadd.f32 0.0, %v267
    %v269 = vpop.f32.mrb[0].mxu0
    %v270 = vadd.f32 0.0, %v269
    %v271 = vpop.f32.mrb[0].mxu0
    %v272 = vadd.f32 0.0, %v271
    %273 = vdwg.mxu0
    %274 = vst [vmem:[#allocation7] sm:$0xff] %v196
    %275 = vst [vmem:[#allocation7 + $0x8] sm:$0xff] %v198
    %276 = vst [vmem:[#allocation7 + $0x10] sm:$0xff] %v200
    %277 = vst [vmem:[#allocation7 + $0x18] sm:$0xff] %v202
    %278 = vst [vmem:[#allocation7 + $0x20] sm:$0xff] %v206
    %279 = vst [vmem:[#allocation7 + $0x28] sm:$0xff] %v208
    %280 = vst [vmem:[#allocation7 + $0x30] sm:$0xff] %v210
    %281 = vst [vmem:[#allocation7 + $0x38] sm:$0xff] %v212
    %282 = vst [vmem:[#allocation7 + $0x40] sm:$0xff] %v216
    %283 = vst [vmem:[#allocation7 + $0x48] sm:$0xff] %v218
    %284 = vst [vmem:[#allocation7 + $0x50] sm:$0xff] %v220
    %285 = vst [vmem:[#allocation7 + $0x58] sm:$0xff] %v222
    %286 = vst [vmem:[#allocation7 + $0x60] sm:$0xff] %v226
    %287 = vst [vmem:[#allocation7 + $0x68] sm:$0xff] %v228
    %288 = vst [vmem:[#allocation7 + $0x70] sm:$0xff] %v230
    %289 = vst [vmem:[#allocation7 + $0x78] sm:$0xff] %v232
    %290 = vst [vmem:[#allocation7 + $0x80] sm:$0xff] %v236
    %291 = vst [vmem:[#allocation7 + $0x88] sm:$0xff] %v238
    %292 = vst [vmem:[#allocation7 + $0x90] sm:$0xff] %v240
    %293 = vst [vmem:[#allocation7 + $0x98] sm:$0xff] %v242
    %294 = vst [vmem:[#allocation7 + $0xa0] sm:$0xff] %v246
    %295 = vst [vmem:[#allocation7 + $0xa8] sm:$0xff] %v248
    %296 = vst [vmem:[#allocation7 + $0xb0] sm:$0xff] %v250
    %297 = vst [vmem:[#allocation7 + $0xb8] sm:$0xff] %v252
    %298 = vst [vmem:[#allocation7 + $0xc0] sm:$0xff] %v256
    %299 = vst [vmem:[#allocation7 + $0xc8] sm:$0xff] %v258
    %300 = vst [vmem:[#allocation7 + $0xd0] sm:$0xff] %v260
    %301 = vst [vmem:[#allocation7 + $0xd8] sm:$0xff] %v262
    %302 = vst [vmem:[#allocation7 + $0xe0] sm:$0xff] %v266
    %303 = vst [vmem:[#allocation7 + $0xe8] sm:$0xff] %v268
    %304 = vst [vmem:[#allocation7 + $0xf0] sm:$0xff] %v270
    %305 = vst [vmem:[#allocation7 + $0xf8] sm:$0xff] %v272
    // Predicated region
    $region18: #{rel_partial_decoder_layer.6} parent=1 // pred_check
      _
    $region19: #{rel_partial_decoder_layer.6} parent=1 // pred_check_branch
      %307 = sbr.rel (0) target = $region21
    $region20: #{rel_partial_decoder_layer.6} parent=1 // pred_region
      %s309 = ssub.s32 4096, 4096
      %310 = vsyncadd [#allocation4], %s309
      %s311 = sshll.u32 [#allocation7], 4
      %s312 = int_to_ptr.vmem [resolvable:$true] %s311
      %317 = dma.vmem_to_hbm [thread:$0]  %s312, 4096, %s2, [#allocation4], 256, 256, 16
    $region21: #{rel_partial_decoder_layer.6} parent=1 // pred_fallthru
      _
    // Predicated region
    $region22: #{rel_partial_decoder_layer.6} parent=1 // pred_check
      _
    $region23: #{rel_partial_decoder_layer.6} parent=1 // pred_check_branch
      %319 = sbr.rel (0) target = $region25
    $region24: #{rel_partial_decoder_layer.6} parent=1 // pred_region
      %320 = dma.done [#allocation4], 4096
    $region25: #{rel_partial_decoder_layer.6} parent=1 // pred_fallthru
      _
    %321 = vsyncpa [#allocation3], 1
    %322 = vsyncpa [#allocation6], 1
    %323 = vsyncpa [#allocation4], 1

// kernel: rel_partial_decoder_layer.8
$region0: #{rel_partial_decoder_layer.8}
  #allocation0 [shape = 'u32[]', space=smem, size = 0x4, offset = 0x4, fixed_abs, tag = 'smem constant byte address 0x4 - core index']
  #allocation1 [shape = 'u32[144,128]{1,0:T(1,128)}', space=vmem, size = 0x12000, scoped, tag = 'internal scratch']
  %s0 = inlined_call_operand.hbm [shape: f32[256,256], index: 0, kind: input, shape index: {}]
  %s1 = inlined_call_operand.hbm [shape: bf16[256,128], index: 1, kind: input, shape index: {}]
  %s2 = inlined_call_operand.hbm [shape: f32[256,128], index: 2, kind: input, shape index: {}]
  %s3 = inlined_call_operand.hbm [shape: f32[1,128], index: 3, kind: input, shape index: {}]
  %s4 = inlined_call_operand.hbm [shape: f32[1,128], index: 4, kind: input, shape index: {}]
  %s5 = inlined_call_operand.hbm [shape: f32[256,128], index: 5, kind: output, shape index: {}]
  %s6 = sld [smem:[#allocation0]]
  $region50: #{rel_partial_decoder_layer.8} parent=0
    _
  %s8 = ssub.s32 1, %s6
  %s9 = scalar_select 0, %s8, %s6
  $region1: #{rel_partial_decoder_layer.8} parent=0
    #allocation2 [shape = 'u8[262144]{0}', space=vmem, size = 0x40000, scoped, tag = 'input window, operand 0, single buffered']
    #allocation3 [shape = 's32[1]{0}', space=sflag, size = 0x4, scoped, tag = 'scoped memory for rel_partial_decoder_layer.8']
    #allocation4 [shape = 's32[1]{0}', space=sflag, size = 0x4, scoped, tag = 'scoped memory for rel_partial_decoder_layer.8']
    #allocation5 [shape = 'u8[65536]{0}', space=vmem, size = 0x10000, scoped, tag = 'input window, operand 1, single buffered']
    #allocation6 [shape = 's32[1]{0}', space=sflag, size = 0x4, scoped, tag = 'scoped memory for rel_partial_decoder_layer.8']
    #allocation7 [shape = 'u8[131072]{0}', space=vmem, size = 0x20000, scoped, tag = 'input window, operand 2, single buffered']
    #allocation8 [shape = 'u8[512]{0}', space=vmem, size = 0x400, scoped, tag = 'input window, operand 3, single buffered']
    #allocation9 [shape = 's32[1]{0}', space=sflag, size = 0x4, scoped, tag = 'scoped memory for rel_partial_decoder_layer.8']
    #allocation10 [shape = 'u8[512]{0}', space=vmem, size = 0x400, scoped, tag = 'input window, operand 4, single buffered']
    #allocation11 [shape = 'u8[131072]{0}', space=vmem, size = 0x20000, scoped, tag = 'output window, operand 0, single buffered']
    %10 = vsyncpa [#allocation3], 0
    %11 = vsyncpa [#allocation6], 0
    %12 = vsyncpa [#allocation9], 0
    %13 = vsyncpa [#allocation4], 0
    // Predicated region
    $region2: #{rel_partial_decoder_layer.8} parent=1 // pred_check
      _
    $region3: #{rel_partial_decoder_layer.8} parent=1 // pred_check_branch
      %15 = sbr.rel (0) target = $region5
    $region4: #{rel_partial_decoder_layer.8} parent=1 // pred_region
      %s17 = ssub.s32 8192, 8192
      %18 = vsyncadd [#allocation3], %s17
      %s19 = sshll.u32 [#allocation2], 4
      %s20 = int_to_ptr.vmem [resolvable:$true] %s19
      %25 = dma.hbm_to_vmem [thread:$0]  %s0, 8192, %s20, [#allocation3], 256, 256, 16
    $region5: #{rel_partial_decoder_layer.8} parent=1 // pred_fallthru
      _
    // Predicated region
    $region6: #{rel_partial_decoder_layer.8} parent=1 // pred_check
      _
    $region7: #{rel_partial_decoder_layer.8} parent=1 // pred_check_branch
      %27 = sbr.rel (0) target = $region9
    $region8: #{rel_partial_decoder_layer.8} parent=1 // pred_region
      %s29 = ssub.s32 2048, 2048
      %30 = vsyncadd [#allocation6], %s29
      %s31 = sshll.u32 [#allocation5], 4
      %s32 = int_to_ptr.vmem [resolvable:$true] %s31
      %37 = dma.hbm_to_vmem [thread:$0]  %s1, 2048, %s32, [#allocation6], 64, 64, 4
    $region9: #{rel_partial_decoder_layer.8} parent=1 // pred_fallthru
      _
    // Predicated region
    $region10: #{rel_partial_decoder_layer.8} parent=1 // pred_check
      _
    $region11: #{rel_partial_decoder_layer.8} parent=1 // pred_check_branch
      %39 = sbr.rel (0) target = $region13
    $region12: #{rel_partial_decoder_layer.8} parent=1 // pred_region
      %s41 = ssub.s32 4096, 4096
      %42 = vsyncadd [#allocation6], %s41
      %s43 = sshll.u32 [#allocation7], 4
      %s44 = int_to_ptr.vmem [resolvable:$true] %s43
      %49 = dma.hbm_to_vmem [thread:$0]  %s2, 4096, %s44, [#allocation6], 128, 128, 8
    $region13: #{rel_partial_decoder_layer.8} parent=1 // pred_fallthru
      _
    // Predicated region
    $region14: #{rel_partial_decoder_layer.8} parent=1 // pred_check
      _
    $region15: #{rel_partial_decoder_layer.8} parent=1 // pred_check_branch
      %51 = sbr.rel (0) target = $region17
    $region16: #{rel_partial_decoder_layer.8} parent=1 // pred_region
      %s53 = ssub.s32 16, 16
      %54 = vsyncadd [#allocation9], %s53
      %s56 = sshll.u32 [#allocation8], 4
      %s57 = int_to_ptr.vmem [resolvable:$true] %s56
      %59 = dma.hbm_to_vmem [thread:$0]  %s3, 16, %s57, [#allocation9]
    $region17: #{rel_partial_decoder_layer.8} parent=1 // pred_fallthru
      _
    // Predicated region
    $region18: #{rel_partial_decoder_layer.8} parent=1 // pred_check
      _
    $region19: #{rel_partial_decoder_layer.8} parent=1 // pred_check_branch
      %61 = sbr.rel (0) target = $region21
    $region20: #{rel_partial_decoder_layer.8} parent=1 // pred_region
      %s63 = ssub.s32 16, 16
      %64 = vsyncadd [#allocation9], %s63
      %s66 = sshll.u32 [#allocation10], 4
      %s67 = int_to_ptr.vmem [resolvable:$true] %s66
      %69 = dma.hbm_to_vmem [thread:$0]  %s4, 16, %s67, [#allocation9]
    $region21: #{rel_partial_decoder_layer.8} parent=1 // pred_fallthru
      _
    // Predicated region
    $region22: #{rel_partial_decoder_layer.8} parent=1 // pred_check
      _
    $region23: #{rel_partial_decoder_layer.8} parent=1 // pred_check_branch
      %71 = sbr.rel (0) target = $region25
    $region24: #{rel_partial_decoder_layer.8} parent=1 // pred_region
      %72 = dma.done [#allocation3], 8192
    $region25: #{rel_partial_decoder_layer.8} parent=1 // pred_fallthru
      _
    // Predicated region
    $region26: #{rel_partial_decoder_layer.8} parent=1 // pred_check
      _
    $region27: #{rel_partial_decoder_layer.8} parent=1 // pred_check_branch
      %74 = sbr.rel (0) target = $region29
    $region28: #{rel_partial_decoder_layer.8} parent=1 // pred_region
      %75 = dma.done [#allocation6], 2048
    $region29: #{rel_partial_decoder_layer.8} parent=1 // pred_fallthru
      _
    // Predicated region
    $region30: #{rel_partial_decoder_layer.8} parent=1 // pred_check
      _
    $region31: #{rel_partial_decoder_layer.8} parent=1 // pred_check_branch
      %77 = sbr.rel (0) target = $region33
    $region32: #{rel_partial_decoder_layer.8} parent=1 // pred_region
      %78 = dma.done [#allocation6], 4096
    $region33: #{rel_partial_decoder_layer.8} parent=1 // pred_fallthru
      _
    // Predicated region
    $region34: #{rel_partial_decoder_layer.8} parent=1 // pred_check
      _
    $region35: #{rel_partial_decoder_layer.8} parent=1 // pred_check_branch
      %80 = sbr.rel (0) target = $region37
    $region36: #{rel_partial_decoder_layer.8} parent=1 // pred_region
      %81 = dma.done [#allocation9], 16
    $region37: #{rel_partial_decoder_layer.8} parent=1 // pred_fallthru
      _
    // Predicated region
    $region38: #{rel_partial_decoder_layer.8} parent=1 // pred_check
      _
    $region39: #{rel_partial_decoder_layer.8} parent=1 // pred_check_branch
      %83 = sbr.rel (0) target = $region41
    $region40: #{rel_partial_decoder_layer.8} parent=1 // pred_region
      %84 = dma.done [#allocation9], 16
    $region41: #{rel_partial_decoder_layer.8} parent=1 // pred_fallthru
      _
    %v86 = vld [vmem:[#allocation2] sm:$0xff]
    %v87 = vld [vmem:[#allocation2 + $0x8] sm:$0xff]
    %v88 = vld [vmem:[#allocation2 + $0x10] sm:$0xff]
    %v89 = vld [vmem:[#allocation2 + $0x18] sm:$0xff]
    %v90 = vld [vmem:[#allocation2 + $0x20] sm:$0xff]
    %v91 = vld [vmem:[#allocation2 + $0x28] sm:$0xff]
    %v92 = vld [vmem:[#allocation2 + $0x30] sm:$0xff]
    %v93 = vld [vmem:[#allocation2 + $0x38] sm:$0xff]
    %v94 = vld [vmem:[#allocation2 + $0x40] sm:$0xff]
    %v95 = vld [vmem:[#allocation2 + $0x48] sm:$0xff]
    %v96 = vld [vmem:[#allocation2 + $0x50] sm:$0xff]
    %v97 = vld [vmem:[#allocation2 + $0x58] sm:$0xff]
    %v98 = vld [vmem:[#allocation2 + $0x60] sm:$0xff]
    %v99 = vld [vmem:[#allocation2 + $0x68] sm:$0xff]
    %v100 = vld [vmem:[#allocation2 + $0x70] sm:$0xff]
    %v101 = vld [vmem:[#allocation2 + $0x78] sm:$0xff]
    %v102 = vld [vmem:[#allocation2 + $0x80] sm:$0xff]
    %v103 = vld [vmem:[#allocation2 + $0x88] sm:$0xff]
    %v104 = vld [vmem:[#allocation2 + $0x90] sm:$0xff]
    %v105 = vld [vmem:[#allocation2 + $0x98] sm:$0xff]
    %v106 = vld [vmem:[#allocation2 + $0xa0] sm:$0xff]
    %v107 = vld [vmem:[#allocation2 + $0xa8] sm:$0xff]
    %v108 = vld [vmem:[#allocation2 + $0xb0] sm:$0xff]
    %v109 = vld [vmem:[#allocation2 + $0xb8] sm:$0xff]
    %v110 = vld [vmem:[#allocation2 + $0xc0] sm:$0xff]
    %v111 = vld [vmem:[#allocation2 + $0xc8] sm:$0xff]
    %v112 = vld [vmem:[#allocation2 + $0xd0] sm:$0xff]
    %v113 = vld [vmem:[#allocation2 + $0xd8] sm:$0xff]
    %v114 = vld [vmem:[#allocation2 + $0xe0] sm:$0xff]
    %v115 = vld [vmem:[#allocation2 + $0xe8] sm:$0xff]
    %v116 = vld [vmem:[#allocation2 + $0xf0] sm:$0xff]
    %v117 = vld [vmem:[#allocation2 + $0xf8] sm:$0xff]
    %v118 = vld [vmem:[#allocation2 + $0x100] sm:$0xff]
    %v119 = vld [vmem:[#allocation2 + $0x108] sm:$0xff]
    %v120 = vld [vmem:[#allocation2 + $0x110] sm:$0xff]
    %v121 = vld [vmem:[#allocation2 + $0x118] sm:$0xff]
    %v122 = vld [vmem:[#allocation2 + $0x120] sm:$0xff]
    %v123 = vld [vmem:[#allocation2 + $0x128] sm:$0xff]
    %v124 = vld [vmem:[#allocation2 + $0x130] sm:$0xff]
    %v125 = vld [vmem:[#allocation2 + $0x138] sm:$0xff]
    %v126 = vld [vmem:[#allocation2 + $0x140] sm:$0xff]
    %v127 = vld [vmem:[#allocation2 + $0x148] sm:$0xff]
    %v128 = vld [vmem:[#allocation2 + $0x150] sm:$0xff]
    %v129 = vld [vmem:[#allocation2 + $0x158] sm:$0xff]
    %v130 = vld [vmem:[#allocation2 + $0x160] sm:$0xff]
    %v131 = vld [vmem:[#allocation2 + $0x168] sm:$0xff]
    %v132 = vld [vmem:[#allocation2 + $0x170] sm:$0xff]
    %v133 = vld [vmem:[#allocation2 + $0x178] sm:$0xff]
    %v134 = vld [vmem:[#allocation2 + $0x180] sm:$0xff]
    %v135 = vld [vmem:[#allocation2 + $0x188] sm:$0xff]
    %v136 = vld [vmem:[#allocation2 + $0x190] sm:$0xff]
    %v137 = vld [vmem:[#allocation2 + $0x198] sm:$0xff]
    %v138 = vld [vmem:[#allocation2 + $0x1a0] sm:$0xff]
    %v139 = vld [vmem:[#allocation2 + $0x1a8] sm:$0xff]
    %v140 = vld [vmem:[#allocation2 + $0x1b0] sm:$0xff]
    %v141 = vld [vmem:[#allocation2 + $0x1b8] sm:$0xff]
    %v142 = vld [vmem:[#allocation2 + $0x1c0] sm:$0xff]
    %v143 = vld [vmem:[#allocation2 + $0x1c8] sm:$0xff]
    %v144 = vld [vmem:[#allocation2 + $0x1d0] sm:$0xff]
    %v145 = vld [vmem:[#allocation2 + $0x1d8] sm:$0xff]
    %v146 = vld [vmem:[#allocation2 + $0x1e0] sm:$0xff]
    %v147 = vld [vmem:[#allocation2 + $0x1e8] sm:$0xff]
    %v148 = vld [vmem:[#allocation2 + $0x1f0] sm:$0xff]
    %v149 = vld [vmem:[#allocation2 + $0x1f8] sm:$0xff]
    %v150 = vpack.c.bf16 %v88, %v86
    %v151 = vpack.c.bf16 %v89, %v87
    %v152 = vpack.c.bf16 %v92, %v90
    %v153 = vpack.c.bf16 %v93, %v91
    %v154 = vpack.c.bf16 %v96, %v94
    %v155 = vpack.c.bf16 %v97, %v95
    %v156 = vpack.c.bf16 %v100, %v98
    %v157 = vpack.c.bf16 %v101, %v99
    %v158 = vpack.c.bf16 %v104, %v102
    %v159 = vpack.c.bf16 %v105, %v103
    %v160 = vpack.c.bf16 %v108, %v106
    %v161 = vpack.c.bf16 %v109, %v107
    %v162 = vpack.c.bf16 %v112, %v110
    %v163 = vpack.c.bf16 %v113, %v111
    %v164 = vpack.c.bf16 %v116, %v114
    %v165 = vpack.c.bf16 %v117, %v115
    %v166 = vpack.c.bf16 %v120, %v118
    %v167 = vpack.c.bf16 %v121, %v119
    %v168 = vpack.c.bf16 %v124, %v122
    %v169 = vpack.c.bf16 %v125, %v123
    %v170 = vpack.c.bf16 %v128, %v126
    %v171 = vpack.c.bf16 %v129, %v127
    %v172 = vpack.c.bf16 %v132, %v130
    %v173 = vpack.c.bf16 %v133, %v131
    %v174 = vpack.c.bf16 %v136, %v134
    %v175 = vpack.c.bf16 %v137, %v135
    %v176 = vpack.c.bf16 %v140, %v138
    %v177 = vpack.c.bf16 %v141, %v139
    %v178 = vpack.c.bf16 %v144, %v142
    %v179 = vpack.c.bf16 %v145, %v143
    %v180 = vpack.c.bf16 %v148, %v146
    %v181 = vpack.c.bf16 %v149, %v147
    %v182 = vld [vmem:[#allocation5] sm:$0xf]
    %v183 = vld [vmem:[#allocation5 + $0x4] sm:$0xf]
    %v184 = vld [vmem:[#allocation5 + $0x8] sm:$0xf]
    %v185 = vld [vmem:[#allocation5 + $0xc] sm:$0xf]
    %v186 = vld [vmem:[#allocation5 + $0x10] sm:$0xf]
    %v187 = vld [vmem:[#allocation5 + $0x14] sm:$0xf]
    %v188 = vld [vmem:[#allocation5 + $0x18] sm:$0xf]
    %v189 = vld [vmem:[#allocation5 + $0x1c] sm:$0xf]
    %v190 = vld [vmem:[#allocation5 + $0x20] sm:$0xf]
    %v191 = vld [vmem:[#allocation5 + $0x24] sm:$0xf]
    %v192 = vld [vmem:[#allocation5 + $0x28] sm:$0xf]
    %v193 = vld [vmem:[#allocation5 + $0x2c] sm:$0xf]
    %v194 = vld [vmem:[#allocation5 + $0x30] sm:$0xf]
    %v195 = vld [vmem:[#allocation5 + $0x34] sm:$0xf]
    %v196 = vld [vmem:[#allocation5 + $0x38] sm:$0xf]
    %v197 = vld [vmem:[#allocation5 + $0x3c] sm:$0xf]
    %v198 = vld [vmem:[#allocation5 + $0x40] sm:$0xf]
    %v199 = vld [vmem:[#allocation5 + $0x44] sm:$0xf]
    %v200 = vld [vmem:[#allocation5 + $0x48] sm:$0xf]
    %v201 = vld [vmem:[#allocation5 + $0x4c] sm:$0xf]
    %v202 = vld [vmem:[#allocation5 + $0x50] sm:$0xf]
    %v203 = vld [vmem:[#allocation5 + $0x54] sm:$0xf]
    %v204 = vld [vmem:[#allocation5 + $0x58] sm:$0xf]
    %v205 = vld [vmem:[#allocation5 + $0x5c] sm:$0xf]
    %v206 = vld [vmem:[#allocation5 + $0x60] sm:$0xf]
    %v207 = vld [vmem:[#allocation5 + $0x64] sm:$0xf]
    %v208 = vld [vmem:[#allocation5 + $0x68] sm:$0xf]
    %v209 = vld [vmem:[#allocation5 + $0x6c] sm:$0xf]
    %v210 = vld [vmem:[#allocation5 + $0x70] sm:$0xf]
    %v211 = vld [vmem:[#allocation5 + $0x74] sm:$0xf]
    %v212 = vld [vmem:[#allocation5 + $0x78] sm:$0xf]
    %v213 = vld [vmem:[#allocation5 + $0x7c] sm:$0xf]
    %v246 = vunpack.c.l.b16 %v182
    %v247 = vunpack.c.l.b16 %v183
    %v248 = vunpack.c.l.b16 %v184
    %v249 = vunpack.c.l.b16 %v185
    %v250 = vunpack.c.l.b16 %v186
    %v251 = vunpack.c.l.b16 %v187
    %v252 = vunpack.c.l.b16 %v188
    %v253 = vunpack.c.l.b16 %v189
    %v254 = vunpack.c.l.b16 %v190
    %v255 = vunpack.c.l.b16 %v191
    %v256 = vunpack.c.l.b16 %v192
    %v257 = vunpack.c.l.b16 %v193
    %v258 = vunpack.c.l.b16 %v194
    %v259 = vunpack.c.l.b16 %v195
    %v260 = vunpack.c.l.b16 %v196
    %v261 = vunpack.c.l.b16 %v197
    %v262 = vunpack.c.l.b16 %v198
    %v263 = vunpack.c.l.b16 %v199
    %v264 = vunpack.c.l.b16 %v200
    %v265 = vunpack.c.l.b16 %v201
    %v266 = vunpack.c.l.b16 %v202
    %v267 = vunpack.c.l.b16 %v203
    %v268 = vunpack.c.l.b16 %v204
    %v269 = vunpack.c.l.b16 %v205
    %v270 = vunpack.c.l.b16 %v206
    %v271 = vunpack.c.l.b16 %v207
    %v272 = vunpack.c.l.b16 %v208
    %v273 = vunpack.c.l.b16 %v209
    %v274 = vunpack.c.l.b16 %v210
    %v275 = vunpack.c.l.b16 %v211
    %v276 = vunpack.c.l.b16 %v212
    %v277 = vunpack.c.l.b16 %v213
    %v278 = vpack.c.b16 %v247, %v246
    %v279 = vpack.c.b16 %v249, %v248
    %v280 = vpack.c.b16 %v251, %v250
    %v281 = vpack.c.b16 %v253, %v252
    %v282 = vpack.c.b16 %v255, %v254
    %v283 = vpack.c.b16 %v257, %v256
    %v284 = vpack.c.b16 %v259, %v258
    %v285 = vpack.c.b16 %v261, %v260
    %v286 = vpack.c.b16 %v263, %v262
    %v287 = vpack.c.b16 %v265, %v264
    %v288 = vpack.c.b16 %v267, %v266
    %v289 = vpack.c.b16 %v269, %v268
    %v290 = vpack.c.b16 %v271, %v270
    %v291 = vpack.c.b16 %v273, %v272
    %v292 = vpack.c.b16 %v275, %v274
    %v293 = vpack.c.b16 %v277, %v276
    %310 = vmatprep.subr.bf16.mxu0 0
    %311 = vmatpush1.bf16.msra.mxu0 %v278
    %312 = vmatprep.subr.bf16.mxu0 0
    %313 = vmatpush1.bf16.msra.mxu0 %v279
    %314 = vmatprep.subr.bf16.mxu0 0
    %315 = vmatpush1.bf16.msra.mxu0 %v280
    %316 = vmatprep.subr.bf16.mxu0 0
    %317 = vmatpush1.bf16.msra.mxu0 %v281
    %318 = vmatprep.subr.bf16.mxu0 0
    %319 = vmatpush1.bf16.msra.mxu0 %v282
    %320 = vmatprep.subr.bf16.mxu0 0
    %321 = vmatpush1.bf16.msra.mxu0 %v283
    %322 = vmatprep.subr.bf16.mxu0 0
    %323 = vmatpush1.bf16.msra.mxu0 %v284
    %324 = vmatprep.subr.bf16.mxu0 0
    %325 = vmatpush1.bf16.msra.mxu0 %v285
    %326 = vmatprep.subr.bf16.mxu0 0
    %327 = vmatpush1.bf16.msra.mxu0 %v286
    %328 = vmatprep.subr.bf16.mxu0 0
    %329 = vmatpush1.bf16.msra.mxu0 %v287
    %330 = vmatprep.subr.bf16.mxu0 0
    %331 = vmatpush1.bf16.msra.mxu0 %v288
    %332 = vmatprep.subr.bf16.mxu0 0
    %333 = vmatpush1.bf16.msra.mxu0 %v289
    %334 = vmatprep.subr.bf16.mxu0 0
    %335 = vmatpush1.bf16.msra.mxu0 %v290
    %336 = vmatprep.subr.bf16.mxu0 0
    %337 = vmatpush1.bf16.msra.mxu0 %v291
    %338 = vmatprep.subr.bf16.mxu0 0
    %339 = vmatpush1.bf16.msra.mxu0 %v292
    %340 = vmatprep.subr.bf16.mxu0 0
    %341 = vmatpush1.bf16.msra.mxu0 %v293
    %342 = vmatprep.mubr.bf16.mxu0 %v151
    %343 = vmatmul.mubr.bf16.gmra.mrb[0].mxu0 %v150
    %v344 = vpop.f32.mrb[0].mxu0
    %v345 = vadd.f32 0.0, %v344
    %v346 = vpop.f32.mrb[0].mxu0
    %v347 = vpop.f32.mrb[0].mxu0
    %v348 = vadd.f32 0.0, %v347
    %v349 = vpop.f32.mrb[0].mxu0
    %350 = vmatprep.mubr.bf16.mxu0 %v153
    %351 = vmatmul.mubr.bf16.gmra.mrb[0].mxu0 %v152
    %v352 = vpop.f32.mrb[0].mxu0
    %v353 = vadd.f32 0.0, %v352
    %v354 = vpop.f32.mrb[0].mxu0
    %v355 = vpop.f32.mrb[0].mxu0
    %v356 = vadd.f32 0.0, %v355
    %v357 = vpop.f32.mrb[0].mxu0
    %358 = vmatprep.mubr.bf16.mxu0 %v155
    %359 = vmatmul.mubr.bf16.gmra.mrb[0].mxu0 %v154
    %v360 = vpop.f32.mrb[0].mxu0
    %v361 = vadd.f32 0.0, %v360
    %v362 = vpop.f32.mrb[0].mxu0
    %v363 = vpop.f32.mrb[0].mxu0
    %v364 = vadd.f32 0.0, %v363
    %v365 = vpop.f32.mrb[0].mxu0
    %366 = vmatprep.mubr.bf16.mxu0 %v157
    %367 = vmatmul.mubr.bf16.gmra.mrb[0].mxu0 %v156
    %v368 = vpop.f32.mrb[0].mxu0
    %v369 = vadd.f32 0.0, %v368
    %v370 = vpop.f32.mrb[0].mxu0
    %v371 = vpop.f32.mrb[0].mxu0
    %v372 = vadd.f32 0.0, %v371
    %v373 = vpop.f32.mrb[0].mxu0
    %374 = vmatprep.mubr.bf16.mxu0 %v159
    %375 = vmatmul.mubr.bf16.gmra.mrb[0].mxu0 %v158
    %v376 = vpop.f32.mrb[0].mxu0
    %v377 = vadd.f32 0.0, %v376
    %v378 = vpop.f32.mrb[0].mxu0
    %v379 = vpop.f32.mrb[0].mxu0
    %v380 = vadd.f32 0.0, %v379
    %v381 = vpop.f32.mrb[0].mxu0
    %382 = vmatprep.mubr.bf16.mxu0 %v161
    %383 = vmatmul.mubr.bf16.gmra.mrb[0].mxu0 %v160
    %v384 = vpop.f32.mrb[0].mxu0
    %v385 = vadd.f32 0.0, %v384
    %v386 = vpop.f32.mrb[0].mxu0
    %v387 = vpop.f32.mrb[0].mxu0
    %v388 = vadd.f32 0.0, %v387
    %v389 = vpop.f32.mrb[0].mxu0
    %390 = vmatprep.mubr.bf16.mxu0 %v163
    %391 = vmatmul.mubr.bf16.gmra.mrb[0].mxu0 %v162
    %v392 = vpop.f32.mrb[0].mxu0
    %v393 = vadd.f32 0.0, %v392
    %v394 = vpop.f32.mrb[0].mxu0
    %v395 = vpop.f32.mrb[0].mxu0
    %v396 = vadd.f32 0.0, %v395
    %v397 = vpop.f32.mrb[0].mxu0
    %398 = vmatprep.mubr.bf16.mxu0 %v165
    %399 = vmatmul.mubr.bf16.gmra.mrb[0].mxu0 %v164
    %v400 = vpop.f32.mrb[0].mxu0
    %v401 = vadd.f32 0.0, %v400
    %v402 = vpop.f32.mrb[0].mxu0
    %v403 = vpop.f32.mrb[0].mxu0
    %v404 = vadd.f32 0.0, %v403
    %v405 = vpop.f32.mrb[0].mxu0
    %406 = vmatprep.mubr.bf16.mxu0 %v167
    %407 = vmatmul.mubr.bf16.gmra.mrb[0].mxu0 %v166
    %v408 = vpop.f32.mrb[0].mxu0
    %v409 = vadd.f32 0.0, %v408
    %v410 = vpop.f32.mrb[0].mxu0
    %v411 = vpop.f32.mrb[0].mxu0
    %v412 = vadd.f32 0.0, %v411
    %v413 = vpop.f32.mrb[0].mxu0
    %414 = vmatprep.mubr.bf16.mxu0 %v169
    %415 = vmatmul.mubr.bf16.gmra.mrb[0].mxu0 %v168
    %v416 = vpop.f32.mrb[0].mxu0
    %v417 = vadd.f32 0.0, %v416
    %v418 = vpop.f32.mrb[0].mxu0
    %v419 = vpop.f32.mrb[0].mxu0
    %v420 = vadd.f32 0.0, %v419
    %v421 = vpop.f32.mrb[0].mxu0
    %422 = vmatprep.mubr.bf16.mxu0 %v171
    %423 = vmatmul.mubr.bf16.gmra.mrb[0].mxu0 %v170
    %v424 = vpop.f32.mrb[0].mxu0
    %v425 = vadd.f32 0.0, %v424
    %v426 = vpop.f32.mrb[0].mxu0
    %v427 = vpop.f32.mrb[0].mxu0
    %v428 = vadd.f32 0.0, %v427
    %v429 = vpop.f32.mrb[0].mxu0
    %430 = vmatprep.mubr.bf16.mxu0 %v173
    %431 = vmatmul.mubr.bf16.gmra.mrb[0].mxu0 %v172
    %v432 = vpop.f32.mrb[0].mxu0
    %v433 = vadd.f32 0.0, %v432
    %v434 = vpop.f32.mrb[0].mxu0
    %v435 = vpop.f32.mrb[0].mxu0
    %v436 = vadd.f32 0.0, %v435
    %v437 = vpop.f32.mrb[0].mxu0
    %438 = vmatprep.mubr.bf16.mxu0 %v175
    %439 = vmatmul.mubr.bf16.gmra.mrb[0].mxu0 %v174
    %v440 = vpop.f32.mrb[0].mxu0
    %v441 = vadd.f32 0.0, %v440
    %v442 = vpop.f32.mrb[0].mxu0
    %v443 = vpop.f32.mrb[0].mxu0
    %v444 = vadd.f32 0.0, %v443
    %v445 = vpop.f32.mrb[0].mxu0
    %446 = vmatprep.mubr.bf16.mxu0 %v177
    %447 = vmatmul.mubr.bf16.gmra.mrb[0].mxu0 %v176
    %v448 = vpop.f32.mrb[0].mxu0
    %v449 = vadd.f32 0.0, %v448
    %v450 = vpop.f32.mrb[0].mxu0
    %v451 = vpop.f32.mrb[0].mxu0
    %v452 = vadd.f32 0.0, %v451
    %v453 = vpop.f32.mrb[0].mxu0
    %454 = vmatprep.mubr.bf16.mxu0 %v179
    %455 = vmatmul.mubr.bf16.gmra.mrb[0].mxu0 %v178
    %v456 = vpop.f32.mrb[0].mxu0
    %v457 = vadd.f32 0.0, %v456
    %v458 = vpop.f32.mrb[0].mxu0
    %v459 = vpop.f32.mrb[0].mxu0
    %v460 = vadd.f32 0.0, %v459
    %v461 = vpop.f32.mrb[0].mxu0
    %462 = vmatprep.mubr.bf16.mxu0 %v181
    %463 = vmatmul.mubr.bf16.gmra.mrb[0].mxu0 %v180
    %v464 = vpop.f32.mrb[0].mxu0
    %v465 = vadd.f32 0.0, %v464
    %v466 = vpop.f32.mrb[0].mxu0
    %v467 = vpop.f32.mrb[0].mxu0
    %v468 = vadd.f32 0.0, %v467
    %v469 = vpop.f32.mrb[0].mxu0
    %470 = vdwg.mxu0
    %v471 = vld [vmem:[#allocation7] sm:$0xff]
    %v472 = vld [vmem:[#allocation7 + $0x8] sm:$0xff]
    %v473 = vld [vmem:[#allocation7 + $0x10] sm:$0xff]
    %v474 = vld [vmem:[#allocation7 + $0x18] sm:$0xff]
    %v475 = vld [vmem:[#allocation7 + $0x20] sm:$0xff]
    %v476 = vld [vmem:[#allocation7 + $0x28] sm:$0xff]
    %v477 = vld [vmem:[#allocation7 + $0x30] sm:$0xff]
    %v478 = vld [vmem:[#allocation7 + $0x38] sm:$0xff]
    %v479 = vld [vmem:[#allocation7 + $0x40] sm:$0xff]
    %v480 = vld [vmem:[#allocation7 + $0x48] sm:$0xff]
    %v481 = vld [vmem:[#allocation7 + $0x50] sm:$0xff]
    %v482 = vld [vmem:[#allocation7 + $0x58] sm:$0xff]
    %v483 = vld [vmem:[#allocation7 + $0x60] sm:$0xff]
    %v484 = vld [vmem:[#allocation7 + $0x68] sm:$0xff]
    %v485 = vld [vmem:[#allocation7 + $0x70] sm:$0xff]
    %v486 = vld [vmem:[#allocation7 + $0x78] sm:$0xff]
    %v487 = vld [vmem:[#allocation7 + $0x80] sm:$0xff]
    %v488 = vld [vmem:[#allocation7 + $0x88] sm:$0xff]
    %v489 = vld [vmem:[#allocation7 + $0x90] sm:$0xff]
    %v490 = vld [vmem:[#allocation7 + $0x98] sm:$0xff]
    %v491 = vld [vmem:[#allocation7 + $0xa0] sm:$0xff]
    %v492 = vld [vmem:[#allocation7 + $0xa8] sm:$0xff]
    %v493 = vld [vmem:[#allocation7 + $0xb0] sm:$0xff]
    %v494 = vld [vmem:[#allocation7 + $0xb8] sm:$0xff]
    %v495 = vld [vmem:[#allocation7 + $0xc0] sm:$0xff]
    %v496 = vld [vmem:[#allocation7 + $0xc8] sm:$0xff]
    %v497 = vld [vmem:[#allocation7 + $0xd0] sm:$0xff]
    %v498 = vld [vmem:[#allocation7 + $0xd8] sm:$0xff]
    %v499 = vld [vmem:[#allocation7 + $0xe0] sm:$0xff]
    %v500 = vld [vmem:[#allocation7 + $0xe8] sm:$0xff]
    %v501 = vld [vmem:[#allocation7 + $0xf0] sm:$0xff]
    %v502 = vld [vmem:[#allocation7 + $0xf8] sm:$0xff]
    %v503 = vadd.f32 %v471, %v345
    %v504 = vadd.f32 %v472, %v348
    %v505 = vadd.f32 %v473, %v353
    %v506 = vadd.f32 %v474, %v356
    %v507 = vadd.f32 %v475, %v361
    %v508 = vadd.f32 %v476, %v364
    %v509 = vadd.f32 %v477, %v369
    %v510 = vadd.f32 %v478, %v372
    %v511 = vadd.f32 %v479, %v377
    %v512 = vadd.f32 %v480, %v380
    %v513 = vadd.f32 %v481, %v385
    %v514 = vadd.f32 %v482, %v388
    %v515 = vadd.f32 %v483, %v393
    %v516 = vadd.f32 %v484, %v396
    %v517 = vadd.f32 %v485, %v401
    %v518 = vadd.f32 %v486, %v404
    %v519 = vadd.f32 %v487, %v409
    %v520 = vadd.f32 %v488, %v412
    %v521 = vadd.f32 %v489, %v417
    %v522 = vadd.f32 %v490, %v420
    %v523 = vadd.f32 %v491, %v425
    %v524 = vadd.f32 %v492, %v428
    %v525 = vadd.f32 %v493, %v433
    %v526 = vadd.f32 %v494, %v436
    %v527 = vadd.f32 %v495, %v441
    %v528 = vadd.f32 %v496, %v444
    %v529 = vadd.f32 %v497, %v449
    %v530 = vadd.f32 %v498, %v452
    %v531 = vadd.f32 %v499, %v457
    %v532 = vadd.f32 %v500, %v460
    %v533 = vadd.f32 %v501, %v465
    %v534 = vadd.f32 %v502, %v468
    %535 = vadd.xlane.f32.xlu0 %v503
    %v536 = vpop.xlane.xlu0 %535
    %537 = vadd.xlane.f32.xlu0 %v504
    %v538 = vpop.xlane.xlu0 %537
    %539 = vadd.xlane.f32.xlu0 %v505
    %v540 = vpop.xlane.xlu0 %539
    %541 = vadd.xlane.f32.xlu0 %v506
    %v542 = vpop.xlane.xlu0 %541
    %543 = vadd.xlane.f32.xlu0 %v507
    %v544 = vpop.xlane.xlu0 %543
    %545 = vadd.xlane.f32.xlu0 %v508
    %v546 = vpop.xlane.xlu0 %545
    %547 = vadd.xlane.f32.xlu0 %v509
    %v548 = vpop.xlane.xlu0 %547
    %549 = vadd.xlane.f32.xlu0 %v510
    %v550 = vpop.xlane.xlu0 %549
    %551 = vadd.xlane.f32.xlu0 %v511
    %v552 = vpop.xlane.xlu0 %551
    %553 = vadd.xlane.f32.xlu0 %v512
    %v554 = vpop.xlane.xlu0 %553
    %555 = vadd.xlane.f32.xlu0 %v513
    %v556 = vpop.xlane.xlu0 %555
    %557 = vadd.xlane.f32.xlu0 %v514
    %v558 = vpop.xlane.xlu0 %557
    %559 = vadd.xlane.f32.xlu0 %v515
    %v560 = vpop.xlane.xlu0 %559
    %561 = vadd.xlane.f32.xlu0 %v516
    %v562 = vpop.xlane.xlu0 %561
    %563 = vadd.xlane.f32.xlu0 %v517
    %v564 = vpop.xlane.xlu0 %563
    %565 = vadd.xlane.f32.xlu0 %v518
    %v566 = vpop.xlane.xlu0 %565
    %567 = vadd.xlane.f32.xlu0 %v519
    %v568 = vpop.xlane.xlu0 %567
    %569 = vadd.xlane.f32.xlu0 %v520
    %v570 = vpop.xlane.xlu0 %569
    %571 = vadd.xlane.f32.xlu0 %v521
    %v572 = vpop.xlane.xlu0 %571
    %573 = vadd.xlane.f32.xlu0 %v522
    %v574 = vpop.xlane.xlu0 %573
    %575 = vadd.xlane.f32.xlu0 %v523
    %v576 = vpop.xlane.xlu0 %575
    %577 = vadd.xlane.f32.xlu0 %v524
    %v578 = vpop.xlane.xlu0 %577
    %579 = vadd.xlane.f32.xlu0 %v525
    %v580 = vpop.xlane.xlu0 %579
    %581 = vadd.xlane.f32.xlu0 %v526
    %v582 = vpop.xlane.xlu0 %581
    %583 = vadd.xlane.f32.xlu0 %v527
    %v584 = vpop.xlane.xlu0 %583
    %585 = vadd.xlane.f32.xlu0 %v528
    %v586 = vpop.xlane.xlu0 %585
    %587 = vadd.xlane.f32.xlu0 %v529
    %v588 = vpop.xlane.xlu0 %587
    %589 = vadd.xlane.f32.xlu0 %v530
    %v590 = vpop.xlane.xlu0 %589
    %591 = vadd.xlane.f32.xlu0 %v531
    %v592 = vpop.xlane.xlu0 %591
    %593 = vadd.xlane.f32.xlu0 %v532
    %v594 = vpop.xlane.xlu0 %593
    %595 = vadd.xlane.f32.xlu0 %v533
    %v596 = vpop.xlane.xlu0 %595
    %597 = vadd.xlane.f32.xlu0 %v534
    %v598 = vpop.xlane.xlu0 %597
    %v599 = vrcp.pop 128.0
    %v600 = vmul.f32 %v536, %v599
    %v601 = vmul.f32 %v538, %v599
    %v602 = vmul.f32 %v540, %v599
    %v603 = vmul.f32 %v542, %v599
    %v604 = vmul.f32 %v544, %v599
    %v605 = vmul.f32 %v546, %v599
    %v606 = vmul.f32 %v548, %v599
    %v607 = vmul.f32 %v550, %v599
    %v608 = vmul.f32 %v552, %v599
    %v609 = vmul.f32 %v554, %v599
    %v610 = vmul.f32 %v556, %v599
    %v611 = vmul.f32 %v558, %v599
    %v612 = vmul.f32 %v560, %v599
    %v613 = vmul.f32 %v562, %v599
    %v614 = vmul.f32 %v564, %v599
    %v615 = vmul.f32 %v566, %v599
    %v616 = vmul.f32 %v568, %v599
    %v617 = vmul.f32 %v570, %v599
    %v618 = vmul.f32 %v572, %v599
    %v619 = vmul.f32 %v574, %v599
    %v620 = vmul.f32 %v576, %v599
    %v621 = vmul.f32 %v578, %v599
    %v622 = vmul.f32 %v580, %v599
    %v623 = vmul.f32 %v582, %v599
    %v624 = vmul.f32 %v584, %v599
    %v625 = vmul.f32 %v586, %v599
    %v626 = vmul.f32 %v588, %v599
    %v627 = vmul.f32 %v590, %v599
    %v628 = vmul.f32 %v592, %v599
    %v629 = vmul.f32 %v594, %v599
    %v630 = vmul.f32 %v596, %v599
    %v631 = vmul.f32 %v598, %v599
    %v632 = vsub.f32 %v503, %v600
    %v633 = vsub.f32 %v504, %v601
    %v634 = vsub.f32 %v505, %v602
    %v635 = vsub.f32 %v506, %v603
    %v636 = vsub.f32 %v507, %v604
    %v637 = vsub.f32 %v508, %v605
    %v638 = vsub.f32 %v509, %v606
    %v639 = vsub.f32 %v510, %v607
    %v640 = vsub.f32 %v511, %v608
    %v641 = vsub.f32 %v512, %v609
    %v642 = vsub.f32 %v513, %v610
    %v643 = vsub.f32 %v514, %v611
    %v644 = vsub.f32 %v515, %v612
    %v645 = vsub.f32 %v516, %v613
    %v646 = vsub.f32 %v517, %v614
    %v647 = vsub.f32 %v518, %v615
    %v648 = vsub.f32 %v519, %v616
    %v649 = vsub.f32 %v520, %v617
    %v650 = vsub.f32 %v521, %v618
    %v651 = vsub.f32 %v522, %v619
    %v652 = vsub.f32 %v523, %v620
    %v653 = vsub.f32 %v524, %v621
    %v654 = vsub.f32 %v525, %v622
    %v655 = vsub.f32 %v526, %v623
    %v656 = vsub.f32 %v527, %v624
    %v657 = vsub.f32 %v528, %v625
    %v658 = vsub.f32 %v529, %v626
    %v659 = vsub.f32 %v530, %v627
    %v660 = vsub.f32 %v531, %v628
    %v661 = vsub.f32 %v532, %v629
    %v662 = vsub.f32 %v533, %v630
    %v663 = vsub.f32 %v534, %v631
    %v664 = vmul.f32 %v632, %v632
    %v665 = vmul.f32 %v633, %v633
    %v666 = vmul.f32 %v634, %v634
    %v667 = vmul.f32 %v635, %v635
    %v668 = vmul.f32 %v636, %v636
    %v669 = vmul.f32 %v637, %v637
    %v670 = vmul.f32 %v638, %v638
    %v671 = vmul.f32 %v639, %v639
    %v672 = vmul.f32 %v640, %v640
    %v673 = vmul.f32 %v641, %v641
    %v674 = vmul.f32 %v642, %v642
    %v675 = vmul.f32 %v643, %v643
    %v676 = vmul.f32 %v644, %v644
    %v677 = vmul.f32 %v645, %v645
    %v678 = vmul.f32 %v646, %v646
    %v679 = vmul.f32 %v647, %v647
    %v680 = vmul.f32 %v648, %v648
    %v681 = vmul.f32 %v649, %v649
    %v682 = vmul.f32 %v650, %v650
    %v683 = vmul.f32 %v651, %v651
    %v684 = vmul.f32 %v652, %v652
    %v685 = vmul.f32 %v653, %v653
    %v686 = vmul.f32 %v654, %v654
    %v687 = vmul.f32 %v655, %v655
    %v688 = vmul.f32 %v656, %v656
    %v689 = vmul.f32 %v657, %v657
    %v690 = vmul.f32 %v658, %v658
    %v691 = vmul.f32 %v659, %v659
    %v692 = vmul.f32 %v660, %v660
    %v693 = vmul.f32 %v661, %v661
    %v694 = vmul.f32 %v662, %v662
    %v695 = vmul.f32 %v663, %v663
    %696 = vadd.xlane.f32.xlu0 %v664
    %v697 = vpop.xlane.xlu0 %696
    %698 = vadd.xlane.f32.xlu0 %v665
    %v699 = vpop.xlane.xlu0 %698
    %700 = vadd.xlane.f32.xlu0 %v666
    %v701 = vpop.xlane.xlu0 %700
    %702 = vadd.xlane.f32.xlu0 %v667
    %v703 = vpop.xlane.xlu0 %702
    %704 = vadd.xlane.f32.xlu0 %v668
    %v705 = vpop.xlane.xlu0 %704
    %706 = vadd.xlane.f32.xlu0 %v669
    %v707 = vpop.xlane.xlu0 %706
    %708 = vadd.xlane.f32.xlu0 %v670
    %v709 = vpop.xlane.xlu0 %708
    %710 = vadd.xlane.f32.xlu0 %v671
    %v711 = vpop.xlane.xlu0 %710
    %712 = vadd.xlane.f32.xlu0 %v672
    %v713 = vpop.xlane.xlu0 %712
    %714 = vadd.xlane.f32.xlu0 %v673
    %v715 = vpop.xlane.xlu0 %714
    %716 = vadd.xlane.f32.xlu0 %v674
    %v717 = vpop.xlane.xlu0 %716
    %718 = vadd.xlane.f32.xlu0 %v675
    %v719 = vpop.xlane.xlu0 %718
    %720 = vadd.xlane.f32.xlu0 %v676
    %v721 = vpop.xlane.xlu0 %720
    %722 = vadd.xlane.f32.xlu0 %v677
    %v723 = vpop.xlane.xlu0 %722
    %724 = vadd.xlane.f32.xlu0 %v678
    %v725 = vpop.xlane.xlu0 %724
    %726 = vadd.xlane.f32.xlu0 %v679
    %v727 = vpop.xlane.xlu0 %726
    %728 = vadd.xlane.f32.xlu0 %v680
    %v729 = vpop.xlane.xlu0 %728
    %730 = vadd.xlane.f32.xlu0 %v681
    %v731 = vpop.xlane.xlu0 %730
    %732 = vadd.xlane.f32.xlu0 %v682
    %v733 = vpop.xlane.xlu0 %732
    %734 = vadd.xlane.f32.xlu0 %v683
    %v735 = vpop.xlane.xlu0 %734
    %736 = vadd.xlane.f32.xlu0 %v684
    %v737 = vpop.xlane.xlu0 %736
    %738 = vadd.xlane.f32.xlu0 %v685
    %v739 = vpop.xlane.xlu0 %738
    %740 = vadd.xlane.f32.xlu0 %v686
    %v741 = vpop.xlane.xlu0 %740
    %742 = vadd.xlane.f32.xlu0 %v687
    %v743 = vpop.xlane.xlu0 %742
    %744 = vadd.xlane.f32.xlu0 %v688
    %v745 = vpop.xlane.xlu0 %744
    %746 = vadd.xlane.f32.xlu0 %v689
    %v747 = vpop.xlane.xlu0 %746
    %748 = vadd.xlane.f32.xlu0 %v690
    %v749 = vpop.xlane.xlu0 %748
    %750 = vadd.xlane.f32.xlu0 %v691
    %v751 = vpop.xlane.xlu0 %750
    %752 = vadd.xlane.f32.xlu0 %v692
    %v753 = vpop.xlane.xlu0 %752
    %754 = vadd.xlane.f32.xlu0 %v693
    %v755 = vpop.xlane.xlu0 %754
    %756 = vadd.xlane.f32.xlu0 %v694
    %v757 = vpop.xlane.xlu0 %756
    %758 = vadd.xlane.f32.xlu0 %v695
    %v759 = vpop.xlane.xlu0 %758
    %v760 = vmul.f32 %v697, %v599
    %v761 = vmul.f32 %v699, %v599
    %v762 = vmul.f32 %v701, %v599
    %v763 = vmul.f32 %v703, %v599
    %v764 = vmul.f32 %v705, %v599
    %v765 = vmul.f32 %v707, %v599
    %v766 = vmul.f32 %v709, %v599
    %v767 = vmul.f32 %v711, %v599
    %v768 = vmul.f32 %v713, %v599
    %v769 = vmul.f32 %v715, %v599
    %v770 = vmul.f32 %v717, %v599
    %v771 = vmul.f32 %v719, %v599
    %v772 = vmul.f32 %v721, %v599
    %v773 = vmul.f32 %v723, %v599
    %v774 = vmul.f32 %v725, %v599
    %v775 = vmul.f32 %v727, %v599
    %v776 = vmul.f32 %v729, %v599
    %v777 = vmul.f32 %v731, %v599
    %v778 = vmul.f32 %v733, %v599
    %v779 = vmul.f32 %v735, %v599
    %v780 = vmul.f32 %v737, %v599
    %v781 = vmul.f32 %v739, %v599
    %v782 = vmul.f32 %v741, %v599
    %v783 = vmul.f32 %v743, %v599
    %v784 = vmul.f32 %v745, %v599
    %v785 = vmul.f32 %v747, %v599
    %v786 = vmul.f32 %v749, %v599
    %v787 = vmul.f32 %v751, %v599
    %v788 = vmul.f32 %v753, %v599
    %v789 = vmul.f32 %v755, %v599
    %v790 = vmul.f32 %v757, %v599
    %v791 = vmul.f32 %v759, %v599
    %v792 = vadd.f32 %v760, 1e-05
    %v793 = vadd.f32 %v761, 1e-05
    %v794 = vadd.f32 %v762, 1e-05
    %v795 = vadd.f32 %v763, 1e-05
    %v796 = vadd.f32 %v764, 1e-05
    %v797 = vadd.f32 %v765, 1e-05
    %v798 = vadd.f32 %v766, 1e-05
    %v799 = vadd.f32 %v767, 1e-05
    %v800 = vadd.f32 %v768, 1e-05
    %v801 = vadd.f32 %v769, 1e-05
    %v802 = vadd.f32 %v770, 1e-05
    %v803 = vadd.f32 %v771, 1e-05
    %v804 = vadd.f32 %v772, 1e-05
    %v805 = vadd.f32 %v773, 1e-05
    %v806 = vadd.f32 %v774, 1e-05
    %v807 = vadd.f32 %v775, 1e-05
    %v808 = vadd.f32 %v776, 1e-05
    %v809 = vadd.f32 %v777, 1e-05
    %v810 = vadd.f32 %v778, 1e-05
    %v811 = vadd.f32 %v779, 1e-05
    %v812 = vadd.f32 %v780, 1e-05
    %v813 = vadd.f32 %v781, 1e-05
    %v814 = vadd.f32 %v782, 1e-05
    %v815 = vadd.f32 %v783, 1e-05
    %v816 = vadd.f32 %v784, 1e-05
    %v817 = vadd.f32 %v785, 1e-05
    %v818 = vadd.f32 %v786, 1e-05
    %v819 = vadd.f32 %v787, 1e-05
    %v820 = vadd.f32 %v788, 1e-05
    %v821 = vadd.f32 %v789, 1e-05
    %v822 = vadd.f32 %v790, 1e-05
    %v823 = vadd.f32 %v791, 1e-05
    %v824 = vrsqrt.pop %v792
    %v825 = vrsqrt.pop %v793
    %v826 = vrsqrt.pop %v794
    %v827 = vrsqrt.pop %v795
    %v828 = vrsqrt.pop %v796
    %v829 = vrsqrt.pop %v797
    %v830 = vrsqrt.pop %v798
    %v831 = vrsqrt.pop %v799
    %v832 = vrsqrt.pop %v800
    %v833 = vrsqrt.pop %v801
    %v834 = vrsqrt.pop %v802
    %v835 = vrsqrt.pop %v803
    %v836 = vrsqrt.pop %v804
    %v837 = vrsqrt.pop %v805
    %v838 = vrsqrt.pop %v806
    %v839 = vrsqrt.pop %v807
    %v840 = vrsqrt.pop %v808
    %v841 = vrsqrt.pop %v809
    %v842 = vrsqrt.pop %v810
    %v843 = vrsqrt.pop %v811
    %v844 = vrsqrt.pop %v812
    %v845 = vrsqrt.pop %v813
    %v846 = vrsqrt.pop %v814
    %v847 = vrsqrt.pop %v815
    %v848 = vrsqrt.pop %v816
    %v849 = vrsqrt.pop %v817
    %v850 = vrsqrt.pop %v818
    %v851 = vrsqrt.pop %v819
    %v852 = vrsqrt.pop %v820
    %v853 = vrsqrt.pop %v821
    %v854 = vrsqrt.pop %v822
    %v855 = vrsqrt.pop %v823
    %v856 = vmul.f32 %v632, %v824
    %v857 = vmul.f32 %v633, %v825
    %v858 = vmul.f32 %v634, %v826
    %v859 = vmul.f32 %v635, %v827
    %v860 = vmul.f32 %v636, %v828
    %v861 = vmul.f32 %v637, %v829
    %v862 = vmul.f32 %v638, %v830
    %v863 = vmul.f32 %v639, %v831
    %v864 = vmul.f32 %v640, %v832
    %v865 = vmul.f32 %v641, %v833
    %v866 = vmul.f32 %v642, %v834
    %v867 = vmul.f32 %v643, %v835
    %v868 = vmul.f32 %v644, %v836
    %v869 = vmul.f32 %v645, %v837
    %v870 = vmul.f32 %v646, %v838
    %v871 = vmul.f32 %v647, %v839
    %v872 = vmul.f32 %v648, %v840
    %v873 = vmul.f32 %v649, %v841
    %v874 = vmul.f32 %v650, %v842
    %v875 = vmul.f32 %v651, %v843
    %v876 = vmul.f32 %v652, %v844
    %v877 = vmul.f32 %v653, %v845
    %v878 = vmul.f32 %v654, %v846
    %v879 = vmul.f32 %v655, %v847
    %v880 = vmul.f32 %v656, %v848
    %v881 = vmul.f32 %v657, %v849
    %v882 = vmul.f32 %v658, %v850
    %v883 = vmul.f32 %v659, %v851
    %v884 = vmul.f32 %v660, %v852
    %v885 = vmul.f32 %v661, %v853
    %v886 = vmul.f32 %v662, %v854
    %v887 = vmul.f32 %v663, %v855
    %v888 = vld [vmem:[#allocation8] sm:$0x1]
    %v890 = vlaneseq
    %v891 = vshrl.u32 %v890, 7
    %v892 = vsub.s32 0, %v891
    %v893 = vrot.slane %v888, %v892
    %v895 = vmul.f32 %v856, %v893
    %v896 = vmul.f32 %v857, %v893
    %v897 = vmul.f32 %v858, %v893
    %v898 = vmul.f32 %v859, %v893
    %v899 = vmul.f32 %v860, %v893
    %v900 = vmul.f32 %v861, %v893
    %v901 = vmul.f32 %v862, %v893
    %v902 = vmul.f32 %v863, %v893
    %v903 = vmul.f32 %v864, %v893
    %v904 = vmul.f32 %v865, %v893
    %v905 = vmul.f32 %v866, %v893
    %v906 = vmul.f32 %v867, %v893
    %v907 = vmul.f32 %v868, %v893
    %v908 = vmul.f32 %v869, %v893
    %v909 = vmul.f32 %v870, %v893
    %v910 = vmul.f32 %v871, %v893
    %v911 = vmul.f32 %v872, %v893
    %v912 = vmul.f32 %v873, %v893
    %v913 = vmul.f32 %v874, %v893
    %v914 = vmul.f32 %v875, %v893
    %v915 = vmul.f32 %v876, %v893
    %v916 = vmul.f32 %v877, %v893
    %v917 = vmul.f32 %v878, %v893
    %v918 = vmul.f32 %v879, %v893
    %v919 = vmul.f32 %v880, %v893
    %v920 = vmul.f32 %v881, %v893
    %v921 = vmul.f32 %v882, %v893
    %v922 = vmul.f32 %v883, %v893
    %v923 = vmul.f32 %v884, %v893
    %v924 = vmul.f32 %v885, %v893
    %v925 = vmul.f32 %v886, %v893
    %v926 = vmul.f32 %v887, %v893
    %v927 = vld [vmem:[#allocation10] sm:$0x1]
    %v929 = vlaneseq
    %v930 = vshrl.u32 %v929, 7
    %v931 = vsub.s32 0, %v930
    %v932 = vrot.slane %v927, %v931
    %v934 = vadd.f32 %v895, %v932
    %v935 = vadd.f32 %v896, %v932
    %v936 = vadd.f32 %v897, %v932
    %v937 = vadd.f32 %v898, %v932
    %v938 = vadd.f32 %v899, %v932
    %v939 = vadd.f32 %v900, %v932
    %v940 = vadd.f32 %v901, %v932
    %v941 = vadd.f32 %v902, %v932
    %v942 = vadd.f32 %v903, %v932
    %v943 = vadd.f32 %v904, %v932
    %v944 = vadd.f32 %v905, %v932
    %v945 = vadd.f32 %v906, %v932
    %v946 = vadd.f32 %v907, %v932
    %v947 = vadd.f32 %v908, %v932
    %v948 = vadd.f32 %v909, %v932
    %v949 = vadd.f32 %v910, %v932
    %v950 = vadd.f32 %v911, %v932
    %v951 = vadd.f32 %v912, %v932
    %v952 = vadd.f32 %v913, %v932
    %v953 = vadd.f32 %v914, %v932
    %v954 = vadd.f32 %v915, %v932
    %v955 = vadd.f32 %v916, %v932
    %v956 = vadd.f32 %v917, %v932
    %v957 = vadd.f32 %v918, %v932
    %v958 = vadd.f32 %v919, %v932
    %v959 = vadd.f32 %v920, %v932
    %v960 = vadd.f32 %v921, %v932
    %v961 = vadd.f32 %v922, %v932
    %v962 = vadd.f32 %v923, %v932
    %v963 = vadd.f32 %v924, %v932
    %v964 = vadd.f32 %v925, %v932
    %v965 = vadd.f32 %v926, %v932
    %966 = vst [vmem:[#allocation11] sm:$0xff] %v934
    %967 = vst [vmem:[#allocation11 + $0x8] sm:$0xff] %v935
    %968 = vst [vmem:[#allocation11 + $0x10] sm:$0xff] %v936
    %969 = vst [vmem:[#allocation11 + $0x18] sm:$0xff] %v937
    %970 = vst [vmem:[#allocation11 + $0x20] sm:$0xff] %v938
    %971 = vst [vmem:[#allocation11 + $0x28] sm:$0xff] %v939
    %972 = vst [vmem:[#allocation11 + $0x30] sm:$0xff] %v940
    %973 = vst [vmem:[#allocation11 + $0x38] sm:$0xff] %v941
    %974 = vst [vmem:[#allocation11 + $0x40] sm:$0xff] %v942
    %975 = vst [vmem:[#allocation11 + $0x48] sm:$0xff] %v943
    %976 = vst [vmem:[#allocation11 + $0x50] sm:$0xff] %v944
    %977 = vst [vmem:[#allocation11 + $0x58] sm:$0xff] %v945
    %978 = vst [vmem:[#allocation11 + $0x60] sm:$0xff] %v946
    %979 = vst [vmem:[#allocation11 + $0x68] sm:$0xff] %v947
    %980 = vst [vmem:[#allocation11 + $0x70] sm:$0xff] %v948
    %981 = vst [vmem:[#allocation11 + $0x78] sm:$0xff] %v949
    %982 = vst [vmem:[#allocation11 + $0x80] sm:$0xff] %v950
    %983 = vst [vmem:[#allocation11 + $0x88] sm:$0xff] %v951
    %984 = vst [vmem:[#allocation11 + $0x90] sm:$0xff] %v952
    %985 = vst [vmem:[#allocation11 + $0x98] sm:$0xff] %v953
    %986 = vst [vmem:[#allocation11 + $0xa0] sm:$0xff] %v954
    %987 = vst [vmem:[#allocation11 + $0xa8] sm:$0xff] %v955
    %988 = vst [vmem:[#allocation11 + $0xb0] sm:$0xff] %v956
    %989 = vst [vmem:[#allocation11 + $0xb8] sm:$0xff] %v957
    %990 = vst [vmem:[#allocation11 + $0xc0] sm:$0xff] %v958
    %991 = vst [vmem:[#allocation11 + $0xc8] sm:$0xff] %v959
    %992 = vst [vmem:[#allocation11 + $0xd0] sm:$0xff] %v960
    %993 = vst [vmem:[#allocation11 + $0xd8] sm:$0xff] %v961
    %994 = vst [vmem:[#allocation11 + $0xe0] sm:$0xff] %v962
    %995 = vst [vmem:[#allocation11 + $0xe8] sm:$0xff] %v963
    %996 = vst [vmem:[#allocation11 + $0xf0] sm:$0xff] %v964
    %997 = vst [vmem:[#allocation11 + $0xf8] sm:$0xff] %v965
    // Predicated region
    $region42: #{rel_partial_decoder_layer.8} parent=1 // pred_check
      _
    $region43: #{rel_partial_decoder_layer.8} parent=1 // pred_check_branch
      %999 = sbr.rel (0) target = $region45
    $region44: #{rel_partial_decoder_layer.8} parent=1 // pred_region
      %s1001 = ssub.s32 4096, 4096
      %1002 = vsyncadd [#allocation4], %s1001
      %s1003 = sshll.u32 [#allocation11], 4
      %s1004 = int_to_ptr.vmem [resolvable:$true] %s1003
      %1009 = dma.vmem_to_hbm [thread:$0]  %s1004, 4096, %s5, [#allocation4], 128, 128, 8
    $region45: #{rel_partial_decoder_layer.8} parent=1 // pred_fallthru
      _
    // Predicated region
    $region46: #{rel_partial_decoder_layer.8} parent=1 // pred_check
      _
    $region47: #{rel_partial_decoder_layer.8} parent=1 // pred_check_branch
      %1011 = sbr.rel (0) target = $region49
    $region48: #{rel_partial_decoder_layer.8} parent=1 // pred_region
      %1012 = dma.done [#allocation4], 4096
    $region49: #{rel_partial_decoder_layer.8} parent=1 // pred_fallthru
      _
    %1013 = vsyncpa [#allocation3], 1
    %1014 = vsyncpa [#allocation6], 1
    %1015 = vsyncpa [#allocation9], 1
    %1016 = vsyncpa [#allocation4], 1

// kernel: rel_partial_decoder_layer.7
$region0: #{rel_partial_decoder_layer.7}
  #allocation0 [shape = 'u32[]', space=smem, size = 0x4, offset = 0x4, fixed_abs, tag = 'smem constant byte address 0x4 - core index']
  #allocation1 [shape = 'u32[144,128]{1,0:T(1,128)}', space=vmem, size = 0x12000, scoped, tag = 'internal scratch']
  %s0 = inlined_call_operand.hbm [shape: f32[2,128,768], index: 0, kind: input, shape index: {}, may-alias: {0,1,2}]
  %s1 = inlined_call_operand.hbm [shape: f32[2,128,768], index: 1, kind: input, shape index: {}, may-alias: {0,1,2}]
  %s2 = inlined_call_operand.hbm [shape: f32[2,128,768], index: 2, kind: input, shape index: {}, may-alias: {0,1,2}]
  %s3 = inlined_call_operand.hbm [shape: f32[256,256], index: 3, kind: input, shape index: {}]
  %s4 = inlined_call_operand.hbm [shape: f32[2,1,128], index: 4, kind: input, shape index: {}]
  %s5 = inlined_call_operand.hbm [shape: f32[2,1,128], index: 5, kind: input, shape index: {}]
  %s6 = inlined_call_operand.hbm [shape: f32[2,128,256], index: 6, kind: output, shape index: {}]
  %s7 = sld [smem:[#allocation0]]
  $region81: #{rel_partial_decoder_layer.7} parent=0
    _
  %s9 = ssub.s32 1, %s7
  %s10 = scalar_select 0, %s9, %s7
  $region1: #{rel_partial_decoder_layer.7} parent=0
    #allocation2 [shape = 'u8[65536]{0}', space=vmem, size = 0x10000, scoped, tag = 'input window, operand 0']
    #allocation3 [shape = 's32[2]{0}', space=sflag, size = 0x8, scoped, tag = 'scoped memory for rel_partial_decoder_layer.7']
    #allocation4 [shape = 's32[2]{0}', space=sflag, size = 0x8, scoped, tag = 'scoped memory for rel_partial_decoder_layer.7']
    #allocation5 [shape = 'u8[131072]{0}', space=vmem, size = 0x20000, scoped, tag = 'input window, operand 1']
    #allocation6 [shape = 's32[2]{0}', space=sflag, size = 0x8, scoped, tag = 'scoped memory for rel_partial_decoder_layer.7']
    #allocation7 [shape = 'u8[131072]{0}', space=vmem, size = 0x20000, scoped, tag = 'input window, operand 2']
    #allocation8 [shape = 'u8[262144]{0}', space=vmem, size = 0x40000, scoped, tag = 'input window, operand 3']
    #allocation9 [shape = 's32[2]{0}', space=sflag, size = 0x8, scoped, tag = 'scoped memory for rel_partial_decoder_layer.7']
    #allocation10 [shape = 'u8[1024]{0}', space=vmem, size = 0x400, scoped, tag = 'input window, operand 4']
    #allocation11 [shape = 'u8[1024]{0}', space=vmem, size = 0x400, scoped, tag = 'input window, operand 5']
    #allocation12 [shape = 's32[2]{0}', space=sflag, size = 0x8, scoped, tag = 'scoped memory for rel_partial_decoder_layer.7']
    #allocation13 [shape = 'u8[65536]{0}', space=vmem, size = 0x10000, scoped, tag = 'output window, operand 0']
    %11 = vsyncpa [#allocation3], 0
    %s12 = scalar_lea.sflag [#allocation3], 1
    %13 = vsyncpa %s12, 0
    %14 = vsyncpa [#allocation6], 0
    %s15 = scalar_lea.sflag [#allocation6], 1
    %16 = vsyncpa %s15, 0
    %17 = vsyncpa [#allocation9], 0
    %s18 = scalar_lea.sflag [#allocation9], 1
    %19 = vsyncpa %s18, 0
    %20 = vsyncpa [#allocation12], 0
    %s21 = scalar_lea.sflag [#allocation12], 1
    %22 = vsyncpa %s21, 0
    %23 = vsyncpa [#allocation4], 0
    %s24 = scalar_lea.sflag [#allocation4], 1
    %25 = vsyncpa %s24, 0
    loop: start=0, step=1, limit=10
    $region2: #{rel_partial_decoder_layer.7} parent=1 // loop_pre_header
      _
    $region3: #{rel_partial_decoder_layer.7} parent=1 // loop_header
      %s27 = sphi 0, %s31
      %p28 = scmp.ge.s32.totalorder %s27, 10
      %s34 = sphi 0, %s53
      %s35 = sphi 0, %s49
      %s36 = sphi 0, %s45
      %s37 = sphi 0, %s34
      %s38 = sphi 0, %s35
      %s39 = sphi 0, %s36
      %s40 = sphi 0, %s37
      %s41 = sphi 0, %s38
      %s42 = sphi 0, %s39
      %s60 = sphi 0, %s62
      %s63 = sphi 0, %s60
      %s64 = sphi 0, %s63
      %s80 = sphi 0, %s64
      %s90 = sphi 0, %s92
      %s93 = sphi 0, %s90
      %s94 = sphi 0, %s93
      %s110 = sphi 0, %s94
      %s120 = sphi 0, %s122
      %s123 = sphi 0, %s120
      %s124 = sphi 0, %s123
      %s140 = sphi 0, %s124
      %s146 = sphi 0, %s148
      %s149 = sphi 0, %s146
      %s150 = sphi 0, %s149
      %s166 = sphi 0, %s150
      %s172 = sphi 0, %s174
      %s175 = sphi 0, %s172
      %s176 = sphi 0, %s175
      %s192 = sphi 0, %s176
      %s198 = sphi 0, %s200
      %s201 = sphi 0, %s198
      %s202 = sphi 0, %s201
      %s218 = sphi 0, %s202
      %s228 = sphi 0, %s230
      %s231 = sphi 0, %s228
      %s232 = sphi 0, %s231
      %s248 = sphi 0, %s232
    $region4: #{rel_partial_decoder_layer.7} parent=1 // loop_header_branch
      %30 = sbr.rel (%p28) target = $region8
    $region5: #{rel_partial_decoder_layer.7} parent=1 // loop_body
      %s32 = ssub.s32 %s27, 1
      %s33 = ssub.s32 %s27, 2
      %s43 = sadd.s32 1, %s36
      %p44 = scmp.ge.s32.totalorder %s43, 2
      %s45 = scalar_select %p44, 0, %s43
      %s46 = sadd.s32 1, %s35
      %s47 = scalar_select %p44, %s46, %s35
      %p48 = scmp.ge.s32.totalorder %s47, 2
      %s49 = scalar_select %p48, 0, %s47
      %s50 = sadd.s32 1, %s34
      %s51 = scalar_select %p48, %s50, %s34
      %p52 = scmp.ge.s32.totalorder %s51, 2
      %s53 = scalar_select %p52, 0, %s51
      %s54 = ssub.s32 %s34, %s53
      %s55 = ssub.s32 %s36, %s45
      %s56 = sor.u32 %s54, %s55
      %s57 = ssub.s32 %s35, %s49
      %s58 = sor.u32 %s56, %s57
      %p59 = scmp.eq.s32.totalorder %s58, 0
      %s61 = sadd.s32 %s60, 1
      %s62 = scalar_select %p59, %s60, %s61
      %p65 = pneg %p59
      %p66 = scmp.eq.s32.totalorder %s27, 7
      %p67 = por %p65, %p66
      %p68 = scmp.ne.s32.totalorder %s60, %s63
      %p69 = scmp.eq.s32.totalorder %s27, 0
      %p70 = por %p68, %p69
      %p71 = scmp.ne.s32.totalorder %s60, %s63
      %p72 = scmp.eq.s32.totalorder %s32, 7
      %p73 = por %p71, %p72
      %p74 = scmp.ne.s32.totalorder %s63, %s64
      %p75 = scmp.eq.s32.totalorder %s32, 0
      %p76 = por %p74, %p75
      %p77 = scmp.ne.s32.totalorder %s63, %s64
      %p78 = scmp.eq.s32.totalorder %s33, 7
      %p79 = por %p77, %p78
      %p81 = scmp.ne.s32.totalorder %s64, %s80
      %p82 = scmp.eq.s32.totalorder %s33, 0
      %p83 = por %p81, %p82
      %s84 = sadd.s32 %s35, 2
      %s85 = sadd.s32 %s49, 2
      %s86 = ssub.s32 %s34, %s53
      %s87 = ssub.s32 %s84, %s85
      %s88 = sor.u32 %s86, %s87
      %p89 = scmp.eq.s32.totalorder %s88, 0
      %s91 = sadd.s32 %s90, 1
      %s92 = scalar_select %p89, %s90, %s91
      %p95 = pneg %p89
      %p96 = scmp.eq.s32.totalorder %s27, 7
      %p97 = por %p95, %p96
      %p98 = scmp.ne.s32.totalorder %s90, %s93
      %p99 = scmp.eq.s32.totalorder %s27, 0
      %p100 = por %p98, %p99
      %p101 = scmp.ne.s32.totalorder %s90, %s93
      %p102 = scmp.eq.s32.totalorder %s32, 7
      %p103 = por %p101, %p102
      %p104 = scmp.ne.s32.totalorder %s93, %s94
      %p105 = scmp.eq.s32.totalorder %s32, 0
      %p106 = por %p104, %p105
      %p107 = scmp.ne.s32.totalorder %s93, %s94
      %p108 = scmp.eq.s32.totalorder %s33, 7
      %p109 = por %p107, %p108
      %p111 = scmp.ne.s32.totalorder %s94, %s110
      %p112 = scmp.eq.s32.totalorder %s33, 0
      %p113 = por %p111, %p112
      %s114 = sadd.s32 %s35, 4
      %s115 = sadd.s32 %s49, 4
      %s116 = ssub.s32 %s34, %s53
      %s117 = ssub.s32 %s114, %s115
      %s118 = sor.u32 %s116, %s117
      %p119 = scmp.eq.s32.totalorder %s118, 0
      %s121 = sadd.s32 %s120, 1
      %s122 = scalar_select %p119, %s120, %s121
      %p125 = pneg %p119
      %p126 = scmp.eq.s32.totalorder %s27, 7
      %p127 = por %p125, %p126
      %p128 = scmp.ne.s32.totalorder %s120, %s123
      %p129 = scmp.eq.s32.totalorder %s27, 0
      %p130 = por %p128, %p129
      %p131 = scmp.ne.s32.totalorder %s120, %s123
      %p132 = scmp.eq.s32.totalorder %s32, 7
      %p133 = por %p131, %p132
      %p134 = scmp.ne.s32.totalorder %s123, %s124
      %p135 = scmp.eq.s32.totalorder %s32, 0
      %p136 = por %p134, %p135
      %p137 = scmp.ne.s32.totalorder %s123, %s124
      %p138 = scmp.eq.s32.totalorder %s33, 7
      %p139 = por %p137, %p138
      %p141 = scmp.ne.s32.totalorder %s124, %s140
      %p142 = scmp.eq.s32.totalorder %s33, 0
      %p143 = por %p141, %p142
      %s144 = ssub.s32 %s35, %s49
      %p145 = scmp.eq.s32.totalorder %s144, 0
      %s147 = sadd.s32 %s146, 1
      %s148 = scalar_select %p145, %s146, %s147
      %p151 = pneg %p145
      %p152 = scmp.eq.s32.totalorder %s27, 7
      %p153 = por %p151, %p152
      %p154 = scmp.ne.s32.totalorder %s146, %s149
      %p155 = scmp.eq.s32.totalorder %s27, 0
      %p156 = por %p154, %p155
      %p157 = scmp.ne.s32.totalorder %s146, %s149
      %p158 = scmp.eq.s32.totalorder %s32, 7
      %p159 = por %p157, %p158
      %p160 = scmp.ne.s32.totalorder %s149, %s150
      %p161 = scmp.eq.s32.totalorder %s32, 0
      %p162 = por %p160, %p161
      %p163 = scmp.ne.s32.totalorder %s149, %s150
      %p164 = scmp.eq.s32.totalorder %s33, 7
      %p165 = por %p163, %p164
      %p167 = scmp.ne.s32.totalorder %s150, %s166
      %p168 = scmp.eq.s32.totalorder %s33, 0
      %p169 = por %p167, %p168
      %s170 = ssub.s32 %s35, %s49
      %p171 = scmp.eq.s32.totalorder %s170, 0
      %s173 = sadd.s32 %s172, 1
      %s174 = scalar_select %p171, %s172, %s173
      %p177 = pneg %p171
      %p178 = scmp.eq.s32.totalorder %s27, 7
      %p179 = por %p177, %p178
      %p180 = scmp.ne.s32.totalorder %s172, %s175
      %p181 = scmp.eq.s32.totalorder %s27, 0
      %p182 = por %p180, %p181
      %p183 = scmp.ne.s32.totalorder %s172, %s175
      %p184 = scmp.eq.s32.totalorder %s32, 7
      %p185 = por %p183, %p184
      %p186 = scmp.ne.s32.totalorder %s175, %s176
      %p187 = scmp.eq.s32.totalorder %s32, 0
      %p188 = por %p186, %p187
      %p189 = scmp.ne.s32.totalorder %s175, %s176
      %p190 = scmp.eq.s32.totalorder %s33, 7
      %p191 = por %p189, %p190
      %p193 = scmp.ne.s32.totalorder %s176, %s192
      %p194 = scmp.eq.s32.totalorder %s33, 0
      %p195 = por %p193, %p194
      %s196 = ssub.s32 %s35, %s49
      %p197 = scmp.eq.s32.totalorder %s196, 0
      %s199 = sadd.s32 %s198, 1
      %s200 = scalar_select %p197, %s198, %s199
      %p203 = pneg %p197
      %p204 = scmp.eq.s32.totalorder %s27, 7
      %p205 = por %p203, %p204
      %p206 = scmp.ne.s32.totalorder %s198, %s201
      %p207 = scmp.eq.s32.totalorder %s27, 0
      %p208 = por %p206, %p207
      %p209 = scmp.ne.s32.totalorder %s198, %s201
      %p210 = scmp.eq.s32.totalorder %s32, 7
      %p211 = por %p209, %p210
      %p212 = scmp.ne.s32.totalorder %s201, %s202
      %p213 = scmp.eq.s32.totalorder %s32, 0
      %p214 = por %p212, %p213
      %p215 = scmp.ne.s32.totalorder %s201, %s202
      %p216 = scmp.eq.s32.totalorder %s33, 7
      %p217 = por %p215, %p216
      %p219 = scmp.ne.s32.totalorder %s202, %s218
      %p220 = scmp.eq.s32.totalorder %s33, 0
      %p221 = por %p219, %p220
      %s222 = ssub.s32 %s34, %s53
      %s223 = ssub.s32 %s36, %s45
      %s224 = sor.u32 %s222, %s223
      %s225 = ssub.s32 %s35, %s49
      %s226 = sor.u32 %s224, %s225
      %p227 = scmp.eq.s32.totalorder %s226, 0
      %s229 = sadd.s32 %s228, 1
      %s230 = scalar_select %p227, %s228, %s229
      %p233 = pneg %p227
      %p234 = scmp.eq.s32.totalorder %s27, 7
      %p235 = por %p233, %p234
      %p236 = scmp.ne.s32.totalorder %s228, %s231
      %p237 = scmp.eq.s32.totalorder %s27, 0
      %p238 = por %p236, %p237
      %p239 = scmp.ne.s32.totalorder %s228, %s231
      %p240 = scmp.eq.s32.totalorder %s32, 7
      %p241 = por %p239, %p240
      %p242 = scmp.ne.s32.totalorder %s231, %s232
      %p243 = scmp.eq.s32.totalorder %s32, 0
      %p244 = por %p242, %p243
      %p245 = scmp.ne.s32.totalorder %s231, %s232
      %p246 = scmp.eq.s32.totalorder %s33, 7
      %p247 = por %p245, %p246
      %p249 = scmp.ne.s32.totalorder %s232, %s248
      %p250 = scmp.eq.s32.totalorder %s33, 0
      %p251 = por %p249, %p250
      %p252 = scmp.le.s32.totalorder 1, %s27
      %p253 = scmp.lt.s32.totalorder %s27, 9
      %p254 = pnand %p252, %p253
      %p255 = pneg %p254
      // Predicated region
      $region9: #{rel_partial_decoder_layer.7} parent=5 // pred_check
        _
      $region10: #{rel_partial_decoder_layer.7} parent=5 // pred_check_branch
        %257 = sbr.rel (%p254) target = $region12
      $region11: #{rel_partial_decoder_layer.7} parent=5 // pred_region
        %s258 = ssub.s32 %s27, 1
      $region12: #{rel_partial_decoder_layer.7} parent=5 // pred_fallthru
        _
      %p259 = scmp.lt.s32.totalorder %s27, 8
      // Predicated region
      $region13: #{rel_partial_decoder_layer.7} parent=5 // pred_check
        %p260 = pneg %p259
      $region14: #{rel_partial_decoder_layer.7} parent=5 // pred_check_branch
        %262 = sbr.rel (%p260) target = $region16
      $region15: #{rel_partial_decoder_layer.7} parent=5 // pred_region
        // Predicated region
        $region17: #{rel_partial_decoder_layer.7} parent=15 // pred_check
          %p263 = pneg %p70
        $region18: #{rel_partial_decoder_layer.7} parent=15 // pred_check_branch
          %265 = sbr.rel (%p263) target = $region20
        $region19: #{rel_partial_decoder_layer.7} parent=15 // pred_region
          %s266 = sand.u32 %s60, 1
          %s267 = scalar_lea.sflag [#allocation3], %s266
          %s268 = sand.u32 %s60, 1
          %s269 = smul.addr %s268, 64
          %s270 = scalar_lea.vmem [#allocation2], %s269
          %s271 = smul.u32 8, %s36
          %s273 = ssub.s32 1024, 1024
          %274 = vsyncadd %s267, %s273
          %s275 = smul.addr %s271, 6
          %s276 = sadd.s32 %s35, %s275
          %s277 = smul.addr %s34, 96
          %s278 = sadd.s32 %s276, %s277
          %s279 = smul.addr %s278, 128
          %s280 = scalar_lea.hbm %s0, %s279
          %s281 = sshll.u32 %s270, 4
          %s282 = int_to_ptr.vmem [resolvable:$true] %s281
          %287 = dma.hbm_to_vmem [thread:$0]  %s280, 1024, %s282, %s267, 768, 128, 8
        $region20: #{rel_partial_decoder_layer.7} parent=15 // pred_fallthru
          _
        // Predicated region
        $region21: #{rel_partial_decoder_layer.7} parent=15 // pred_check
          %p288 = pneg %p100
        $region22: #{rel_partial_decoder_layer.7} parent=15 // pred_check_branch
          %290 = sbr.rel (%p288) target = $region24
        $region23: #{rel_partial_decoder_layer.7} parent=15 // pred_region
          %s291 = sand.u32 %s27, 1
          %s292 = scalar_lea.sflag [#allocation6], %s291
          %s293 = sand.u32 %s90, 1
          %s294 = smul.addr %s293, 128
          %s295 = scalar_lea.vmem [#allocation5], %s294
          %s296 = sadd.s32 %s35, 2
          %s298 = ssub.s32 2048, 2048
          %299 = vsyncadd %s292, %s298
          %s300 = smul.addr %s34, 96
          %s301 = sadd.s32 %s296, %s300
          %s302 = smul.addr %s301, 128
          %s303 = scalar_lea.hbm %s1, %s302
          %s304 = sshll.u32 %s295, 4
          %s305 = int_to_ptr.vmem [resolvable:$true] %s304
          %310 = dma.hbm_to_vmem [thread:$0]  %s303, 2048, %s305, %s292, 768, 128, 8
        $region24: #{rel_partial_decoder_layer.7} parent=15 // pred_fallthru
          _
        // Predicated region
        $region25: #{rel_partial_decoder_layer.7} parent=15 // pred_check
          %p311 = pneg %p130
        $region26: #{rel_partial_decoder_layer.7} parent=15 // pred_check_branch
          %313 = sbr.rel (%p311) target = $region28
        $region27: #{rel_partial_decoder_layer.7} parent=15 // pred_region
          %s314 = sand.u32 %s27, 1
          %s315 = scalar_lea.sflag [#allocation6], %s314
          %s316 = sand.u32 %s120, 1
          %s317 = smul.addr %s316, 128
          %s318 = scalar_lea.vmem [#allocation7], %s317
          %s319 = sadd.s32 %s35, 4
          %s321 = ssub.s32 2048, 2048
          %322 = vsyncadd %s315, %s321
          %s323 = smul.addr %s34, 96
          %s324 = sadd.s32 %s319, %s323
          %s325 = smul.addr %s324, 128
          %s326 = scalar_lea.hbm %s2, %s325
          %s327 = sshll.u32 %s318, 4
          %s328 = int_to_ptr.vmem [resolvable:$true] %s327
          %333 = dma.hbm_to_vmem [thread:$0]  %s326, 2048, %s328, %s315, 768, 128, 8
        $region28: #{rel_partial_decoder_layer.7} parent=15 // pred_fallthru
          _
        // Predicated region
        $region29: #{rel_partial_decoder_layer.7} parent=15 // pred_check
          %p334 = pneg %p156
        $region30: #{rel_partial_decoder_layer.7} parent=15 // pred_check_branch
          %336 = sbr.rel (%p334) target = $region32
        $region31: #{rel_partial_decoder_layer.7} parent=15 // pred_region
          %s337 = sand.u32 %s27, 1
          %s338 = scalar_lea.sflag [#allocation9], %s337
          %s339 = sand.u32 %s146, 1
          %s340 = smul.addr %s339, 256
          %s341 = scalar_lea.vmem [#allocation8], %s340
          %s343 = ssub.s32 4096, 4096
          %344 = vsyncadd %s338, %s343
          %s345 = smul.addr %s35, 128
          %s346 = scalar_lea.hbm %s3, %s345
          %s347 = sshll.u32 %s341, 4
          %s348 = int_to_ptr.vmem [resolvable:$true] %s347
          %353 = dma.hbm_to_vmem [thread:$0]  %s346, 4096, %s348, %s338, 256, 128, 8
        $region32: #{rel_partial_decoder_layer.7} parent=15 // pred_fallthru
          _
        // Predicated region
        $region33: #{rel_partial_decoder_layer.7} parent=15 // pred_check
          %p354 = pneg %p182
        $region34: #{rel_partial_decoder_layer.7} parent=15 // pred_check_branch
          %356 = sbr.rel (%p354) target = $region36
        $region35: #{rel_partial_decoder_layer.7} parent=15 // pred_region
          %s357 = sand.u32 %s27, 1
          %s358 = scalar_lea.sflag [#allocation9], %s357
          %s359 = sand.u32 %s172, 1
          %s360 = scalar_lea.vmem [#allocation10], %s359
          %s362 = ssub.s32 16, 16
          %363 = vsyncadd %s358, %s362
          %s364 = smul.addr %s35, 16
          %s365 = scalar_lea.hbm %s4, %s364
          %s367 = sshll.u32 %s360, 4
          %s368 = int_to_ptr.vmem [resolvable:$true] %s367
          %370 = dma.hbm_to_vmem [thread:$0]  %s365, 16, %s368, %s358
        $region36: #{rel_partial_decoder_layer.7} parent=15 // pred_fallthru
          _
        // Predicated region
        $region37: #{rel_partial_decoder_layer.7} parent=15 // pred_check
          %p371 = pneg %p208
        $region38: #{rel_partial_decoder_layer.7} parent=15 // pred_check_branch
          %373 = sbr.rel (%p371) target = $region40
        $region39: #{rel_partial_decoder_layer.7} parent=15 // pred_region
          %s374 = sand.u32 %s198, 1
          %s375 = scalar_lea.sflag [#allocation12], %s374
          %s376 = sand.u32 %s198, 1
          %s377 = scalar_lea.vmem [#allocation11], %s376
          %s379 = ssub.s32 16, 16
          %380 = vsyncadd %s375, %s379
          %s381 = smul.addr %s35, 16
          %s382 = scalar_lea.hbm %s5, %s381
          %s384 = sshll.u32 %s377, 4
          %s385 = int_to_ptr.vmem [resolvable:$true] %s384
          %387 = dma.hbm_to_vmem [thread:$0]  %s382, 16, %s385, %s375
        $region40: #{rel_partial_decoder_layer.7} parent=15 // pred_fallthru
          _
      $region16: #{rel_partial_decoder_layer.7} parent=5 // pred_fallthru
        _
      %p388 = scmp.le.s32.totalorder 1, %s27
      %p389 = scmp.lt.s32.totalorder %s27, 9
      %p390 = pnand %p388, %p389
      %p391 = pneg %p390
      // Predicated region
      $region41: #{rel_partial_decoder_layer.7} parent=5 // pred_check
        _
      $region42: #{rel_partial_decoder_layer.7} parent=5 // pred_check_branch
        %393 = sbr.rel (%p390) target = $region44
      $region43: #{rel_partial_decoder_layer.7} parent=5 // pred_region
        %s394 = ssub.s32 %s27, 1
        %s395 = sand.u32 %s63, 1
        %s396 = scalar_lea.sflag [#allocation3], %s395
        %s397 = sand.u32 %s63, 1
        %s398 = smul.addr %s397, 64
        %s399 = scalar_lea.vmem [#allocation2], %s398
        // Predicated region
        $region45: #{rel_partial_decoder_layer.7} parent=43 // pred_check
          %p400 = pneg %p76
        $region46: #{rel_partial_decoder_layer.7} parent=43 // pred_check_branch
          %402 = sbr.rel (%p400) target = $region48
        $region47: #{rel_partial_decoder_layer.7} parent=43 // pred_region
          %403 = dma.done %s396, 1024
        $region48: #{rel_partial_decoder_layer.7} parent=43 // pred_fallthru
          _
        %s404 = sand.u32 %s32, 1
        %s405 = scalar_lea.sflag [#allocation6], %s404
        %s406 = sand.u32 %s93, 1
        %s407 = smul.addr %s406, 128
        %s408 = scalar_lea.vmem [#allocation5], %s407
        // Predicated region
        $region49: #{rel_partial_decoder_layer.7} parent=43 // pred_check
          %p409 = pneg %p106
        $region50: #{rel_partial_decoder_layer.7} parent=43 // pred_check_branch
          %411 = sbr.rel (%p409) target = $region52
        $region51: #{rel_partial_decoder_layer.7} parent=43 // pred_region
          %412 = dma.done %s405, 2048
        $region52: #{rel_partial_decoder_layer.7} parent=43 // pred_fallthru
          _
        %s413 = sand.u32 %s32, 1
        %s414 = scalar_lea.sflag [#allocation6], %s413
        %s415 = sand.u32 %s123, 1
        %s416 = smul.addr %s415, 128
        %s417 = scalar_lea.vmem [#allocation7], %s416
        // Predicated region
        $region53: #{rel_partial_decoder_layer.7} parent=43 // pred_check
          %p418 = pneg %p136
        $region54: #{rel_partial_decoder_layer.7} parent=43 // pred_check_branch
          %420 = sbr.rel (%p418) target = $region56
        $region55: #{rel_partial_decoder_layer.7} parent=43 // pred_region
          %421 = dma.done %s414, 2048
        $region56: #{rel_partial_decoder_layer.7} parent=43 // pred_fallthru
          _
        %s422 = sand.u32 %s32, 1
        %s423 = scalar_lea.sflag [#allocation9], %s422
        %s424 = sand.u32 %s149, 1
        %s425 = smul.addr %s424, 256
        %s426 = scalar_lea.vmem [#allocation8], %s425
        // Predicated region
        $region57: #{rel_partial_decoder_layer.7} parent=43 // pred_check
          %p427 = pneg %p162
        $region58: #{rel_partial_decoder_layer.7} parent=43 // pred_check_branch
          %429 = sbr.rel (%p427) target = $region60
        $region59: #{rel_partial_decoder_layer.7} parent=43 // pred_region
          %430 = dma.done %s423, 4096
        $region60: #{rel_partial_decoder_layer.7} parent=43 // pred_fallthru
          _
        %s431 = sand.u32 %s32, 1
        %s432 = scalar_lea.sflag [#allocation9], %s431
        %s433 = sand.u32 %s175, 1
        %s434 = scalar_lea.vmem [#allocation10], %s433
        // Predicated region
        $region61: #{rel_partial_decoder_layer.7} parent=43 // pred_check
          %p435 = pneg %p188
        $region62: #{rel_partial_decoder_layer.7} parent=43 // pred_check_branch
          %437 = sbr.rel (%p435) target = $region64
        $region63: #{rel_partial_decoder_layer.7} parent=43 // pred_region
          %438 = dma.done %s432, 16
        $region64: #{rel_partial_decoder_layer.7} parent=43 // pred_fallthru
          _
        %s439 = sand.u32 %s201, 1
        %s440 = scalar_lea.sflag [#allocation12], %s439
        %s441 = sand.u32 %s201, 1
        %s442 = scalar_lea.vmem [#allocation11], %s441
        // Predicated region
        $region65: #{rel_partial_decoder_layer.7} parent=43 // pred_check
          %p443 = pneg %p214
        $region66: #{rel_partial_decoder_layer.7} parent=43 // pred_check_branch
          %445 = sbr.rel (%p443) target = $region68
        $region67: #{rel_partial_decoder_layer.7} parent=43 // pred_region
          %446 = dma.done %s440, 16
        $region68: #{rel_partial_decoder_layer.7} parent=43 // pred_fallthru
          _
        %s447 = sand.u32 %s63, 1
        %s448 = scalar_lea.sflag [#allocation3], %s447
        %s449 = sand.u32 %s63, 1
        %s450 = smul.addr %s449, 64
        %s451 = scalar_lea.vmem [#allocation2], %s450
        %p452 = pneg %p76
        %p453 = pneg %p73
        %s454 = sand.u32 %s32, 1
        %s455 = scalar_lea.sflag [#allocation6], %s454
        %s456 = sand.u32 %s93, 1
        %s457 = smul.addr %s456, 128
        %s458 = scalar_lea.vmem [#allocation5], %s457
        %p459 = pneg %p106
        %p460 = pneg %p103
        %s461 = sand.u32 %s32, 1
        %s462 = scalar_lea.sflag [#allocation6], %s461
        %s463 = sand.u32 %s123, 1
        %s464 = smul.addr %s463, 128
        %s465 = scalar_lea.vmem [#allocation7], %s464
        %p466 = pneg %p136
        %p467 = pneg %p133
        %s468 = sand.u32 %s32, 1
        %s469 = scalar_lea.sflag [#allocation9], %s468
        %s470 = sand.u32 %s149, 1
        %s471 = smul.addr %s470, 256
        %s472 = scalar_lea.vmem [#allocation8], %s471
        %p473 = pneg %p162
        %p474 = pneg %p159
        %s475 = sand.u32 %s32, 1
        %s476 = scalar_lea.sflag [#allocation9], %s475
        %s477 = sand.u32 %s175, 1
        %s478 = scalar_lea.vmem [#allocation10], %s477
        %p479 = pneg %p188
        %p480 = pneg %p185
        %s481 = sand.u32 %s201, 1
        %s482 = scalar_lea.sflag [#allocation12], %s481
        %s483 = sand.u32 %s201, 1
        %s484 = scalar_lea.vmem [#allocation11], %s483
        %p485 = pneg %p214
        %p486 = pneg %p211
        %p487 = pneg %p244
        %p488 = pneg %p241
        %s489 = sand.u32 %s231, 1
        %s490 = scalar_lea.sflag [#allocation4], %s489
        %s491 = sand.u32 %s231, 1
        %s492 = smul.addr %s491, 64
        %s493 = scalar_lea.vmem [#allocation13], %s492
        %s494 = smul.u32 8, %s39
        %s495 = sadd.s32 %s38, 2
        %s496 = sadd.s32 %s38, 4
        %s497 = smul.u32 8, %s39
        %s499 = smul.u32 %s39, 64
        %v500 = vld [vmem:[%s399] sm:$0xff]
        %v501 = vld [vmem:[%s399 + $0x8] sm:$0xff]
        %v502 = vld [vmem:[%s399 + $0x10] sm:$0xff]
        %v503 = vld [vmem:[%s399 + $0x18] sm:$0xff]
        %v504 = vld [vmem:[%s399 + $0x20] sm:$0xff]
        %v505 = vld [vmem:[%s399 + $0x28] sm:$0xff]
        %v506 = vld [vmem:[%s399 + $0x30] sm:$0xff]
        %v507 = vld [vmem:[%s399 + $0x38] sm:$0xff]
        %v508 = vld [vmem:[%s408] sm:$0xff]
        %v509 = vld [vmem:[%s408 + $0x8] sm:$0xff]
        %v510 = vld [vmem:[%s408 + $0x10] sm:$0xff]
        %v511 = vld [vmem:[%s408 + $0x18] sm:$0xff]
        %v512 = vld [vmem:[%s408 + $0x20] sm:$0xff]
        %v513 = vld [vmem:[%s408 + $0x28] sm:$0xff]
        %v514 = vld [vmem:[%s408 + $0x30] sm:$0xff]
        %v515 = vld [vmem:[%s408 + $0x38] sm:$0xff]
        %v516 = vld [vmem:[%s408 + $0x40] sm:$0xff]
        %v517 = vld [vmem:[%s408 + $0x48] sm:$0xff]
        %v518 = vld [vmem:[%s408 + $0x50] sm:$0xff]
        %v519 = vld [vmem:[%s408 + $0x58] sm:$0xff]
        %v520 = vld [vmem:[%s408 + $0x60] sm:$0xff]
        %v521 = vld [vmem:[%s408 + $0x68] sm:$0xff]
        %v522 = vld [vmem:[%s408 + $0x70] sm:$0xff]
        %v523 = vld [vmem:[%s408 + $0x78] sm:$0xff]
        %v524 = vpack.c.bf16 %v509, %v508
        %v525 = vpack.c.bf16 %v511, %v510
        %v526 = vpack.c.bf16 %v513, %v512
        %v527 = vpack.c.bf16 %v515, %v514
        %v528 = vpack.c.bf16 %v517, %v516
        %v529 = vpack.c.bf16 %v519, %v518
        %v530 = vpack.c.bf16 %v521, %v520
        %v531 = vpack.c.bf16 %v523, %v522
        %v532 = vld [vmem:[%s417] sm:$0xff]
        %v533 = vld [vmem:[%s417 + $0x8] sm:$0xff]
        %v534 = vld [vmem:[%s417 + $0x10] sm:$0xff]
        %v535 = vld [vmem:[%s417 + $0x18] sm:$0xff]
        %v536 = vld [vmem:[%s417 + $0x20] sm:$0xff]
        %v537 = vld [vmem:[%s417 + $0x28] sm:$0xff]
        %v538 = vld [vmem:[%s417 + $0x30] sm:$0xff]
        %v539 = vld [vmem:[%s417 + $0x38] sm:$0xff]
        %v540 = vld [vmem:[%s417 + $0x40] sm:$0xff]
        %v541 = vld [vmem:[%s417 + $0x48] sm:$0xff]
        %v542 = vld [vmem:[%s417 + $0x50] sm:$0xff]
        %v543 = vld [vmem:[%s417 + $0x58] sm:$0xff]
        %v544 = vld [vmem:[%s417 + $0x60] sm:$0xff]
        %v545 = vld [vmem:[%s417 + $0x68] sm:$0xff]
        %v546 = vld [vmem:[%s417 + $0x70] sm:$0xff]
        %v547 = vld [vmem:[%s417 + $0x78] sm:$0xff]
        %v548 = vpack.c.bf16 %v533, %v532
        %v549 = vpack.c.bf16 %v535, %v534
        %v550 = vpack.c.bf16 %v537, %v536
        %v551 = vpack.c.bf16 %v539, %v538
        %v552 = vpack.c.bf16 %v541, %v540
        %v553 = vpack.c.bf16 %v543, %v542
        %v554 = vpack.c.bf16 %v545, %v544
        %v555 = vpack.c.bf16 %v547, %v546
        %v556 = vld [vmem:[%s434] sm:$0x1]
        %v557 = vld [vmem:[%s442] sm:$0x1]
        %s558 = ssub.s32 128, %s499
        %s559 = scalar_lea.vmem %s426, %s558 [#allocation8]
        %v560 = vld [vmem:[%s559] sm:$0xff]
        %v561 = vld [vmem:[%s559 + $0x8] sm:$0xff]
        %v562 = vld [vmem:[%s559 + $0x10] sm:$0xff]
        %v563 = vld [vmem:[%s559 + $0x18] sm:$0xff]
        %v564 = vld [vmem:[%s559 + $0x20] sm:$0xff]
        %v565 = vld [vmem:[%s559 + $0x28] sm:$0xff]
        %v566 = vld [vmem:[%s559 + $0x30] sm:$0xff]
        %v567 = vld [vmem:[%s559 + $0x38] sm:$0xff]
        %v568 = vld [vmem:[%s559 + $0x40] sm:$0xff]
        %v569 = vld [vmem:[%s559 + $0x48] sm:$0xff]
        %v570 = vld [vmem:[%s559 + $0x50] sm:$0xff]
        %v571 = vld [vmem:[%s559 + $0x58] sm:$0xff]
        %v572 = vld [vmem:[%s559 + $0x60] sm:$0xff]
        %v573 = vld [vmem:[%s559 + $0x68] sm:$0xff]
        %v574 = vld [vmem:[%s559 + $0x70] sm:$0xff]
        %v575 = vld [vmem:[%s559 + $0x78] sm:$0xff]
        %v576 = vpack.c.bf16 %v561, %v560
        %v577 = vpack.c.bf16 %v563, %v562
        %v578 = vpack.c.bf16 %v565, %v564
        %v579 = vpack.c.bf16 %v567, %v566
        %v580 = vpack.c.bf16 %v569, %v568
        %v581 = vpack.c.bf16 %v571, %v570
        %v582 = vpack.c.bf16 %v573, %v572
        %v583 = vpack.c.bf16 %v575, %v574
        %v585 = vlaneseq
        %v586 = vshrl.u32 %v585, 7
        %v587 = vsub.s32 0, %v586
        %v588 = vrot.slane %v556, %v587
        %v590 = vadd.f32 %v500, %v588
        %v591 = vadd.f32 %v501, %v588
        %v592 = vadd.f32 %v502, %v588
        %v593 = vadd.f32 %v503, %v588
        %v594 = vadd.f32 %v504, %v588
        %v595 = vadd.f32 %v505, %v588
        %v596 = vadd.f32 %v506, %v588
        %v597 = vadd.f32 %v507, %v588
        %v598 = vpack.c.bf16 %v591, %v590
        %v599 = vpack.c.bf16 %v593, %v592
        %v600 = vpack.c.bf16 %v595, %v594
        %v601 = vpack.c.bf16 %v597, %v596
        %v603 = vlaneseq
        %v604 = vshrl.u32 %v603, 7
        %v605 = vsub.s32 0, %v604
        %v606 = vrot.slane %v557, %v605
        %v608 = vadd.f32 %v500, %v606
        %v609 = vadd.f32 %v501, %v606
        %v610 = vadd.f32 %v502, %v606
        %v611 = vadd.f32 %v503, %v606
        %v612 = vadd.f32 %v504, %v606
        %v613 = vadd.f32 %v505, %v606
        %v614 = vadd.f32 %v506, %v606
        %v615 = vadd.f32 %v507, %v606
        %v616 = vpack.c.bf16 %v609, %v608
        %v617 = vpack.c.bf16 %v611, %v610
        %v618 = vpack.c.bf16 %v613, %v612
        %v619 = vpack.c.bf16 %v615, %v614
        %620 = vmatprep.subr.bf16.mxu0 0
        %621 = vmatpush1.bf16.xpose.msra.mxu0 %v576
        %622 = vmatprep.subr.bf16.mxu0 0
        %623 = vmatpush1.bf16.xpose.msra.mxu0 %v577
        %624 = vmatprep.subr.bf16.mxu0 0
        %625 = vmatpush1.bf16.xpose.msra.mxu0 %v578
        %626 = vmatprep.subr.bf16.mxu0 0
        %627 = vmatpush1.bf16.xpose.msra.mxu0 %v579
        %628 = vmatprep.subr.bf16.mxu0 0
        %629 = vmatpush1.bf16.xpose.msra.mxu0 %v580
        %630 = vmatprep.subr.bf16.mxu0 0
        %631 = vmatpush1.bf16.xpose.msra.mxu0 %v581
        %632 = vmatprep.subr.bf16.mxu0 0
        %633 = vmatpush1.bf16.xpose.msra.mxu0 %v582
        %634 = vmatprep.subr.bf16.mxu0 0
        %635 = vmatpush1.bf16.xpose.msra.mxu0 %v583
        %636 = vmatprep.subr.bf16.mxu0 0
        %637 = vmatpush1.bf16.xpose.msra.mxu0 0
        %638 = vmatprep.subr.bf16.mxu0 0
        %639 = vmatpush1.bf16.xpose.msra.mxu0 0
        %640 = vmatprep.subr.bf16.mxu0 0
        %641 = vmatpush1.bf16.xpose.msra.mxu0 0
        %642 = vmatprep.subr.bf16.mxu0 0
        %643 = vmatpush1.bf16.xpose.msra.mxu0 0
        %644 = vmatprep.subr.bf16.mxu0 0
        %645 = vmatpush1.bf16.xpose.msra.mxu0 0
        %646 = vmatprep.subr.bf16.mxu0 0
        %647 = vmatpush1.bf16.xpose.msra.mxu0 0
        %648 = vmatprep.subr.bf16.mxu0 0
        %649 = vmatpush1.bf16.xpose.msra.mxu0 0
        %650 = vmatprep.subr.bf16.mxu0 0
        %651 = vmatpush1.bf16.xpose.msra.mxu0 0
        %652 = vmatprep.mubr.bf16.mxu0 0
        %653 = vmatmul.mubr.bf16.gmra.mrb[0].mxu0 %v616
        %v654 = vpop.f32.mrb[0].mxu0
        %v655 = vadd.f32 0.0, %v654
        %v656 = vpop.f32.mrb[0].mxu0
        %v657 = vpop.f32.mrb[0].mxu0
        %v658 = vadd.f32 0.0, %v657
        %v659 = vpop.f32.mrb[0].mxu0
        %660 = vmatprep.mubr.bf16.mxu0 0
        %661 = vmatmul.mubr.bf16.gmra.mrb[0].mxu0 %v617
        %v662 = vpop.f32.mrb[0].mxu0
        %v663 = vadd.f32 0.0, %v662
        %v664 = vpop.f32.mrb[0].mxu0
        %v665 = vpop.f32.mrb[0].mxu0
        %v666 = vadd.f32 0.0, %v665
        %v667 = vpop.f32.mrb[0].mxu0
        %668 = vmatprep.mubr.bf16.mxu0 0
        %669 = vmatmul.mubr.bf16.gmra.mrb[0].mxu0 %v618
        %v670 = vpop.f32.mrb[0].mxu0
        %v671 = vadd.f32 0.0, %v670
        %v672 = vpop.f32.mrb[0].mxu0
        %v673 = vpop.f32.mrb[0].mxu0
        %v674 = vadd.f32 0.0, %v673
        %v675 = vpop.f32.mrb[0].mxu0
        %676 = vmatprep.mubr.bf16.mxu0 0
        %677 = vmatmul.mubr.bf16.gmra.mrb[0].mxu0 %v619
        %v678 = vpop.f32.mrb[0].mxu0
        %v679 = vadd.f32 0.0, %v678
        %v680 = vpop.f32.mrb[0].mxu0
        %v681 = vpop.f32.mrb[0].mxu0
        %v682 = vadd.f32 0.0, %v681
        %v683 = vpop.f32.mrb[0].mxu0
        %684 = vdwg.mxu0
        %686 = vrot.lane.b32.xlu0 %v655, 256
        %v687 = vpop.permute.xlu0 %686
        %s689 = sor.u32 256, 8
        %690 = vrot.lane.b32.xlu0 %v658, %s689
        %v691 = vpop.permute.xlu0 %690
        %s693 = sor.u32 256, 16
        %694 = vrot.lane.b32.xlu0 %v663, %s693
        %v695 = vpop.permute.xlu0 %694
        %s697 = sor.u32 256, 24
        %698 = vrot.lane.b32.xlu0 %v666, %s697
        %v699 = vpop.permute.xlu0 %698
        %s701 = sor.u32 256, 32
        %702 = vrot.lane.b32.xlu0 %v671, %s701
        %v703 = vpop.permute.xlu0 %702
        %s705 = sor.u32 256, 40
        %706 = vrot.lane.b32.xlu0 %v674, %s705
        %v707 = vpop.permute.xlu0 %706
        %s709 = sor.u32 256, 48
        %710 = vrot.lane.b32.xlu0 %v679, %s709
        %v711 = vpop.permute.xlu0 %710
        %s713 = sor.u32 256, 56
        %714 = vrot.lane.b32.xlu0 %v682, %s713
        %v715 = vpop.permute.xlu0 %714
        %716 = vmatprep.subr.bf16.mxu0 0
        %717 = vmatpush1.bf16.xpose.msra.mxu0 %v524
        %718 = vmatprep.subr.bf16.mxu0 0
        %719 = vmatpush1.bf16.xpose.msra.mxu0 %v525
        %720 = vmatprep.subr.bf16.mxu0 0
        %721 = vmatpush1.bf16.xpose.msra.mxu0 %v526
        %722 = vmatprep.subr.bf16.mxu0 0
        %723 = vmatpush1.bf16.xpose.msra.mxu0 %v527
        %724 = vmatprep.subr.bf16.mxu0 0
        %725 = vmatpush1.bf16.xpose.msra.mxu0 %v528
        %726 = vmatprep.subr.bf16.mxu0 0
        %727 = vmatpush1.bf16.xpose.msra.mxu0 %v529
        %728 = vmatprep.subr.bf16.mxu0 0
        %729 = vmatpush1.bf16.xpose.msra.mxu0 %v530
        %730 = vmatprep.subr.bf16.mxu0 0
        %731 = vmatpush1.bf16.xpose.msra.mxu0 %v531
        %732 = vmatprep.subr.bf16.mxu0 0
        %733 = vmatpush1.bf16.xpose.msra.mxu0 0
        %734 = vmatprep.subr.bf16.mxu0 0
        %735 = vmatpush1.bf16.xpose.msra.mxu0 0
        %736 = vmatprep.subr.bf16.mxu0 0
        %737 = vmatpush1.bf16.xpose.msra.mxu0 0
        %738 = vmatprep.subr.bf16.mxu0 0
        %739 = vmatpush1.bf16.xpose.msra.mxu0 0
        %740 = vmatprep.subr.bf16.mxu0 0
        %741 = vmatpush1.bf16.xpose.msra.mxu0 0
        %742 = vmatprep.subr.bf16.mxu0 0
        %743 = vmatpush1.bf16.xpose.msra.mxu0 0
        %744 = vmatprep.subr.bf16.mxu0 0
        %745 = vmatpush1.bf16.xpose.msra.mxu0 0
        %746 = vmatprep.subr.bf16.mxu0 0
        %747 = vmatpush1.bf16.xpose.msra.mxu0 0
        %748 = vmatprep.mubr.bf16.mxu0 0
        %749 = vmatmul.mubr.bf16.gmra.mrb[0].mxu0 %v598
        %v750 = vpop.f32.mrb[0].mxu0
        %v751 = vadd.f32 %v687, %v750
        %v752 = vpop.f32.mrb[0].mxu0
        %v753 = vpop.f32.mrb[0].mxu0
        %v754 = vadd.f32 %v691, %v753
        %v755 = vpop.f32.mrb[0].mxu0
        %756 = vmatprep.mubr.bf16.mxu0 0
        %757 = vmatmul.mubr.bf16.gmra.mrb[0].mxu0 %v599
        %v758 = vpop.f32.mrb[0].mxu0
        %v759 = vadd.f32 %v695, %v758
        %v760 = vpop.f32.mrb[0].mxu0
        %v761 = vpop.f32.mrb[0].mxu0
        %v762 = vadd.f32 %v699, %v761
        %v763 = vpop.f32.mrb[0].mxu0
        %764 = vmatprep.mubr.bf16.mxu0 0
        %765 = vmatmul.mubr.bf16.gmra.mrb[0].mxu0 %v600
        %v766 = vpop.f32.mrb[0].mxu0
        %v767 = vadd.f32 %v703, %v766
        %v768 = vpop.f32.mrb[0].mxu0
        %v769 = vpop.f32.mrb[0].mxu0
        %v770 = vadd.f32 %v707, %v769
        %v771 = vpop.f32.mrb[0].mxu0
        %772 = vmatprep.mubr.bf16.mxu0 0
        %773 = vmatmul.mubr.bf16.gmra.mrb[0].mxu0 %v601
        %v774 = vpop.f32.mrb[0].mxu0
        %v775 = vadd.f32 %v711, %v774
        %v776 = vpop.f32.mrb[0].mxu0
        %v777 = vpop.f32.mrb[0].mxu0
        %v778 = vadd.f32 %v715, %v777
        %v779 = vpop.f32.mrb[0].mxu0
        %780 = vdwg.mxu0
        %v781 = vmul.f32 %v751, 0.088388346
        %v782 = vmul.f32 %v754, 0.088388346
        %v783 = vmul.f32 %v759, 0.088388346
        %v784 = vmul.f32 %v762, 0.088388346
        %v785 = vmul.f32 %v767, 0.088388346
        %v786 = vmul.f32 %v770, 0.088388346
        %v787 = vmul.f32 %v775, 0.088388346
        %v788 = vmul.f32 %v778, 0.088388346
        %v789 = vlaneseq
        %v790 = vshrl.u32 %v789, 7
        %v791 = vadd.s32 %v790, 8
        %v792 = vadd.s32 %v790, 16
        %v793 = vadd.s32 %v790, 24
        %v794 = vadd.s32 %v790, 32
        %v795 = vadd.s32 %v790, 40
        %v796 = vadd.s32 %v790, 48
        %v797 = vadd.s32 %v790, 56
        %v798 = vstv %s499
        %v799 = vadd.s32 %v790, %v798
        %v800 = vadd.s32 %v791, %v798
        %v801 = vadd.s32 %v792, %v798
        %v802 = vadd.s32 %v793, %v798
        %v803 = vadd.s32 %v794, %v798
        %v804 = vadd.s32 %v795, %v798
        %v805 = vadd.s32 %v796, %v798
        %v806 = vadd.s32 %v797, %v798
        %v807 = vlaneseq
        %v808 = vand.u32 %v807, 127
        %vm809 = vcmp.gt.s32.totalorder %v808, %v799
        %vm810 = vcmp.gt.s32.totalorder %v808, %v800
        %vm811 = vcmp.gt.s32.totalorder %v808, %v801
        %vm812 = vcmp.gt.s32.totalorder %v808, %v802
        %vm813 = vcmp.gt.s32.totalorder %v808, %v803
        %vm814 = vcmp.gt.s32.totalorder %v808, %v804
        %vm815 = vcmp.gt.s32.totalorder %v808, %v805
        %vm816 = vcmp.gt.s32.totalorder %v808, %v806
        %v817 = vsel %vm809, -1e+30, %v781
        %v818 = vsel %vm810, -1e+30, %v782
        %v819 = vsel %vm811, -1e+30, %v783
        %v820 = vsel %vm812, -1e+30, %v784
        %v821 = vsel %vm813, -1e+30, %v785
        %v822 = vsel %vm814, -1e+30, %v786
        %v823 = vsel %vm815, -1e+30, %v787
        %v824 = vsel %vm816, -1e+30, %v788
        %825 = vmax.xlane.f32.xlu0 %v817
        %v826 = vpop.xlane.xlu0 %825
        %827 = vmax.xlane.f32.xlu0 %v818
        %v828 = vpop.xlane.xlu0 %827
        %829 = vmax.xlane.f32.xlu0 %v819
        %v830 = vpop.xlane.xlu0 %829
        %831 = vmax.xlane.f32.xlu0 %v820
        %v832 = vpop.xlane.xlu0 %831
        %833 = vmax.xlane.f32.xlu0 %v821
        %v834 = vpop.xlane.xlu0 %833
        %835 = vmax.xlane.f32.xlu0 %v822
        %v836 = vpop.xlane.xlu0 %835
        %837 = vmax.xlane.f32.xlu0 %v823
        %v838 = vpop.xlane.xlu0 %837
        %839 = vmax.xlane.f32.xlu0 %v824
        %v840 = vpop.xlane.xlu0 %839
        %v841 = vsub.f32 %v817, %v826
        %v842 = vsub.f32 %v818, %v828
        %v843 = vsub.f32 %v819, %v830
        %v844 = vsub.f32 %v820, %v832
        %v845 = vsub.f32 %v821, %v834
        %v846 = vsub.f32 %v822, %v836
        %v847 = vsub.f32 %v823, %v838
        %v848 = vsub.f32 %v824, %v840
        %v849 = vmul.f32 %v841, 1.442695
        %v850 = vpow.pop %v849
        %v851 = vmul.f32 %v842, 1.442695
        %v852 = vpow.pop %v851
        %v853 = vmul.f32 %v843, 1.442695
        %v854 = vpow.pop %v853
        %v855 = vmul.f32 %v844, 1.442695
        %v856 = vpow.pop %v855
        %v857 = vmul.f32 %v845, 1.442695
        %v858 = vpow.pop %v857
        %v859 = vmul.f32 %v846, 1.442695
        %v860 = vpow.pop %v859
        %v861 = vmul.f32 %v847, 1.442695
        %v862 = vpow.pop %v861
        %v863 = vmul.f32 %v848, 1.442695
        %v864 = vpow.pop %v863
        %865 = vadd.xlane.f32.xlu0 %v850
        %v866 = vpop.xlane.xlu0 %865
        %867 = vadd.xlane.f32.xlu0 %v852
        %v868 = vpop.xlane.xlu0 %867
        %869 = vadd.xlane.f32.xlu0 %v854
        %v870 = vpop.xlane.xlu0 %869
        %871 = vadd.xlane.f32.xlu0 %v856
        %v872 = vpop.xlane.xlu0 %871
        %873 = vadd.xlane.f32.xlu0 %v858
        %v874 = vpop.xlane.xlu0 %873
        %875 = vadd.xlane.f32.xlu0 %v860
        %v876 = vpop.xlane.xlu0 %875
        %877 = vadd.xlane.f32.xlu0 %v862
        %v878 = vpop.xlane.xlu0 %877
        %879 = vadd.xlane.f32.xlu0 %v864
        %v880 = vpop.xlane.xlu0 %879
        %v881 = vrcp.pop %v866
        %v882 = vmul.f32 %v850, %v881
        %v883 = vrcp.pop %v868
        %v884 = vmul.f32 %v852, %v883
        %v885 = vrcp.pop %v870
        %v886 = vmul.f32 %v854, %v885
        %v887 = vrcp.pop %v872
        %v888 = vmul.f32 %v856, %v887
        %v889 = vrcp.pop %v874
        %v890 = vmul.f32 %v858, %v889
        %v891 = vrcp.pop %v876
        %v892 = vmul.f32 %v860, %v891
        %v893 = vrcp.pop %v878
        %v894 = vmul.f32 %v862, %v893
        %v895 = vrcp.pop %v880
        %v896 = vmul.f32 %v864, %v895
        %v897 = vpack.c.bf16 %v884, %v882
        %v898 = vpack.c.bf16 %v888, %v886
        %v899 = vpack.c.bf16 %v892, %v890
        %v900 = vpack.c.bf16 %v896, %v894
        %901 = vmatprep.subr.bf16.mxu0 0
        %902 = vmatpush1.bf16.msra.mxu0 %v548
        %903 = vmatprep.subr.bf16.mxu0 0
        %904 = vmatpush1.bf16.msra.mxu0 %v549
        %905 = vmatprep.subr.bf16.mxu0 0
        %906 = vmatpush1.bf16.msra.mxu0 %v550
        %907 = vmatprep.subr.bf16.mxu0 0
        %908 = vmatpush1.bf16.msra.mxu0 %v551
        %909 = vmatprep.subr.bf16.mxu0 0
        %910 = vmatpush1.bf16.msra.mxu0 %v552
        %911 = vmatprep.subr.bf16.mxu0 0
        %912 = vmatpush1.bf16.msra.mxu0 %v553
        %913 = vmatprep.subr.bf16.mxu0 0
        %914 = vmatpush1.bf16.msra.mxu0 %v554
        %915 = vmatprep.subr.bf16.mxu0 0
        %916 = vmatpush1.bf16.msra.mxu0 %v555
        %917 = vmatprep.subr.bf16.mxu0 0
        %918 = vmatpush1.bf16.msra.mxu0 0
        %919 = vmatprep.subr.bf16.mxu0 0
        %920 = vmatpush1.bf16.msra.mxu0 0
        %921 = vmatprep.subr.bf16.mxu0 0
        %922 = vmatpush1.bf16.msra.mxu0 0
        %923 = vmatprep.subr.bf16.mxu0 0
        %924 = vmatpush1.bf16.msra.mxu0 0
        %925 = vmatprep.subr.bf16.mxu0 0
        %926 = vmatpush1.bf16.msra.mxu0 0
        %927 = vmatprep.subr.bf16.mxu0 0
        %928 = vmatpush1.bf16.msra.mxu0 0
        %929 = vmatprep.subr.bf16.mxu0 0
        %930 = vmatpush1.bf16.msra.mxu0 0
        %931 = vmatprep.subr.bf16.mxu0 0
        %932 = vmatpush1.bf16.msra.mxu0 0
        %933 = vmatprep.mubr.bf16.mxu0 0
        %934 = vmatmul.mubr.bf16.gmra.mrb[0].mxu0 %v897
        %v935 = vpop.f32.mrb[0].mxu0
        %v936 = vadd.f32 0.0, %v935
        %v937 = vpop.f32.mrb[0].mxu0
        %v938 = vpop.f32.mrb[0].mxu0
        %v939 = vadd.f32 0.0, %v938
        %v940 = vpop.f32.mrb[0].mxu0
        %941 = vmatprep.mubr.bf16.mxu0 0
        %942 = vmatmul.mubr.bf16.gmra.mrb[0].mxu0 %v898
        %v943 = vpop.f32.mrb[0].mxu0
        %v944 = vadd.f32 0.0, %v943
        %v945 = vpop.f32.mrb[0].mxu0
        %v946 = vpop.f32.mrb[0].mxu0
        %v947 = vadd.f32 0.0, %v946
        %v948 = vpop.f32.mrb[0].mxu0
        %949 = vmatprep.mubr.bf16.mxu0 0
        %950 = vmatmul.mubr.bf16.gmra.mrb[0].mxu0 %v899
        %v951 = vpop.f32.mrb[0].mxu0
        %v952 = vadd.f32 0.0, %v951
        %v953 = vpop.f32.mrb[0].mxu0
        %v954 = vpop.f32.mrb[0].mxu0
        %v955 = vadd.f32 0.0, %v954
        %v956 = vpop.f32.mrb[0].mxu0
        %957 = vmatprep.mubr.bf16.mxu0 0
        %958 = vmatmul.mubr.bf16.gmra.mrb[0].mxu0 %v900
        %v959 = vpop.f32.mrb[0].mxu0
        %v960 = vadd.f32 0.0, %v959
        %v961 = vpop.f32.mrb[0].mxu0
        %v962 = vpop.f32.mrb[0].mxu0
        %v963 = vadd.f32 0.0, %v962
        %v964 = vpop.f32.mrb[0].mxu0
        %965 = vdwg.mxu0
        %966 = vst [vmem:[%s493] sm:$0xff] %v936
        %967 = vst [vmem:[%s493 + $0x8] sm:$0xff] %v939
        %968 = vst [vmem:[%s493 + $0x10] sm:$0xff] %v944
        %969 = vst [vmem:[%s493 + $0x18] sm:$0xff] %v947
        %970 = vst [vmem:[%s493 + $0x20] sm:$0xff] %v952
        %971 = vst [vmem:[%s493 + $0x28] sm:$0xff] %v955
        %972 = vst [vmem:[%s493 + $0x30] sm:$0xff] %v960
        %973 = vst [vmem:[%s493 + $0x38] sm:$0xff] %v963
        %s974 = sand.u32 %s231, 1
        %s975 = scalar_lea.sflag [#allocation4], %s974
        %s976 = sand.u32 %s231, 1
        %s977 = smul.addr %s976, 64
        %s978 = scalar_lea.vmem [#allocation13], %s977
        // Predicated region
        $region69: #{rel_partial_decoder_layer.7} parent=43 // pred_check
          %p979 = pneg %p241
        $region70: #{rel_partial_decoder_layer.7} parent=43 // pred_check_branch
          %981 = sbr.rel (%p979) target = $region72
        $region71: #{rel_partial_decoder_layer.7} parent=43 // pred_region
          %s982 = smul.u32 8, %s39
          %s984 = ssub.s32 1024, 1024
          %985 = vsyncadd %s975, %s984
          %s986 = smul.addr %s982, 2
          %s987 = sadd.s32 %s38, %s986
          %s988 = smul.addr %s37, 32
          %s989 = sadd.s32 %s987, %s988
          %s990 = smul.addr %s989, 128
          %s991 = scalar_lea.hbm %s6, %s990
          %s992 = sshll.u32 %s978, 4
          %s993 = int_to_ptr.vmem [resolvable:$true] %s992
          %998 = dma.vmem_to_hbm [thread:$0]  %s993, 1024, %s991, %s975, 128, 256, 8
        $region72: #{rel_partial_decoder_layer.7} parent=43 // pred_fallthru
          _
      $region44: #{rel_partial_decoder_layer.7} parent=5 // pred_fallthru
        _
      %p999 = scmp.le.s32.totalorder 2, %s27
      // Predicated region
      $region73: #{rel_partial_decoder_layer.7} parent=5 // pred_check
        %p1000 = pneg %p999
      $region74: #{rel_partial_decoder_layer.7} parent=5 // pred_check_branch
        %1002 = sbr.rel (%p1000) target = $region76
      $region75: #{rel_partial_decoder_layer.7} parent=5 // pred_region
        %s1003 = ssub.s32 %s27, 2
        // Predicated region
        $region77: #{rel_partial_decoder_layer.7} parent=75 // pred_check
          %p1004 = pneg %p247
        $region78: #{rel_partial_decoder_layer.7} parent=75 // pred_check_branch
          %1006 = sbr.rel (%p1004) target = $region80
        $region79: #{rel_partial_decoder_layer.7} parent=75 // pred_region
          %s1007 = sand.u32 %s232, 1
          %s1008 = scalar_lea.sflag [#allocation4], %s1007
          %s1009 = sand.u32 %s232, 1
          %s1010 = smul.addr %s1009, 64
          %s1011 = scalar_lea.vmem [#allocation13], %s1010
          %1012 = dma.done %s1008, 1024
        $region80: #{rel_partial_decoder_layer.7} parent=75 // pred_fallthru
          _
      $region76: #{rel_partial_decoder_layer.7} parent=5 // pred_fallthru
        _
    $region6: #{rel_partial_decoder_layer.7} parent=1 // loop_footer
      %s31 = sadd.s32 1, %s27
    $region7: #{rel_partial_decoder_layer.7} parent=1 // loop_footer_branch
      %26 = sbr.rel target = $region3
    $region8: #{rel_partial_decoder_layer.7} parent=1 // loop_exit
      _
    %1013 = vsyncpa [#allocation3], 1
    %s1014 = scalar_lea.sflag [#allocation3], 1
    %1015 = vsyncpa %s1014, 1
    %1016 = vsyncpa [#allocation6], 1
    %s1017 = scalar_lea.sflag [#allocation6], 1
    %1018 = vsyncpa %s1017, 1
    %1019 = vsyncpa [#allocation9], 1
    %s1020 = scalar_lea.sflag [#allocation9], 1
    %1021 = vsyncpa %s1020, 1
    %1022 = vsyncpa [#allocation12], 1
    %s1023 = scalar_lea.sflag [#allocation12], 1
    %1024 = vsyncpa %s1023, 1
    %1025 = vsyncpa [#allocation4], 1
    %s1026 = scalar_lea.sflag [#allocation4], 1
    %1027 = vsyncpa %s1026, 1

// kernel: rel_partial_decoder_layer.5
$region0: #{rel_partial_decoder_layer.5}
  #allocation0 [shape = 'u32[]', space=smem, size = 0x4, offset = 0x4, fixed_abs, tag = 'smem constant byte address 0x4 - core index']
  #allocation1 [shape = 'u32[144,128]{1,0:T(1,128)}', space=vmem, size = 0x12000, scoped, tag = 'internal scratch']
  %s0 = inlined_call_operand.hbm [shape: f32[256,128], index: 0, kind: input, shape index: {}]
  %s1 = inlined_call_operand.hbm [shape: bf16[128,768], index: 1, kind: input, shape index: {}]
  %s2 = inlined_call_operand.hbm [shape: f32[256,768], index: 2, kind: output, shape index: {}]
  %s3 = sld [smem:[#allocation0]]
  $region26: #{rel_partial_decoder_layer.5} parent=0
    _
  %s5 = ssub.s32 1, %s3
  %s6 = scalar_select 0, %s5, %s3
  $region1: #{rel_partial_decoder_layer.5} parent=0
    #allocation2 [shape = 'u8[131072]{0}', space=vmem, size = 0x20000, scoped, tag = 'input window, operand 0, single buffered']
    #allocation3 [shape = 's32[1]{0}', space=sflag, size = 0x4, scoped, tag = 'scoped memory for rel_partial_decoder_layer.5']
    #allocation4 [shape = 's32[1]{0}', space=sflag, size = 0x4, scoped, tag = 'scoped memory for rel_partial_decoder_layer.5']
    #allocation5 [shape = 'u8[196608]{0}', space=vmem, size = 0x30000, scoped, tag = 'input window, operand 1, single buffered']
    #allocation6 [shape = 's32[1]{0}', space=sflag, size = 0x4, scoped, tag = 'scoped memory for rel_partial_decoder_layer.5']
    #allocation7 [shape = 'u8[786432]{0}', space=vmem, size = 0xc0000, scoped, tag = 'output window, operand 0, single buffered']
    %7 = vsyncpa [#allocation3], 0
    %8 = vsyncpa [#allocation6], 0
    %9 = vsyncpa [#allocation4], 0
    // Predicated region
    $region2: #{rel_partial_decoder_layer.5} parent=1 // pred_check
      _
    $region3: #{rel_partial_decoder_layer.5} parent=1 // pred_check_branch
      %11 = sbr.rel (0) target = $region5
    $region4: #{rel_partial_decoder_layer.5} parent=1 // pred_region
      %s13 = ssub.s32 4096, 4096
      %14 = vsyncadd [#allocation3], %s13
      %s15 = sshll.u32 [#allocation2], 4
      %s16 = int_to_ptr.vmem [resolvable:$true] %s15
      %21 = dma.hbm_to_vmem [thread:$0]  %s0, 4096, %s16, [#allocation3], 128, 128, 8
    $region5: #{rel_partial_decoder_layer.5} parent=1 // pred_fallthru
      _
    // Predicated region
    $region6: #{rel_partial_decoder_layer.5} parent=1 // pred_check
      _
    $region7: #{rel_partial_decoder_layer.5} parent=1 // pred_check_branch
      %23 = sbr.rel (0) target = $region9
    $region8: #{rel_partial_decoder_layer.5} parent=1 // pred_region
      %s25 = ssub.s32 6144, 6144
      %26 = vsyncadd [#allocation6], %s25
      %s27 = sshll.u32 [#allocation5], 4
      %s28 = int_to_ptr.vmem [resolvable:$true] %s27
      %33 = dma.hbm_to_vmem [thread:$0]  %s1, 6144, %s28, [#allocation6], 384, 384, 24
    $region9: #{rel_partial_decoder_layer.5} parent=1 // pred_fallthru
      _
    // Predicated region
    $region10: #{rel_partial_decoder_layer.5} parent=1 // pred_check
      _
    $region11: #{rel_partial_decoder_layer.5} parent=1 // pred_check_branch
      %35 = sbr.rel (0) target = $region13
    $region12: #{rel_partial_decoder_layer.5} parent=1 // pred_region
      %36 = dma.done [#allocation3], 4096
    $region13: #{rel_partial_decoder_layer.5} parent=1 // pred_fallthru
      _
    // Predicated region
    $region14: #{rel_partial_decoder_layer.5} parent=1 // pred_check
      _
    $region15: #{rel_partial_decoder_layer.5} parent=1 // pred_check_branch
      %38 = sbr.rel (0) target = $region17
    $region16: #{rel_partial_decoder_layer.5} parent=1 // pred_region
      %39 = dma.done [#allocation6], 6144
    $region17: #{rel_partial_decoder_layer.5} parent=1 // pred_fallthru
      _
    %v41 = vld [vmem:[#allocation2] sm:$0xff]
    %v42 = vld [vmem:[#allocation2 + $0x8] sm:$0xff]
    %v43 = vld [vmem:[#allocation2 + $0x10] sm:$0xff]
    %v44 = vld [vmem:[#allocation2 + $0x18] sm:$0xff]
    %v45 = vld [vmem:[#allocation2 + $0x20] sm:$0xff]
    %v46 = vld [vmem:[#allocation2 + $0x28] sm:$0xff]
    %v47 = vld [vmem:[#allocation2 + $0x30] sm:$0xff]
    %v48 = vld [vmem:[#allocation2 + $0x38] sm:$0xff]
    %v49 = vld [vmem:[#allocation2 + $0x40] sm:$0xff]
    %v50 = vld [vmem:[#allocation2 + $0x48] sm:$0xff]
    %v51 = vld [vmem:[#allocation2 + $0x50] sm:$0xff]
    %v52 = vld [vmem:[#allocation2 + $0x58] sm:$0xff]
    %v53 = vld [vmem:[#allocation2 + $0x60] sm:$0xff]
    %v54 = vld [vmem:[#allocation2 + $0x68] sm:$0xff]
    %v55 = vld [vmem:[#allocation2 + $0x70] sm:$0xff]
    %v56 = vld [vmem:[#allocation2 + $0x78] sm:$0xff]
    %v57 = vld [vmem:[#allocation2 + $0x80] sm:$0xff]
    %v58 = vld [vmem:[#allocation2 + $0x88] sm:$0xff]
    %v59 = vld [vmem:[#allocation2 + $0x90] sm:$0xff]
    %v60 = vld [vmem:[#allocation2 + $0x98] sm:$0xff]
    %v61 = vld [vmem:[#allocation2 + $0xa0] sm:$0xff]
    %v62 = vld [vmem:[#allocation2 + $0xa8] sm:$0xff]
    %v63 = vld [vmem:[#allocation2 + $0xb0] sm:$0xff]
    %v64 = vld [vmem:[#allocation2 + $0xb8] sm:$0xff]
    %v65 = vld [vmem:[#allocation2 + $0xc0] sm:$0xff]
    %v66 = vld [vmem:[#allocation2 + $0xc8] sm:$0xff]
    %v67 = vld [vmem:[#allocation2 + $0xd0] sm:$0xff]
    %v68 = vld [vmem:[#allocation2 + $0xd8] sm:$0xff]
    %v69 = vld [vmem:[#allocation2 + $0xe0] sm:$0xff]
    %v70 = vld [vmem:[#allocation2 + $0xe8] sm:$0xff]
    %v71 = vld [vmem:[#allocation2 + $0xf0] sm:$0xff]
    %v72 = vld [vmem:[#allocation2 + $0xf8] sm:$0xff]
    %v73 = vpack.c.bf16 %v42, %v41
    %v74 = vpack.c.bf16 %v44, %v43
    %v75 = vpack.c.bf16 %v46, %v45
    %v76 = vpack.c.bf16 %v48, %v47
    %v77 = vpack.c.bf16 %v50, %v49
    %v78 = vpack.c.bf16 %v52, %v51
    %v79 = vpack.c.bf16 %v54, %v53
    %v80 = vpack.c.bf16 %v56, %v55
    %v81 = vpack.c.bf16 %v58, %v57
    %v82 = vpack.c.bf16 %v60, %v59
    %v83 = vpack.c.bf16 %v62, %v61
    %v84 = vpack.c.bf16 %v64, %v63
    %v85 = vpack.c.bf16 %v66, %v65
    %v86 = vpack.c.bf16 %v68, %v67
    %v87 = vpack.c.bf16 %v70, %v69
    %v88 = vpack.c.bf16 %v72, %v71
    %v89 = vld [vmem:[#allocation5] sm:$0xff]
    %v90 = vld [vmem:[#allocation5 + $0x8] sm:$0xff]
    %v91 = vld [vmem:[#allocation5 + $0x10] sm:$0xff]
    %v92 = vld [vmem:[#allocation5 + $0x18] sm:$0xff]
    %v93 = vld [vmem:[#allocation5 + $0x20] sm:$0xff]
    %v94 = vld [vmem:[#allocation5 + $0x28] sm:$0xff]
    %v95 = vld [vmem:[#allocation5 + $0x30] sm:$0xff]
    %v96 = vld [vmem:[#allocation5 + $0x38] sm:$0xff]
    %v97 = vld [vmem:[#allocation5 + $0x40] sm:$0xff]
    %v98 = vld [vmem:[#allocation5 + $0x48] sm:$0xff]
    %v99 = vld [vmem:[#allocation5 + $0x50] sm:$0xff]
    %v100 = vld [vmem:[#allocation5 + $0x58] sm:$0xff]
    %v101 = vld [vmem:[#allocation5 + $0x60] sm:$0xff]
    %v102 = vld [vmem:[#allocation5 + $0x68] sm:$0xff]
    %v103 = vld [vmem:[#allocation5 + $0x70] sm:$0xff]
    %v104 = vld [vmem:[#allocation5 + $0x78] sm:$0xff]
    %v105 = vld [vmem:[#allocation5 + $0x80] sm:$0xff]
    %v106 = vld [vmem:[#allocation5 + $0x88] sm:$0xff]
    %v107 = vld [vmem:[#allocation5 + $0x90] sm:$0xff]
    %v108 = vld [vmem:[#allocation5 + $0x98] sm:$0xff]
    %v109 = vld [vmem:[#allocation5 + $0xa0] sm:$0xff]
    %v110 = vld [vmem:[#allocation5 + $0xa8] sm:$0xff]
    %v111 = vld [vmem:[#allocation5 + $0xb0] sm:$0xff]
    %v112 = vld [vmem:[#allocation5 + $0xb8] sm:$0xff]
    %v113 = vld [vmem:[#allocation5 + $0xc0] sm:$0xff]
    %v114 = vld [vmem:[#allocation5 + $0xc8] sm:$0xff]
    %v115 = vld [vmem:[#allocation5 + $0xd0] sm:$0xff]
    %v116 = vld [vmem:[#allocation5 + $0xd8] sm:$0xff]
    %v117 = vld [vmem:[#allocation5 + $0xe0] sm:$0xff]
    %v118 = vld [vmem:[#allocation5 + $0xe8] sm:$0xff]
    %v119 = vld [vmem:[#allocation5 + $0xf0] sm:$0xff]
    %v120 = vld [vmem:[#allocation5 + $0xf8] sm:$0xff]
    %v121 = vld [vmem:[#allocation5 + $0x100] sm:$0xff]
    %v122 = vld [vmem:[#allocation5 + $0x108] sm:$0xff]
    %v123 = vld [vmem:[#allocation5 + $0x110] sm:$0xff]
    %v124 = vld [vmem:[#allocation5 + $0x118] sm:$0xff]
    %v125 = vld [vmem:[#allocation5 + $0x120] sm:$0xff]
    %v126 = vld [vmem:[#allocation5 + $0x128] sm:$0xff]
    %v127 = vld [vmem:[#allocation5 + $0x130] sm:$0xff]
    %v128 = vld [vmem:[#allocation5 + $0x138] sm:$0xff]
    %v129 = vld [vmem:[#allocation5 + $0x140] sm:$0xff]
    %v130 = vld [vmem:[#allocation5 + $0x148] sm:$0xff]
    %v131 = vld [vmem:[#allocation5 + $0x150] sm:$0xff]
    %v132 = vld [vmem:[#allocation5 + $0x158] sm:$0xff]
    %v133 = vld [vmem:[#allocation5 + $0x160] sm:$0xff]
    %v134 = vld [vmem:[#allocation5 + $0x168] sm:$0xff]
    %v135 = vld [vmem:[#allocation5 + $0x170] sm:$0xff]
    %v136 = vld [vmem:[#allocation5 + $0x178] sm:$0xff]
    %v185 = vunpack.c.l.b16 %v89
    %v186 = vunpack.c.h.b16 %v89
    %v187 = vunpack.c.l.b16 %v90
    %v188 = vunpack.c.h.b16 %v90
    %v189 = vunpack.c.l.b16 %v91
    %v190 = vunpack.c.h.b16 %v91
    %v191 = vunpack.c.l.b16 %v92
    %v192 = vunpack.c.h.b16 %v92
    %v193 = vunpack.c.l.b16 %v93
    %v194 = vunpack.c.h.b16 %v93
    %v195 = vunpack.c.l.b16 %v94
    %v196 = vunpack.c.h.b16 %v94
    %v197 = vunpack.c.l.b16 %v95
    %v198 = vunpack.c.h.b16 %v95
    %v199 = vunpack.c.l.b16 %v96
    %v200 = vunpack.c.h.b16 %v96
    %v201 = vunpack.c.l.b16 %v97
    %v202 = vunpack.c.h.b16 %v97
    %v203 = vunpack.c.l.b16 %v98
    %v204 = vunpack.c.h.b16 %v98
    %v205 = vunpack.c.l.b16 %v99
    %v206 = vunpack.c.h.b16 %v99
    %v207 = vunpack.c.l.b16 %v100
    %v208 = vunpack.c.h.b16 %v100
    %v209 = vunpack.c.l.b16 %v101
    %v210 = vunpack.c.h.b16 %v101
    %v211 = vunpack.c.l.b16 %v102
    %v212 = vunpack.c.h.b16 %v102
    %v213 = vunpack.c.l.b16 %v103
    %v214 = vunpack.c.h.b16 %v103
    %v215 = vunpack.c.l.b16 %v104
    %v216 = vunpack.c.h.b16 %v104
    %v217 = vunpack.c.l.b16 %v105
    %v218 = vunpack.c.h.b16 %v105
    %v219 = vunpack.c.l.b16 %v106
    %v220 = vunpack.c.h.b16 %v106
    %v221 = vunpack.c.l.b16 %v107
    %v222 = vunpack.c.h.b16 %v107
    %v223 = vunpack.c.l.b16 %v108
    %v224 = vunpack.c.h.b16 %v108
    %v225 = vunpack.c.l.b16 %v109
    %v226 = vunpack.c.h.b16 %v109
    %v227 = vunpack.c.l.b16 %v110
    %v228 = vunpack.c.h.b16 %v110
    %v229 = vunpack.c.l.b16 %v111
    %v230 = vunpack.c.h.b16 %v111
    %v231 = vunpack.c.l.b16 %v112
    %v232 = vunpack.c.h.b16 %v112
    %v233 = vunpack.c.l.b16 %v113
    %v234 = vunpack.c.h.b16 %v113
    %v235 = vunpack.c.l.b16 %v114
    %v236 = vunpack.c.h.b16 %v114
    %v237 = vunpack.c.l.b16 %v115
    %v238 = vunpack.c.h.b16 %v115
    %v239 = vunpack.c.l.b16 %v116
    %v240 = vunpack.c.h.b16 %v116
    %v241 = vunpack.c.l.b16 %v117
    %v242 = vunpack.c.h.b16 %v117
    %v243 = vunpack.c.l.b16 %v118
    %v244 = vunpack.c.h.b16 %v118
    %v245 = vunpack.c.l.b16 %v119
    %v246 = vunpack.c.h.b16 %v119
    %v247 = vunpack.c.l.b16 %v120
    %v248 = vunpack.c.h.b16 %v120
    %v249 = vunpack.c.l.b16 %v121
    %v250 = vunpack.c.h.b16 %v121
    %v251 = vunpack.c.l.b16 %v122
    %v252 = vunpack.c.h.b16 %v122
    %v253 = vunpack.c.l.b16 %v123
    %v254 = vunpack.c.h.b16 %v123
    %v255 = vunpack.c.l.b16 %v124
    %v256 = vunpack.c.h.b16 %v124
    %v257 = vunpack.c.l.b16 %v125
    %v258 = vunpack.c.h.b16 %v125
    %v259 = vunpack.c.l.b16 %v126
    %v260 = vunpack.c.h.b16 %v126
    %v261 = vunpack.c.l.b16 %v127
    %v262 = vunpack.c.h.b16 %v127
    %v263 = vunpack.c.l.b16 %v128
    %v264 = vunpack.c.h.b16 %v128
    %v265 = vunpack.c.l.b16 %v129
    %v266 = vunpack.c.h.b16 %v129
    %v267 = vunpack.c.l.b16 %v130
    %v268 = vunpack.c.h.b16 %v130
    %v269 = vunpack.c.l.b16 %v131
    %v270 = vunpack.c.h.b16 %v131
    %v271 = vunpack.c.l.b16 %v132
    %v272 = vunpack.c.h.b16 %v132
    %v273 = vunpack.c.l.b16 %v133
    %v274 = vunpack.c.h.b16 %v133
    %v275 = vunpack.c.l.b16 %v134
    %v276 = vunpack.c.h.b16 %v134
    %v277 = vunpack.c.l.b16 %v135
    %v278 = vunpack.c.h.b16 %v135
    %v279 = vunpack.c.l.b16 %v136
    %v280 = vunpack.c.h.b16 %v136
    %v281 = vpack.c.b16 %v191, %v185
    %v282 = vpack.c.b16 %v192, %v186
    %v283 = vpack.c.b16 %v193, %v187
    %v284 = vpack.c.b16 %v194, %v188
    %v285 = vpack.c.b16 %v195, %v189
    %v286 = vpack.c.b16 %v196, %v190
    %v287 = vpack.c.b16 %v203, %v197
    %v288 = vpack.c.b16 %v204, %v198
    %v289 = vpack.c.b16 %v205, %v199
    %v290 = vpack.c.b16 %v206, %v200
    %v291 = vpack.c.b16 %v207, %v201
    %v292 = vpack.c.b16 %v208, %v202
    %v293 = vpack.c.b16 %v215, %v209
    %v294 = vpack.c.b16 %v216, %v210
    %v295 = vpack.c.b16 %v217, %v211
    %v296 = vpack.c.b16 %v218, %v212
    %v297 = vpack.c.b16 %v219, %v213
    %v298 = vpack.c.b16 %v220, %v214
    %v299 = vpack.c.b16 %v227, %v221
    %v300 = vpack.c.b16 %v228, %v222
    %v301 = vpack.c.b16 %v229, %v223
    %v302 = vpack.c.b16 %v230, %v224
    %v303 = vpack.c.b16 %v231, %v225
    %v304 = vpack.c.b16 %v232, %v226
    %v305 = vpack.c.b16 %v239, %v233
    %v306 = vpack.c.b16 %v240, %v234
    %v307 = vpack.c.b16 %v241, %v235
    %v308 = vpack.c.b16 %v242, %v236
    %v309 = vpack.c.b16 %v243, %v237
    %v310 = vpack.c.b16 %v244, %v238
    %v311 = vpack.c.b16 %v251, %v245
    %v312 = vpack.c.b16 %v252, %v246
    %v313 = vpack.c.b16 %v253, %v247
    %v314 = vpack.c.b16 %v254, %v248
    %v315 = vpack.c.b16 %v255, %v249
    %v316 = vpack.c.b16 %v256, %v250
    %v317 = vpack.c.b16 %v263, %v257
    %v318 = vpack.c.b16 %v264, %v258
    %v319 = vpack.c.b16 %v265, %v259
    %v320 = vpack.c.b16 %v266, %v260
    %v321 = vpack.c.b16 %v267, %v261
    %v322 = vpack.c.b16 %v268, %v262
    %v323 = vpack.c.b16 %v275, %v269
    %v324 = vpack.c.b16 %v276, %v270
    %v325 = vpack.c.b16 %v277, %v271
    %v326 = vpack.c.b16 %v278, %v272
    %v327 = vpack.c.b16 %v279, %v273
    %v328 = vpack.c.b16 %v280, %v274
    %377 = vmatprep.subr.bf16.mxu0 %v282
    %378 = vmatpush1.bf16.msra.mxu0 %v281
    %379 = vmatprep.subr.bf16.mxu0 %v288
    %380 = vmatpush1.bf16.msra.mxu0 %v287
    %381 = vmatprep.subr.bf16.mxu0 %v294
    %382 = vmatpush1.bf16.msra.mxu0 %v293
    %383 = vmatprep.subr.bf16.mxu0 %v300
    %384 = vmatpush1.bf16.msra.mxu0 %v299
    %385 = vmatprep.subr.bf16.mxu0 %v306
    %386 = vmatpush1.bf16.msra.mxu0 %v305
    %387 = vmatprep.subr.bf16.mxu0 %v312
    %388 = vmatpush1.bf16.msra.mxu0 %v311
    %389 = vmatprep.subr.bf16.mxu0 %v318
    %390 = vmatpush1.bf16.msra.mxu0 %v317
    %391 = vmatprep.subr.bf16.mxu0 %v324
    %392 = vmatpush1.bf16.msra.mxu0 %v323
    %393 = vmatprep.subr.bf16.mxu0 0
    %394 = vmatpush1.bf16.msra.mxu0 0
    %395 = vmatprep.subr.bf16.mxu0 0
    %396 = vmatpush1.bf16.msra.mxu0 0
    %397 = vmatprep.subr.bf16.mxu0 0
    %398 = vmatpush1.bf16.msra.mxu0 0
    %399 = vmatprep.subr.bf16.mxu0 0
    %400 = vmatpush1.bf16.msra.mxu0 0
    %401 = vmatprep.subr.bf16.mxu0 0
    %402 = vmatpush1.bf16.msra.mxu0 0
    %403 = vmatprep.subr.bf16.mxu0 0
    %404 = vmatpush1.bf16.msra.mxu0 0
    %405 = vmatprep.subr.bf16.mxu0 0
    %406 = vmatpush1.bf16.msra.mxu0 0
    %407 = vmatprep.subr.bf16.mxu0 0
    %408 = vmatpush1.bf16.msra.mxu0 0
    %409 = vmatprep.mubr.bf16.mxu0 0
    %410 = vmatmul.mubr.bf16.gmra.mrb[0].mxu0 %v73
    %v411 = vpop.f32.mrb[0].mxu0
    %v412 = vadd.f32 0.0, %v411
    %v413 = vpop.f32.mrb[0].mxu0
    %v414 = vadd.f32 0.0, %v413
    %v415 = vpop.f32.mrb[0].mxu0
    %v416 = vadd.f32 0.0, %v415
    %v417 = vpop.f32.mrb[0].mxu0
    %v418 = vadd.f32 0.0, %v417
    %419 = vmatprep.mubr.bf16.mxu0 0
    %420 = vmatmul.mubr.bf16.gmra.mrb[0].mxu0 %v74
    %v421 = vpop.f32.mrb[0].mxu0
    %v422 = vadd.f32 0.0, %v421
    %v423 = vpop.f32.mrb[0].mxu0
    %v424 = vadd.f32 0.0, %v423
    %v425 = vpop.f32.mrb[0].mxu0
    %v426 = vadd.f32 0.0, %v425
    %v427 = vpop.f32.mrb[0].mxu0
    %v428 = vadd.f32 0.0, %v427
    %429 = vmatprep.mubr.bf16.mxu0 0
    %430 = vmatmul.mubr.bf16.gmra.mrb[0].mxu0 %v75
    %v431 = vpop.f32.mrb[0].mxu0
    %v432 = vadd.f32 0.0, %v431
    %v433 = vpop.f32.mrb[0].mxu0
    %v434 = vadd.f32 0.0, %v433
    %v435 = vpop.f32.mrb[0].mxu0
    %v436 = vadd.f32 0.0, %v435
    %v437 = vpop.f32.mrb[0].mxu0
    %v438 = vadd.f32 0.0, %v437
    %439 = vmatprep.mubr.bf16.mxu0 0
    %440 = vmatmul.mubr.bf16.gmra.mrb[0].mxu0 %v76
    %v441 = vpop.f32.mrb[0].mxu0
    %v442 = vadd.f32 0.0, %v441
    %v443 = vpop.f32.mrb[0].mxu0
    %v444 = vadd.f32 0.0, %v443
    %v445 = vpop.f32.mrb[0].mxu0
    %v446 = vadd.f32 0.0, %v445
    %v447 = vpop.f32.mrb[0].mxu0
    %v448 = vadd.f32 0.0, %v447
    %449 = vmatprep.mubr.bf16.mxu0 0
    %450 = vmatmul.mubr.bf16.gmra.mrb[0].mxu0 %v77
    %v451 = vpop.f32.mrb[0].mxu0
    %v452 = vadd.f32 0.0, %v451
    %v453 = vpop.f32.mrb[0].mxu0
    %v454 = vadd.f32 0.0, %v453
    %v455 = vpop.f32.mrb[0].mxu0
    %v456 = vadd.f32 0.0, %v455
    %v457 = vpop.f32.mrb[0].mxu0
    %v458 = vadd.f32 0.0, %v457
    %459 = vmatprep.mubr.bf16.mxu0 0
    %460 = vmatmul.mubr.bf16.gmra.mrb[0].mxu0 %v78
    %v461 = vpop.f32.mrb[0].mxu0
    %v462 = vadd.f32 0.0, %v461
    %v463 = vpop.f32.mrb[0].mxu0
    %v464 = vadd.f32 0.0, %v463
    %v465 = vpop.f32.mrb[0].mxu0
    %v466 = vadd.f32 0.0, %v465
    %v467 = vpop.f32.mrb[0].mxu0
    %v468 = vadd.f32 0.0, %v467
    %469 = vmatprep.mubr.bf16.mxu0 0
    %470 = vmatmul.mubr.bf16.gmra.mrb[0].mxu0 %v79
    %v471 = vpop.f32.mrb[0].mxu0
    %v472 = vadd.f32 0.0, %v471
    %v473 = vpop.f32.mrb[0].mxu0
    %v474 = vadd.f32 0.0, %v473
    %v475 = vpop.f32.mrb[0].mxu0
    %v476 = vadd.f32 0.0, %v475
    %v477 = vpop.f32.mrb[0].mxu0
    %v478 = vadd.f32 0.0, %v477
    %479 = vmatprep.mubr.bf16.mxu0 0
    %480 = vmatmul.mubr.bf16.gmra.mrb[0].mxu0 %v80
    %v481 = vpop.f32.mrb[0].mxu0
    %v482 = vadd.f32 0.0, %v481
    %v483 = vpop.f32.mrb[0].mxu0
    %v484 = vadd.f32 0.0, %v483
    %v485 = vpop.f32.mrb[0].mxu0
    %v486 = vadd.f32 0.0, %v485
    %v487 = vpop.f32.mrb[0].mxu0
    %v488 = vadd.f32 0.0, %v487
    %489 = vmatprep.mubr.bf16.mxu0 0
    %490 = vmatmul.mubr.bf16.gmra.mrb[0].mxu0 %v81
    %v491 = vpop.f32.mrb[0].mxu0
    %v492 = vadd.f32 0.0, %v491
    %v493 = vpop.f32.mrb[0].mxu0
    %v494 = vadd.f32 0.0, %v493
    %v495 = vpop.f32.mrb[0].mxu0
    %v496 = vadd.f32 0.0, %v495
    %v497 = vpop.f32.mrb[0].mxu0
    %v498 = vadd.f32 0.0, %v497
    %499 = vmatprep.mubr.bf16.mxu0 0
    %500 = vmatmul.mubr.bf16.gmra.mrb[0].mxu0 %v82
    %v501 = vpop.f32.mrb[0].mxu0
    %v502 = vadd.f32 0.0, %v501
    %v503 = vpop.f32.mrb[0].mxu0
    %v504 = vadd.f32 0.0, %v503
    %v505 = vpop.f32.mrb[0].mxu0
    %v506 = vadd.f32 0.0, %v505
    %v507 = vpop.f32.mrb[0].mxu0
    %v508 = vadd.f32 0.0, %v507
    %509 = vmatprep.mubr.bf16.mxu0 0
    %510 = vmatmul.mubr.bf16.gmra.mrb[0].mxu0 %v83
    %v511 = vpop.f32.mrb[0].mxu0
    %v512 = vadd.f32 0.0, %v511
    %v513 = vpop.f32.mrb[0].mxu0
    %v514 = vadd.f32 0.0, %v513
    %v515 = vpop.f32.mrb[0].mxu0
    %v516 = vadd.f32 0.0, %v515
    %v517 = vpop.f32.mrb[0].mxu0
    %v518 = vadd.f32 0.0, %v517
    %519 = vmatprep.mubr.bf16.mxu0 0
    %520 = vmatmul.mubr.bf16.gmra.mrb[0].mxu0 %v84
    %v521 = vpop.f32.mrb[0].mxu0
    %v522 = vadd.f32 0.0, %v521
    %v523 = vpop.f32.mrb[0].mxu0
    %v524 = vadd.f32 0.0, %v523
    %v525 = vpop.f32.mrb[0].mxu0
    %v526 = vadd.f32 0.0, %v525
    %v527 = vpop.f32.mrb[0].mxu0
    %v528 = vadd.f32 0.0, %v527
    %529 = vmatprep.mubr.bf16.mxu0 0
    %530 = vmatmul.mubr.bf16.gmra.mrb[0].mxu0 %v85
    %v531 = vpop.f32.mrb[0].mxu0
    %v532 = vadd.f32 0.0, %v531
    %v533 = vpop.f32.mrb[0].mxu0
    %v534 = vadd.f32 0.0, %v533
    %v535 = vpop.f32.mrb[0].mxu0
    %v536 = vadd.f32 0.0, %v535
    %v537 = vpop.f32.mrb[0].mxu0
    %v538 = vadd.f32 0.0, %v537
    %539 = vmatprep.mubr.bf16.mxu0 0
    %540 = vmatmul.mubr.bf16.gmra.mrb[0].mxu0 %v86
    %v541 = vpop.f32.mrb[0].mxu0
    %v542 = vadd.f32 0.0, %v541
    %v543 = vpop.f32.mrb[0].mxu0
    %v544 = vadd.f32 0.0, %v543
    %v545 = vpop.f32.mrb[0].mxu0
    %v546 = vadd.f32 0.0, %v545
    %v547 = vpop.f32.mrb[0].mxu0
    %v548 = vadd.f32 0.0, %v547
    %549 = vmatprep.mubr.bf16.mxu0 0
    %550 = vmatmul.mubr.bf16.gmra.mrb[0].mxu0 %v87
    %v551 = vpop.f32.mrb[0].mxu0
    %v552 = vadd.f32 0.0, %v551
    %v553 = vpop.f32.mrb[0].mxu0
    %v554 = vadd.f32 0.0, %v553
    %v555 = vpop.f32.mrb[0].mxu0
    %v556 = vadd.f32 0.0, %v555
    %v557 = vpop.f32.mrb[0].mxu0
    %v558 = vadd.f32 0.0, %v557
    %559 = vmatprep.mubr.bf16.mxu0 0
    %560 = vmatmul.mubr.bf16.gmra.mrb[0].mxu0 %v88
    %v561 = vpop.f32.mrb[0].mxu0
    %v562 = vadd.f32 0.0, %v561
    %v563 = vpop.f32.mrb[0].mxu0
    %v564 = vadd.f32 0.0, %v563
    %v565 = vpop.f32.mrb[0].mxu0
    %v566 = vadd.f32 0.0, %v565
    %v567 = vpop.f32.mrb[0].mxu0
    %v568 = vadd.f32 0.0, %v567
    %569 = vdwg.mxu0
    %570 = vmatprep.subr.bf16.mxu0 %v284
    %571 = vmatpush1.bf16.msra.mxu0 %v283
    %572 = vmatprep.subr.bf16.mxu0 %v290
    %573 = vmatpush1.bf16.msra.mxu0 %v289
    %574 = vmatprep.subr.bf16.mxu0 %v296
    %575 = vmatpush1.bf16.msra.mxu0 %v295
    %576 = vmatprep.subr.bf16.mxu0 %v302
    %577 = vmatpush1.bf16.msra.mxu0 %v301
    %578 = vmatprep.subr.bf16.mxu0 %v308
    %579 = vmatpush1.bf16.msra.mxu0 %v307
    %580 = vmatprep.subr.bf16.mxu0 %v314
    %581 = vmatpush1.bf16.msra.mxu0 %v313
    %582 = vmatprep.subr.bf16.mxu0 %v320
    %583 = vmatpush1.bf16.msra.mxu0 %v319
    %584 = vmatprep.subr.bf16.mxu0 %v326
    %585 = vmatpush1.bf16.msra.mxu0 %v325
    %586 = vmatprep.subr.bf16.mxu0 0
    %587 = vmatpush1.bf16.msra.mxu0 0
    %588 = vmatprep.subr.bf16.mxu0 0
    %589 = vmatpush1.bf16.msra.mxu0 0
    %590 = vmatprep.subr.bf16.mxu0 0
    %591 = vmatpush1.bf16.msra.mxu0 0
    %592 = vmatprep.subr.bf16.mxu0 0
    %593 = vmatpush1.bf16.msra.mxu0 0
    %594 = vmatprep.subr.bf16.mxu0 0
    %595 = vmatpush1.bf16.msra.mxu0 0
    %596 = vmatprep.subr.bf16.mxu0 0
    %597 = vmatpush1.bf16.msra.mxu0 0
    %598 = vmatprep.subr.bf16.mxu0 0
    %599 = vmatpush1.bf16.msra.mxu0 0
    %600 = vmatprep.subr.bf16.mxu0 0
    %601 = vmatpush1.bf16.msra.mxu0 0
    %602 = vmatprep.mubr.bf16.mxu0 0
    %603 = vmatmul.mubr.bf16.gmra.mrb[0].mxu0 %v73
    %v604 = vpop.f32.mrb[0].mxu0
    %v605 = vadd.f32 0.0, %v604
    %v606 = vpop.f32.mrb[0].mxu0
    %v607 = vadd.f32 0.0, %v606
    %v608 = vpop.f32.mrb[0].mxu0
    %v609 = vadd.f32 0.0, %v608
    %v610 = vpop.f32.mrb[0].mxu0
    %v611 = vadd.f32 0.0, %v610
    %612 = vmatprep.mubr.bf16.mxu0 0
    %613 = vmatmul.mubr.bf16.gmra.mrb[0].mxu0 %v74
    %v614 = vpop.f32.mrb[0].mxu0
    %v615 = vadd.f32 0.0, %v614
    %v616 = vpop.f32.mrb[0].mxu0
    %v617 = vadd.f32 0.0, %v616
    %v618 = vpop.f32.mrb[0].mxu0
    %v619 = vadd.f32 0.0, %v618
    %v620 = vpop.f32.mrb[0].mxu0
    %v621 = vadd.f32 0.0, %v620
    %622 = vmatprep.mubr.bf16.mxu0 0
    %623 = vmatmul.mubr.bf16.gmra.mrb[0].mxu0 %v75
    %v624 = vpop.f32.mrb[0].mxu0
    %v625 = vadd.f32 0.0, %v624
    %v626 = vpop.f32.mrb[0].mxu0
    %v627 = vadd.f32 0.0, %v626
    %v628 = vpop.f32.mrb[0].mxu0
    %v629 = vadd.f32 0.0, %v628
    %v630 = vpop.f32.mrb[0].mxu0
    %v631 = vadd.f32 0.0, %v630
    %632 = vmatprep.mubr.bf16.mxu0 0
    %633 = vmatmul.mubr.bf16.gmra.mrb[0].mxu0 %v76
    %v634 = vpop.f32.mrb[0].mxu0
    %v635 = vadd.f32 0.0, %v634
    %v636 = vpop.f32.mrb[0].mxu0
    %v637 = vadd.f32 0.0, %v636
    %v638 = vpop.f32.mrb[0].mxu0
    %v639 = vadd.f32 0.0, %v638
    %v640 = vpop.f32.mrb[0].mxu0
    %v641 = vadd.f32 0.0, %v640
    %642 = vmatprep.mubr.bf16.mxu0 0
    %643 = vmatmul.mubr.bf16.gmra.mrb[0].mxu0 %v77
    %v644 = vpop.f32.mrb[0].mxu0
    %v645 = vadd.f32 0.0, %v644
    %v646 = vpop.f32.mrb[0].mxu0
    %v647 = vadd.f32 0.0, %v646
    %v648 = vpop.f32.mrb[0].mxu0
    %v649 = vadd.f32 0.0, %v648
    %v650 = vpop.f32.mrb[0].mxu0
    %v651 = vadd.f32 0.0, %v650
    %652 = vmatprep.mubr.bf16.mxu0 0
    %653 = vmatmul.mubr.bf16.gmra.mrb[0].mxu0 %v78
    %v654 = vpop.f32.mrb[0].mxu0
    %v655 = vadd.f32 0.0, %v654
    %v656 = vpop.f32.mrb[0].mxu0
    %v657 = vadd.f32 0.0, %v656
    %v658 = vpop.f32.mrb[0].mxu0
    %v659 = vadd.f32 0.0, %v658
    %v660 = vpop.f32.mrb[0].mxu0
    %v661 = vadd.f32 0.0, %v660
    %662 = vmatprep.mubr.bf16.mxu0 0
    %663 = vmatmul.mubr.bf16.gmra.mrb[0].mxu0 %v79
    %v664 = vpop.f32.mrb[0].mxu0
    %v665 = vadd.f32 0.0, %v664
    %v666 = vpop.f32.mrb[0].mxu0
    %v667 = vadd.f32 0.0, %v666
    %v668 = vpop.f32.mrb[0].mxu0
    %v669 = vadd.f32 0.0, %v668
    %v670 = vpop.f32.mrb[0].mxu0
    %v671 = vadd.f32 0.0, %v670
    %672 = vmatprep.mubr.bf16.mxu0 0
    %673 = vmatmul.mubr.bf16.gmra.mrb[0].mxu0 %v80
    %v674 = vpop.f32.mrb[0].mxu0
    %v675 = vadd.f32 0.0, %v674
    %v676 = vpop.f32.mrb[0].mxu0
    %v677 = vadd.f32 0.0, %v676
    %v678 = vpop.f32.mrb[0].mxu0
    %v679 = vadd.f32 0.0, %v678
    %v680 = vpop.f32.mrb[0].mxu0
    %v681 = vadd.f32 0.0, %v680
    %682 = vmatprep.mubr.bf16.mxu0 0
    %683 = vmatmul.mubr.bf16.gmra.mrb[0].mxu0 %v81
    %v684 = vpop.f32.mrb[0].mxu0
    %v685 = vadd.f32 0.0, %v684
    %v686 = vpop.f32.mrb[0].mxu0
    %v687 = vadd.f32 0.0, %v686
    %v688 = vpop.f32.mrb[0].mxu0
    %v689 = vadd.f32 0.0, %v688
    %v690 = vpop.f32.mrb[0].mxu0
    %v691 = vadd.f32 0.0, %v690
    %692 = vmatprep.mubr.bf16.mxu0 0
    %693 = vmatmul.mubr.bf16.gmra.mrb[0].mxu0 %v82
    %v694 = vpop.f32.mrb[0].mxu0
    %v695 = vadd.f32 0.0, %v694
    %v696 = vpop.f32.mrb[0].mxu0
    %v697 = vadd.f32 0.0, %v696
    %v698 = vpop.f32.mrb[0].mxu0
    %v699 = vadd.f32 0.0, %v698
    %v700 = vpop.f32.mrb[0].mxu0
    %v701 = vadd.f32 0.0, %v700
    %702 = vmatprep.mubr.bf16.mxu0 0
    %703 = vmatmul.mubr.bf16.gmra.mrb[0].mxu0 %v83
    %v704 = vpop.f32.mrb[0].mxu0
    %v705 = vadd.f32 0.0, %v704
    %v706 = vpop.f32.mrb[0].mxu0
    %v707 = vadd.f32 0.0, %v706
    %v708 = vpop.f32.mrb[0].mxu0
    %v709 = vadd.f32 0.0, %v708
    %v710 = vpop.f32.mrb[0].mxu0
    %v711 = vadd.f32 0.0, %v710
    %712 = vmatprep.mubr.bf16.mxu0 0
    %713 = vmatmul.mubr.bf16.gmra.mrb[0].mxu0 %v84
    %v714 = vpop.f32.mrb[0].mxu0
    %v715 = vadd.f32 0.0, %v714
    %v716 = vpop.f32.mrb[0].mxu0
    %v717 = vadd.f32 0.0, %v716
    %v718 = vpop.f32.mrb[0].mxu0
    %v719 = vadd.f32 0.0, %v718
    %v720 = vpop.f32.mrb[0].mxu0
    %v721 = vadd.f32 0.0, %v720
    %722 = vmatprep.mubr.bf16.mxu0 0
    %723 = vmatmul.mubr.bf16.gmra.mrb[0].mxu0 %v85
    %v724 = vpop.f32.mrb[0].mxu0
    %v725 = vadd.f32 0.0, %v724
    %v726 = vpop.f32.mrb[0].mxu0
    %v727 = vadd.f32 0.0, %v726
    %v728 = vpop.f32.mrb[0].mxu0
    %v729 = vadd.f32 0.0, %v728
    %v730 = vpop.f32.mrb[0].mxu0
    %v731 = vadd.f32 0.0, %v730
    %732 = vmatprep.mubr.bf16.mxu0 0
    %733 = vmatmul.mubr.bf16.gmra.mrb[0].mxu0 %v86
    %v734 = vpop.f32.mrb[0].mxu0
    %v735 = vadd.f32 0.0, %v734
    %v736 = vpop.f32.mrb[0].mxu0
    %v737 = vadd.f32 0.0, %v736
    %v738 = vpop.f32.mrb[0].mxu0
    %v739 = vadd.f32 0.0, %v738
    %v740 = vpop.f32.mrb[0].mxu0
    %v741 = vadd.f32 0.0, %v740
    %742 = vmatprep.mubr.bf16.mxu0 0
    %743 = vmatmul.mubr.bf16.gmra.mrb[0].mxu0 %v87
    %v744 = vpop.f32.mrb[0].mxu0
    %v745 = vadd.f32 0.0, %v744
    %v746 = vpop.f32.mrb[0].mxu0
    %v747 = vadd.f32 0.0, %v746
    %v748 = vpop.f32.mrb[0].mxu0
    %v749 = vadd.f32 0.0, %v748
    %v750 = vpop.f32.mrb[0].mxu0
    %v751 = vadd.f32 0.0, %v750
    %752 = vmatprep.mubr.bf16.mxu0 0
    %753 = vmatmul.mubr.bf16.gmra.mrb[0].mxu0 %v88
    %v754 = vpop.f32.mrb[0].mxu0
    %v755 = vadd.f32 0.0, %v754
    %v756 = vpop.f32.mrb[0].mxu0
    %v757 = vadd.f32 0.0, %v756
    %v758 = vpop.f32.mrb[0].mxu0
    %v759 = vadd.f32 0.0, %v758
    %v760 = vpop.f32.mrb[0].mxu0
    %v761 = vadd.f32 0.0, %v760
    %762 = vdwg.mxu0
    %763 = vmatprep.subr.bf16.mxu0 %v286
    %764 = vmatpush1.bf16.msra.mxu0 %v285
    %765 = vmatprep.subr.bf16.mxu0 %v292
    %766 = vmatpush1.bf16.msra.mxu0 %v291
    %767 = vmatprep.subr.bf16.mxu0 %v298
    %768 = vmatpush1.bf16.msra.mxu0 %v297
    %769 = vmatprep.subr.bf16.mxu0 %v304
    %770 = vmatpush1.bf16.msra.mxu0 %v303
    %771 = vmatprep.subr.bf16.mxu0 %v310
    %772 = vmatpush1.bf16.msra.mxu0 %v309
    %773 = vmatprep.subr.bf16.mxu0 %v316
    %774 = vmatpush1.bf16.msra.mxu0 %v315
    %775 = vmatprep.subr.bf16.mxu0 %v322
    %776 = vmatpush1.bf16.msra.mxu0 %v321
    %777 = vmatprep.subr.bf16.mxu0 %v328
    %778 = vmatpush1.bf16.msra.mxu0 %v327
    %779 = vmatprep.subr.bf16.mxu0 0
    %780 = vmatpush1.bf16.msra.mxu0 0
    %781 = vmatprep.subr.bf16.mxu0 0
    %782 = vmatpush1.bf16.msra.mxu0 0
    %783 = vmatprep.subr.bf16.mxu0 0
    %784 = vmatpush1.bf16.msra.mxu0 0
    %785 = vmatprep.subr.bf16.mxu0 0
    %786 = vmatpush1.bf16.msra.mxu0 0
    %787 = vmatprep.subr.bf16.mxu0 0
    %788 = vmatpush1.bf16.msra.mxu0 0
    %789 = vmatprep.subr.bf16.mxu0 0
    %790 = vmatpush1.bf16.msra.mxu0 0
    %791 = vmatprep.subr.bf16.mxu0 0
    %792 = vmatpush1.bf16.msra.mxu0 0
    %793 = vmatprep.subr.bf16.mxu0 0
    %794 = vmatpush1.bf16.msra.mxu0 0
    %795 = vmatprep.mubr.bf16.mxu0 0
    %796 = vmatmul.mubr.bf16.gmra.mrb[0].mxu0 %v73
    %v797 = vpop.f32.mrb[0].mxu0
    %v798 = vadd.f32 0.0, %v797
    %v799 = vpop.f32.mrb[0].mxu0
    %v800 = vadd.f32 0.0, %v799
    %v801 = vpop.f32.mrb[0].mxu0
    %v802 = vadd.f32 0.0, %v801
    %v803 = vpop.f32.mrb[0].mxu0
    %v804 = vadd.f32 0.0, %v803
    %805 = vmatprep.mubr.bf16.mxu0 0
    %806 = vmatmul.mubr.bf16.gmra.mrb[0].mxu0 %v74
    %v807 = vpop.f32.mrb[0].mxu0
    %v808 = vadd.f32 0.0, %v807
    %v809 = vpop.f32.mrb[0].mxu0
    %v810 = vadd.f32 0.0, %v809
    %v811 = vpop.f32.mrb[0].mxu0
    %v812 = vadd.f32 0.0, %v811
    %v813 = vpop.f32.mrb[0].mxu0
    %v814 = vadd.f32 0.0, %v813
    %815 = vmatprep.mubr.bf16.mxu0 0
    %816 = vmatmul.mubr.bf16.gmra.mrb[0].mxu0 %v75
    %v817 = vpop.f32.mrb[0].mxu0
    %v818 = vadd.f32 0.0, %v817
    %v819 = vpop.f32.mrb[0].mxu0
    %v820 = vadd.f32 0.0, %v819
    %v821 = vpop.f32.mrb[0].mxu0
    %v822 = vadd.f32 0.0, %v821
    %v823 = vpop.f32.mrb[0].mxu0
    %v824 = vadd.f32 0.0, %v823
    %825 = vmatprep.mubr.bf16.mxu0 0
    %826 = vmatmul.mubr.bf16.gmra.mrb[0].mxu0 %v76
    %v827 = vpop.f32.mrb[0].mxu0
    %v828 = vadd.f32 0.0, %v827
    %v829 = vpop.f32.mrb[0].mxu0
    %v830 = vadd.f32 0.0, %v829
    %v831 = vpop.f32.mrb[0].mxu0
    %v832 = vadd.f32 0.0, %v831
    %v833 = vpop.f32.mrb[0].mxu0
    %v834 = vadd.f32 0.0, %v833
    %835 = vmatprep.mubr.bf16.mxu0 0
    %836 = vmatmul.mubr.bf16.gmra.mrb[0].mxu0 %v77
    %v837 = vpop.f32.mrb[0].mxu0
    %v838 = vadd.f32 0.0, %v837
    %v839 = vpop.f32.mrb[0].mxu0
    %v840 = vadd.f32 0.0, %v839
    %v841 = vpop.f32.mrb[0].mxu0
    %v842 = vadd.f32 0.0, %v841
    %v843 = vpop.f32.mrb[0].mxu0
    %v844 = vadd.f32 0.0, %v843
    %845 = vmatprep.mubr.bf16.mxu0 0
    %846 = vmatmul.mubr.bf16.gmra.mrb[0].mxu0 %v78
    %v847 = vpop.f32.mrb[0].mxu0
    %v848 = vadd.f32 0.0, %v847
    %v849 = vpop.f32.mrb[0].mxu0
    %v850 = vadd.f32 0.0, %v849
    %v851 = vpop.f32.mrb[0].mxu0
    %v852 = vadd.f32 0.0, %v851
    %v853 = vpop.f32.mrb[0].mxu0
    %v854 = vadd.f32 0.0, %v853
    %855 = vmatprep.mubr.bf16.mxu0 0
    %856 = vmatmul.mubr.bf16.gmra.mrb[0].mxu0 %v79
    %v857 = vpop.f32.mrb[0].mxu0
    %v858 = vadd.f32 0.0, %v857
    %v859 = vpop.f32.mrb[0].mxu0
    %v860 = vadd.f32 0.0, %v859
    %v861 = vpop.f32.mrb[0].mxu0
    %v862 = vadd.f32 0.0, %v861
    %v863 = vpop.f32.mrb[0].mxu0
    %v864 = vadd.f32 0.0, %v863
    %865 = vmatprep.mubr.bf16.mxu0 0
    %866 = vmatmul.mubr.bf16.gmra.mrb[0].mxu0 %v80
    %v867 = vpop.f32.mrb[0].mxu0
    %v868 = vadd.f32 0.0, %v867
    %v869 = vpop.f32.mrb[0].mxu0
    %v870 = vadd.f32 0.0, %v869
    %v871 = vpop.f32.mrb[0].mxu0
    %v872 = vadd.f32 0.0, %v871
    %v873 = vpop.f32.mrb[0].mxu0
    %v874 = vadd.f32 0.0, %v873
    %875 = vmatprep.mubr.bf16.mxu0 0
    %876 = vmatmul.mubr.bf16.gmra.mrb[0].mxu0 %v81
    %v877 = vpop.f32.mrb[0].mxu0
    %v878 = vadd.f32 0.0, %v877
    %v879 = vpop.f32.mrb[0].mxu0
    %v880 = vadd.f32 0.0, %v879
    %v881 = vpop.f32.mrb[0].mxu0
    %v882 = vadd.f32 0.0, %v881
    %v883 = vpop.f32.mrb[0].mxu0
    %v884 = vadd.f32 0.0, %v883
    %885 = vmatprep.mubr.bf16.mxu0 0
    %886 = vmatmul.mubr.bf16.gmra.mrb[0].mxu0 %v82
    %v887 = vpop.f32.mrb[0].mxu0
    %v888 = vadd.f32 0.0, %v887
    %v889 = vpop.f32.mrb[0].mxu0
    %v890 = vadd.f32 0.0, %v889
    %v891 = vpop.f32.mrb[0].mxu0
    %v892 = vadd.f32 0.0, %v891
    %v893 = vpop.f32.mrb[0].mxu0
    %v894 = vadd.f32 0.0, %v893
    %895 = vmatprep.mubr.bf16.mxu0 0
    %896 = vmatmul.mubr.bf16.gmra.mrb[0].mxu0 %v83
    %v897 = vpop.f32.mrb[0].mxu0
    %v898 = vadd.f32 0.0, %v897
    %v899 = vpop.f32.mrb[0].mxu0
    %v900 = vadd.f32 0.0, %v899
    %v901 = vpop.f32.mrb[0].mxu0
    %v902 = vadd.f32 0.0, %v901
    %v903 = vpop.f32.mrb[0].mxu0
    %v904 = vadd.f32 0.0, %v903
    %905 = vmatprep.mubr.bf16.mxu0 0
    %906 = vmatmul.mubr.bf16.gmra.mrb[0].mxu0 %v84
    %v907 = vpop.f32.mrb[0].mxu0
    %v908 = vadd.f32 0.0, %v907
    %v909 = vpop.f32.mrb[0].mxu0
    %v910 = vadd.f32 0.0, %v909
    %v911 = vpop.f32.mrb[0].mxu0
    %v912 = vadd.f32 0.0, %v911
    %v913 = vpop.f32.mrb[0].mxu0
    %v914 = vadd.f32 0.0, %v913
    %915 = vmatprep.mubr.bf16.mxu0 0
    %916 = vmatmul.mubr.bf16.gmra.mrb[0].mxu0 %v85
    %v917 = vpop.f32.mrb[0].mxu0
    %v918 = vadd.f32 0.0, %v917
    %v919 = vpop.f32.mrb[0].mxu0
    %v920 = vadd.f32 0.0, %v919
    %v921 = vpop.f32.mrb[0].mxu0
    %v922 = vadd.f32 0.0, %v921
    %v923 = vpop.f32.mrb[0].mxu0
    %v924 = vadd.f32 0.0, %v923
    %925 = vmatprep.mubr.bf16.mxu0 0
    %926 = vmatmul.mubr.bf16.gmra.mrb[0].mxu0 %v86
    %v927 = vpop.f32.mrb[0].mxu0
    %v928 = vadd.f32 0.0, %v927
    %v929 = vpop.f32.mrb[0].mxu0
    %v930 = vadd.f32 0.0, %v929
    %v931 = vpop.f32.mrb[0].mxu0
    %v932 = vadd.f32 0.0, %v931
    %v933 = vpop.f32.mrb[0].mxu0
    %v934 = vadd.f32 0.0, %v933
    %935 = vmatprep.mubr.bf16.mxu0 0
    %936 = vmatmul.mubr.bf16.gmra.mrb[0].mxu0 %v87
    %v937 = vpop.f32.mrb[0].mxu0
    %v938 = vadd.f32 0.0, %v937
    %v939 = vpop.f32.mrb[0].mxu0
    %v940 = vadd.f32 0.0, %v939
    %v941 = vpop.f32.mrb[0].mxu0
    %v942 = vadd.f32 0.0, %v941
    %v943 = vpop.f32.mrb[0].mxu0
    %v944 = vadd.f32 0.0, %v943
    %945 = vmatprep.mubr.bf16.mxu0 0
    %946 = vmatmul.mubr.bf16.gmra.mrb[0].mxu0 %v88
    %v947 = vpop.f32.mrb[0].mxu0
    %v948 = vadd.f32 0.0, %v947
    %v949 = vpop.f32.mrb[0].mxu0
    %v950 = vadd.f32 0.0, %v949
    %v951 = vpop.f32.mrb[0].mxu0
    %v952 = vadd.f32 0.0, %v951
    %v953 = vpop.f32.mrb[0].mxu0
    %v954 = vadd.f32 0.0, %v953
    %955 = vdwg.mxu0
    %956 = vst [vmem:[#allocation7] sm:$0xff] %v412
    %957 = vst [vmem:[#allocation7 + $0x8] sm:$0xff] %v414
    %958 = vst [vmem:[#allocation7 + $0x10] sm:$0xff] %v605
    %959 = vst [vmem:[#allocation7 + $0x18] sm:$0xff] %v607
    %960 = vst [vmem:[#allocation7 + $0x20] sm:$0xff] %v798
    %961 = vst [vmem:[#allocation7 + $0x28] sm:$0xff] %v800
    %962 = vst [vmem:[#allocation7 + $0x30] sm:$0xff] %v416
    %963 = vst [vmem:[#allocation7 + $0x38] sm:$0xff] %v418
    %964 = vst [vmem:[#allocation7 + $0x40] sm:$0xff] %v609
    %965 = vst [vmem:[#allocation7 + $0x48] sm:$0xff] %v611
    %966 = vst [vmem:[#allocation7 + $0x50] sm:$0xff] %v802
    %967 = vst [vmem:[#allocation7 + $0x58] sm:$0xff] %v804
    %968 = vst [vmem:[#allocation7 + $0x60] sm:$0xff] %v422
    %969 = vst [vmem:[#allocation7 + $0x68] sm:$0xff] %v424
    %970 = vst [vmem:[#allocation7 + $0x70] sm:$0xff] %v615
    %971 = vst [vmem:[#allocation7 + $0x78] sm:$0xff] %v617
    %972 = vst [vmem:[#allocation7 + $0x80] sm:$0xff] %v808
    %973 = vst [vmem:[#allocation7 + $0x88] sm:$0xff] %v810
    %974 = vst [vmem:[#allocation7 + $0x90] sm:$0xff] %v426
    %975 = vst [vmem:[#allocation7 + $0x98] sm:$0xff] %v428
    %976 = vst [vmem:[#allocation7 + $0xa0] sm:$0xff] %v619
    %977 = vst [vmem:[#allocation7 + $0xa8] sm:$0xff] %v621
    %978 = vst [vmem:[#allocation7 + $0xb0] sm:$0xff] %v812
    %979 = vst [vmem:[#allocation7 + $0xb8] sm:$0xff] %v814
    %980 = vst [vmem:[#allocation7 + $0xc0] sm:$0xff] %v432
    %981 = vst [vmem:[#allocation7 + $0xc8] sm:$0xff] %v434
    %982 = vst [vmem:[#allocation7 + $0xd0] sm:$0xff] %v625
    %983 = vst [vmem:[#allocation7 + $0xd8] sm:$0xff] %v627
    %984 = vst [vmem:[#allocation7 + $0xe0] sm:$0xff] %v818
    %985 = vst [vmem:[#allocation7 + $0xe8] sm:$0xff] %v820
    %986 = vst [vmem:[#allocation7 + $0xf0] sm:$0xff] %v436
    %987 = vst [vmem:[#allocation7 + $0xf8] sm:$0xff] %v438
    %988 = vst [vmem:[#allocation7 + $0x100] sm:$0xff] %v629
    %989 = vst [vmem:[#allocation7 + $0x108] sm:$0xff] %v631
    %990 = vst [vmem:[#allocation7 + $0x110] sm:$0xff] %v822
    %991 = vst [vmem:[#allocation7 + $0x118] sm:$0xff] %v824
    %992 = vst [vmem:[#allocation7 + $0x120] sm:$0xff] %v442
    %993 = vst [vmem:[#allocation7 + $0x128] sm:$0xff] %v444
    %994 = vst [vmem:[#allocation7 + $0x130] sm:$0xff] %v635
    %995 = vst [vmem:[#allocation7 + $0x138] sm:$0xff] %v637
    %996 = vst [vmem:[#allocation7 + $0x140] sm:$0xff] %v828
    %997 = vst [vmem:[#allocation7 + $0x148] sm:$0xff] %v830
    %998 = vst [vmem:[#allocation7 + $0x150] sm:$0xff] %v446
    %999 = vst [vmem:[#allocation7 + $0x158] sm:$0xff] %v448
    %1000 = vst [vmem:[#allocation7 + $0x160] sm:$0xff] %v639
    %1001 = vst [vmem:[#allocation7 + $0x168] sm:$0xff] %v641
    %1002 = vst [vmem:[#allocation7 + $0x170] sm:$0xff] %v832
    %1003 = vst [vmem:[#allocation7 + $0x178] sm:$0xff] %v834
    %1004 = vst [vmem:[#allocation7 + $0x180] sm:$0xff] %v452
    %1005 = vst [vmem:[#allocation7 + $0x188] sm:$0xff] %v454
    %1006 = vst [vmem:[#allocation7 + $0x190] sm:$0xff] %v645
    %1007 = vst [vmem:[#allocation7 + $0x198] sm:$0xff] %v647
    %1008 = vst [vmem:[#allocation7 + $0x1a0] sm:$0xff] %v838
    %1009 = vst [vmem:[#allocation7 + $0x1a8] sm:$0xff] %v840
    %1010 = vst [vmem:[#allocation7 + $0x1b0] sm:$0xff] %v456
    %1011 = vst [vmem:[#allocation7 + $0x1b8] sm:$0xff] %v458
    %1012 = vst [vmem:[#allocation7 + $0x1c0] sm:$0xff] %v649
    %1013 = vst [vmem:[#allocation7 + $0x1c8] sm:$0xff] %v651
    %1014 = vst [vmem:[#allocation7 + $0x1d0] sm:$0xff] %v842
    %1015 = vst [vmem:[#allocation7 + $0x1d8] sm:$0xff] %v844
    %1016 = vst [vmem:[#allocation7 + $0x1e0] sm:$0xff] %v462
    %1017 = vst [vmem:[#allocation7 + $0x1e8] sm:$0xff] %v464
    %1018 = vst [vmem:[#allocation7 + $0x1f0] sm:$0xff] %v655
    %1019 = vst [vmem:[#allocation7 + $0x1f8] sm:$0xff] %v657
    %1020 = vst [vmem:[#allocation7 + $0x200] sm:$0xff] %v848
    %1021 = vst [vmem:[#allocation7 + $0x208] sm:$0xff] %v850
    %1022 = vst [vmem:[#allocation7 + $0x210] sm:$0xff] %v466
    %1023 = vst [vmem:[#allocation7 + $0x218] sm:$0xff] %v468
    %1024 = vst [vmem:[#allocation7 + $0x220] sm:$0xff] %v659
    %1025 = vst [vmem:[#allocation7 + $0x228] sm:$0xff] %v661
    %1026 = vst [vmem:[#allocation7 + $0x230] sm:$0xff] %v852
    %1027 = vst [vmem:[#allocation7 + $0x238] sm:$0xff] %v854
    %1028 = vst [vmem:[#allocation7 + $0x240] sm:$0xff] %v472
    %1029 = vst [vmem:[#allocation7 + $0x248] sm:$0xff] %v474
    %1030 = vst [vmem:[#allocation7 + $0x250] sm:$0xff] %v665
    %1031 = vst [vmem:[#allocation7 + $0x258] sm:$0xff] %v667
    %1032 = vst [vmem:[#allocation7 + $0x260] sm:$0xff] %v858
    %1033 = vst [vmem:[#allocation7 + $0x268] sm:$0xff] %v860
    %1034 = vst [vmem:[#allocation7 + $0x270] sm:$0xff] %v476
    %1035 = vst [vmem:[#allocation7 + $0x278] sm:$0xff] %v478
    %1036 = vst [vmem:[#allocation7 + $0x280] sm:$0xff] %v669
    %1037 = vst [vmem:[#allocation7 + $0x288] sm:$0xff] %v671
    %1038 = vst [vmem:[#allocation7 + $0x290] sm:$0xff] %v862
    %1039 = vst [vmem:[#allocation7 + $0x298] sm:$0xff] %v864
    %1040 = vst [vmem:[#allocation7 + $0x2a0] sm:$0xff] %v482
    %1041 = vst [vmem:[#allocation7 + $0x2a8] sm:$0xff] %v484
    %1042 = vst [vmem:[#allocation7 + $0x2b0] sm:$0xff] %v675
    %1043 = vst [vmem:[#allocation7 + $0x2b8] sm:$0xff] %v677
    %1044 = vst [vmem:[#allocation7 + $0x2c0] sm:$0xff] %v868
    %1045 = vst [vmem:[#allocation7 + $0x2c8] sm:$0xff] %v870
    %1046 = vst [vmem:[#allocation7 + $0x2d0] sm:$0xff] %v486
    %1047 = vst [vmem:[#allocation7 + $0x2d8] sm:$0xff] %v488
    %1048 = vst [vmem:[#allocation7 + $0x2e0] sm:$0xff] %v679
    %1049 = vst [vmem:[#allocation7 + $0x2e8] sm:$0xff] %v681
    %1050 = vst [vmem:[#allocation7 + $0x2f0] sm:$0xff] %v872
    %1051 = vst [vmem:[#allocation7 + $0x2f8] sm:$0xff] %v874
    %1052 = vst [vmem:[#allocation7 + $0x300] sm:$0xff] %v492
    %1053 = vst [vmem:[#allocation7 + $0x308] sm:$0xff] %v494
    %1054 = vst [vmem:[#allocation7 + $0x310] sm:$0xff] %v685
    %1055 = vst [vmem:[#allocation7 + $0x318] sm:$0xff] %v687
    %1056 = vst [vmem:[#allocation7 + $0x320] sm:$0xff] %v878
    %1057 = vst [vmem:[#allocation7 + $0x328] sm:$0xff] %v880
    %1058 = vst [vmem:[#allocation7 + $0x330] sm:$0xff] %v496
    %1059 = vst [vmem:[#allocation7 + $0x338] sm:$0xff] %v498
    %1060 = vst [vmem:[#allocation7 + $0x340] sm:$0xff] %v689
    %1061 = vst [vmem:[#allocation7 + $0x348] sm:$0xff] %v691
    %1062 = vst [vmem:[#allocation7 + $0x350] sm:$0xff] %v882
    %1063 = vst [vmem:[#allocation7 + $0x358] sm:$0xff] %v884
    %1064 = vst [vmem:[#allocation7 + $0x360] sm:$0xff] %v502
    %1065 = vst [vmem:[#allocation7 + $0x368] sm:$0xff] %v504
    %1066 = vst [vmem:[#allocation7 + $0x370] sm:$0xff] %v695
    %1067 = vst [vmem:[#allocation7 + $0x378] sm:$0xff] %v697
    %1068 = vst [vmem:[#allocation7 + $0x380] sm:$0xff] %v888
    %1069 = vst [vmem:[#allocation7 + $0x388] sm:$0xff] %v890
    %1070 = vst [vmem:[#allocation7 + $0x390] sm:$0xff] %v506
    %1071 = vst [vmem:[#allocation7 + $0x398] sm:$0xff] %v508
    %1072 = vst [vmem:[#allocation7 + $0x3a0] sm:$0xff] %v699
    %1073 = vst [vmem:[#allocation7 + $0x3a8] sm:$0xff] %v701
    %1074 = vst [vmem:[#allocation7 + $0x3b0] sm:$0xff] %v892
    %1075 = vst [vmem:[#allocation7 + $0x3b8] sm:$0xff] %v894
    %1076 = vst [vmem:[#allocation7 + $0x3c0] sm:$0xff] %v512
    %1077 = vst [vmem:[#allocation7 + $0x3c8] sm:$0xff] %v514
    %1078 = vst [vmem:[#allocation7 + $0x3d0] sm:$0xff] %v705
    %1079 = vst [vmem:[#allocation7 + $0x3d8] sm:$0xff] %v707
    %1080 = vst [vmem:[#allocation7 + $0x3e0] sm:$0xff] %v898
    %1081 = vst [vmem:[#allocation7 + $0x3e8] sm:$0xff] %v900
    %1082 = vst [vmem:[#allocation7 + $0x3f0] sm:$0xff] %v516
    %1083 = vst [vmem:[#allocation7 + $0x3f8] sm:$0xff] %v518
    %1084 = vst [vmem:[#allocation7 + $0x400] sm:$0xff] %v709
    %1085 = vst [vmem:[#allocation7 + $0x408] sm:$0xff] %v711
    %1086 = vst [vmem:[#allocation7 + $0x410] sm:$0xff] %v902
    %1087 = vst [vmem:[#allocation7 + $0x418] sm:$0xff] %v904
    %1088 = vst [vmem:[#allocation7 + $0x420] sm:$0xff] %v522
    %1089 = vst [vmem:[#allocation7 + $0x428] sm:$0xff] %v524
    %1090 = vst [vmem:[#allocation7 + $0x430] sm:$0xff] %v715
    %1091 = vst [vmem:[#allocation7 + $0x438] sm:$0xff] %v717
    %1092 = vst [vmem:[#allocation7 + $0x440] sm:$0xff] %v908
    %1093 = vst [vmem:[#allocation7 + $0x448] sm:$0xff] %v910
    %1094 = vst [vmem:[#allocation7 + $0x450] sm:$0xff] %v526
    %1095 = vst [vmem:[#allocation7 + $0x458] sm:$0xff] %v528
    %1096 = vst [vmem:[#allocation7 + $0x460] sm:$0xff] %v719
    %1097 = vst [vmem:[#allocation7 + $0x468] sm:$0xff] %v721
    %1098 = vst [vmem:[#allocation7 + $0x470] sm:$0xff] %v912
    %1099 = vst [vmem:[#allocation7 + $0x478] sm:$0xff] %v914
    %1100 = vst [vmem:[#allocation7 + $0x480] sm:$0xff] %v532
    %1101 = vst [vmem:[#allocation7 + $0x488] sm:$0xff] %v534
    %1102 = vst [vmem:[#allocation7 + $0x490] sm:$0xff] %v725
    %1103 = vst [vmem:[#allocation7 + $0x498] sm:$0xff] %v727
    %1104 = vst [vmem:[#allocation7 + $0x4a0] sm:$0xff] %v918
    %1105 = vst [vmem:[#allocation7 + $0x4a8] sm:$0xff] %v920
    %1106 = vst [vmem:[#allocation7 + $0x4b0] sm:$0xff] %v536
    %1107 = vst [vmem:[#allocation7 + $0x4b8] sm:$0xff] %v538
    %1108 = vst [vmem:[#allocation7 + $0x4c0] sm:$0xff] %v729
    %1109 = vst [vmem:[#allocation7 + $0x4c8] sm:$0xff] %v731
    %1110 = vst [vmem:[#allocation7 + $0x4d0] sm:$0xff] %v922
    %1111 = vst [vmem:[#allocation7 + $0x4d8] sm:$0xff] %v924
    %1112 = vst [vmem:[#allocation7 + $0x4e0] sm:$0xff] %v542
    %1113 = vst [vmem:[#allocation7 + $0x4e8] sm:$0xff] %v544
    %1114 = vst [vmem:[#allocation7 + $0x4f0] sm:$0xff] %v735
    %1115 = vst [vmem:[#allocation7 + $0x4f8] sm:$0xff] %v737
    %1116 = vst [vmem:[#allocation7 + $0x500] sm:$0xff] %v928
    %1117 = vst [vmem:[#allocation7 + $0x508] sm:$0xff] %v930
    %1118 = vst [vmem:[#allocation7 + $0x510] sm:$0xff] %v546
    %1119 = vst [vmem:[#allocation7 + $0x518] sm:$0xff] %v548
    %1120 = vst [vmem:[#allocation7 + $0x520] sm:$0xff] %v739
    %1121 = vst [vmem:[#allocation7 + $0x528] sm:$0xff] %v741
    %1122 = vst [vmem:[#allocation7 + $0x530] sm:$0xff] %v932
    %1123 = vst [vmem:[#allocation7 + $0x538] sm:$0xff] %v934
    %1124 = vst [vmem:[#allocation7 + $0x540] sm:$0xff] %v552
    %1125 = vst [vmem:[#allocation7 + $0x548] sm:$0xff] %v554
    %1126 = vst [vmem:[#allocation7 + $0x550] sm:$0xff] %v745
    %1127 = vst [vmem:[#allocation7 + $0x558] sm:$0xff] %v747
    %1128 = vst [vmem:[#allocation7 + $0x560] sm:$0xff] %v938
    %1129 = vst [vmem:[#allocation7 + $0x568] sm:$0xff] %v940
    %1130 = vst [vmem:[#allocation7 + $0x570] sm:$0xff] %v556
    %1131 = vst [vmem:[#allocation7 + $0x578] sm:$0xff] %v558
    %1132 = vst [vmem:[#allocation7 + $0x580] sm:$0xff] %v749
    %1133 = vst [vmem:[#allocation7 + $0x588] sm:$0xff] %v751
    %1134 = vst [vmem:[#allocation7 + $0x590] sm:$0xff] %v942
    %1135 = vst [vmem:[#allocation7 + $0x598] sm:$0xff] %v944
    %1136 = vst [vmem:[#allocation7 + $0x5a0] sm:$0xff] %v562
    %1137 = vst [vmem:[#allocation7 + $0x5a8] sm:$0xff] %v564
    %1138 = vst [vmem:[#allocation7 + $0x5b0] sm:$0xff] %v755
    %1139 = vst [vmem:[#allocation7 + $0x5b8] sm:$0xff] %v757
    %1140 = vst [vmem:[#allocation7 + $0x5c0] sm:$0xff] %v948
    %1141 = vst [vmem:[#allocation7 + $0x5c8] sm:$0xff] %v950
    %1142 = vst [vmem:[#allocation7 + $0x5d0] sm:$0xff] %v566
    %1143 = vst [vmem:[#allocation7 + $0x5d8] sm:$0xff] %v568
    %1144 = vst [vmem:[#allocation7 + $0x5e0] sm:$0xff] %v759
    %1145 = vst [vmem:[#allocation7 + $0x5e8] sm:$0xff] %v761
    %1146 = vst [vmem:[#allocation7 + $0x5f0] sm:$0xff] %v952
    %1147 = vst [vmem:[#allocation7 + $0x5f8] sm:$0xff] %v954
    // Predicated region
    $region18: #{rel_partial_decoder_layer.5} parent=1 // pred_check
      _
    $region19: #{rel_partial_decoder_layer.5} parent=1 // pred_check_branch
      %1149 = sbr.rel (0) target = $region21
    $region20: #{rel_partial_decoder_layer.5} parent=1 // pred_region
      %s1151 = ssub.s32 24576, 24576
      %1152 = vsyncadd [#allocation4], %s1151
      %s1153 = sshll.u32 [#allocation7], 4
      %s1154 = int_to_ptr.vmem [resolvable:$true] %s1153
      %1159 = dma.vmem_to_hbm [thread:$0]  %s1154, 24576, %s2, [#allocation4], 768, 768, 48
    $region21: #{rel_partial_decoder_layer.5} parent=1 // pred_fallthru
      _
    // Predicated region
    $region22: #{rel_partial_decoder_layer.5} parent=1 // pred_check
      _
    $region23: #{rel_partial_decoder_layer.5} parent=1 // pred_check_branch
      %1161 = sbr.rel (0) target = $region25
    $region24: #{rel_partial_decoder_layer.5} parent=1 // pred_region
      %1162 = dma.done [#allocation4], 24576
    $region25: #{rel_partial_decoder_layer.5} parent=1 // pred_fallthru
      _
    %1163 = vsyncpa [#allocation3], 1
    %1164 = vsyncpa [#allocation6], 1
    %1165 = vsyncpa [#allocation4], 1

// kernel: rel_partial_decoder_layer.9
$region0: #{rel_partial_decoder_layer.9}
  #allocation0 [shape = 'u32[]', space=smem, size = 0x4, offset = 0x4, fixed_abs, tag = 'smem constant byte address 0x4 - core index']
  #allocation1 [shape = 'u32[144,128]{1,0:T(1,128)}', space=vmem, size = 0x12000, scoped, tag = 'internal scratch']
  #allocation2 [shape = 'f32[256,128]{1,0:T(8,128)}', space=vmem, size = 0x20000, scoped, tag = 'scratch operand']
  %s0 = inlined_call_operand.hbm [shape: f32[256,128], index: 0, kind: input, shape index: {}]
  %s1 = inlined_call_operand.hbm [shape: bf16[128,256], index: 1, kind: input, shape index: {}]
  %s2 = inlined_call_operand.hbm [shape: f32[1,256], index: 2, kind: input, shape index: {}]
  %s3 = inlined_call_operand.hbm [shape: bf16[256,128], index: 3, kind: input, shape index: {}]
  %s4 = inlined_call_operand.hbm [shape: f32[1,128], index: 4, kind: input, shape index: {}]
  %s5 = inlined_call_operand.hbm [shape: f32[1,128], index: 5, kind: input, shape index: {}]
  %s6 = inlined_call_operand.hbm [shape: f32[1,128], index: 6, kind: input, shape index: {}]
  %s7 = inlined_call_operand.hbm [shape: f32[256,128], index: 7, kind: output, shape index: {}]
  %s8 = sld [smem:[#allocation0]]
  $region97: #{rel_partial_decoder_layer.9} parent=0
    _
  %s10 = ssub.s32 1, %s8
  %s11 = scalar_select 0, %s10, %s8
  $region1: #{rel_partial_decoder_layer.9} parent=0
    #allocation3 [shape = 'u8[131072]{0}', space=vmem, size = 0x20000, scoped, tag = 'input window, operand 0, single buffered']
    #allocation4 [shape = 's32[2]{0}', space=sflag, size = 0x8, scoped, tag = 'scoped memory for rel_partial_decoder_layer.9']
    #allocation5 [shape = 's32[2]{0}', space=sflag, size = 0x8, scoped, tag = 'scoped memory for rel_partial_decoder_layer.9']
    #allocation6 [shape = 'u8[65536]{0}', space=vmem, size = 0x10000, scoped, tag = 'input window, operand 1']
    #allocation7 [shape = 's32[2]{0}', space=sflag, size = 0x8, scoped, tag = 'scoped memory for rel_partial_decoder_layer.9']
    #allocation8 [shape = 'u8[1024]{0}', space=vmem, size = 0x400, scoped, tag = 'input window, operand 2']
    #allocation9 [shape = 'u8[65536]{0}', space=vmem, size = 0x10000, scoped, tag = 'input window, operand 3']
    #allocation10 [shape = 's32[2]{0}', space=sflag, size = 0x8, scoped, tag = 'scoped memory for rel_partial_decoder_layer.9']
    #allocation11 [shape = 'u8[512]{0}', space=vmem, size = 0x400, scoped, tag = 'input window, operand 4, single buffered']
    #allocation12 [shape = 'u8[512]{0}', space=vmem, size = 0x400, scoped, tag = 'input window, operand 5, single buffered']
    #allocation13 [shape = 's32[1]{0}', space=sflag, size = 0x4, scoped, tag = 'scoped memory for rel_partial_decoder_layer.9']
    #allocation14 [shape = 'u8[512]{0}', space=vmem, size = 0x400, scoped, tag = 'input window, operand 6, single buffered']
    #allocation15 [shape = 'u8[131072]{0}', space=vmem, size = 0x20000, scoped, tag = 'output window, operand 0, single buffered']
    %12 = vsyncpa [#allocation4], 0
    %13 = vsyncpa [#allocation7], 0
    %s14 = scalar_lea.sflag [#allocation7], 1
    %15 = vsyncpa %s14, 0
    %16 = vsyncpa [#allocation10], 0
    %s17 = scalar_lea.sflag [#allocation10], 1
    %18 = vsyncpa %s17, 0
    %19 = vsyncpa [#allocation13], 0
    %20 = vsyncpa [#allocation5], 0
    loop: start=0, step=1, limit=4
    $region2: #{rel_partial_decoder_layer.9} parent=1 // loop_pre_header
      _
    $region3: #{rel_partial_decoder_layer.9} parent=1 // loop_header
      %s22 = sphi 0, %s26
      %p23 = scmp.ge.s32.totalorder %s22, 4
      %s29 = sphi 0, %s41
      %s30 = sphi 0, %s37
      %s31 = sphi 0, %s29
      %s32 = sphi 0, %s30
      %s33 = sphi 0, %s31
      %s34 = sphi 0, %s32
      %s44 = sphi 0, %s46
      %s47 = sphi 0, %s44
      %s48 = sphi 0, %s47
      %s64 = sphi 0, %s48
      %s70 = sphi 0, %s72
      %s73 = sphi 0, %s70
      %s74 = sphi 0, %s73
      %s90 = sphi 0, %s74
      %s96 = sphi 0, %s98
      %s99 = sphi 0, %s96
      %s100 = sphi 0, %s99
      %s116 = sphi 0, %s100
      %s122 = sphi 0, %s124
      %s125 = sphi 0, %s122
      %s126 = sphi 0, %s125
      %s142 = sphi 0, %s126
      %s146 = sphi 0, %s146
      %s148 = sphi 0, %s146
      %s149 = sphi 0, %s148
      %s163 = sphi 0, %s149
      %s167 = sphi 0, %s167
      %s169 = sphi 0, %s167
      %s170 = sphi 0, %s169
      %s184 = sphi 0, %s170
      %s188 = sphi 0, %s188
      %s190 = sphi 0, %s188
      %s191 = sphi 0, %s190
      %s205 = sphi 0, %s191
      %s211 = sphi 0, %s213
      %s214 = sphi 0, %s211
      %s215 = sphi 0, %s214
      %s231 = sphi 0, %s215
    $region4: #{rel_partial_decoder_layer.9} parent=1 // loop_header_branch
      %25 = sbr.rel (%p23) target = $region8
    $region5: #{rel_partial_decoder_layer.9} parent=1 // loop_body
      %s27 = ssub.s32 %s22, 1
      %s28 = ssub.s32 %s22, 2
      %s35 = sadd.s32 1, %s30
      %p36 = scmp.ge.s32.totalorder %s35, 2
      %s37 = scalar_select %p36, 0, %s35
      %s38 = sadd.s32 1, %s29
      %s39 = scalar_select %p36, %s38, %s29
      %p40 = scmp.ge.s32.totalorder %s39, 1
      %s41 = scalar_select %p40, 0, %s39
      %s42 = ssub.s32 %s29, %s41
      %p43 = scmp.eq.s32.totalorder %s42, 0
      %s45 = sadd.s32 %s44, 1
      %s46 = scalar_select %p43, %s44, %s45
      %p49 = pneg %p43
      %p50 = scmp.eq.s32.totalorder %s22, 1
      %p51 = por %p49, %p50
      %p52 = scmp.ne.s32.totalorder %s44, %s47
      %p53 = scmp.eq.s32.totalorder %s22, 0
      %p54 = por %p52, %p53
      %p55 = scmp.ne.s32.totalorder %s44, %s47
      %p56 = scmp.eq.s32.totalorder %s27, 1
      %p57 = por %p55, %p56
      %p58 = scmp.ne.s32.totalorder %s47, %s48
      %p59 = scmp.eq.s32.totalorder %s27, 0
      %p60 = por %p58, %p59
      %p61 = scmp.ne.s32.totalorder %s47, %s48
      %p62 = scmp.eq.s32.totalorder %s28, 1
      %p63 = por %p61, %p62
      %p65 = scmp.ne.s32.totalorder %s48, %s64
      %p66 = scmp.eq.s32.totalorder %s28, 0
      %p67 = por %p65, %p66
      %s68 = ssub.s32 %s30, %s37
      %p69 = scmp.eq.s32.totalorder %s68, 0
      %s71 = sadd.s32 %s70, 1
      %s72 = scalar_select %p69, %s70, %s71
      %p75 = pneg %p69
      %p76 = scmp.eq.s32.totalorder %s22, 1
      %p77 = por %p75, %p76
      %p78 = scmp.ne.s32.totalorder %s70, %s73
      %p79 = scmp.eq.s32.totalorder %s22, 0
      %p80 = por %p78, %p79
      %p81 = scmp.ne.s32.totalorder %s70, %s73
      %p82 = scmp.eq.s32.totalorder %s27, 1
      %p83 = por %p81, %p82
      %p84 = scmp.ne.s32.totalorder %s73, %s74
      %p85 = scmp.eq.s32.totalorder %s27, 0
      %p86 = por %p84, %p85
      %p87 = scmp.ne.s32.totalorder %s73, %s74
      %p88 = scmp.eq.s32.totalorder %s28, 1
      %p89 = por %p87, %p88
      %p91 = scmp.ne.s32.totalorder %s74, %s90
      %p92 = scmp.eq.s32.totalorder %s28, 0
      %p93 = por %p91, %p92
      %s94 = ssub.s32 %s30, %s37
      %p95 = scmp.eq.s32.totalorder %s94, 0
      %s97 = sadd.s32 %s96, 1
      %s98 = scalar_select %p95, %s96, %s97
      %p101 = pneg %p95
      %p102 = scmp.eq.s32.totalorder %s22, 1
      %p103 = por %p101, %p102
      %p104 = scmp.ne.s32.totalorder %s96, %s99
      %p105 = scmp.eq.s32.totalorder %s22, 0
      %p106 = por %p104, %p105
      %p107 = scmp.ne.s32.totalorder %s96, %s99
      %p108 = scmp.eq.s32.totalorder %s27, 1
      %p109 = por %p107, %p108
      %p110 = scmp.ne.s32.totalorder %s99, %s100
      %p111 = scmp.eq.s32.totalorder %s27, 0
      %p112 = por %p110, %p111
      %p113 = scmp.ne.s32.totalorder %s99, %s100
      %p114 = scmp.eq.s32.totalorder %s28, 1
      %p115 = por %p113, %p114
      %p117 = scmp.ne.s32.totalorder %s100, %s116
      %p118 = scmp.eq.s32.totalorder %s28, 0
      %p119 = por %p117, %p118
      %s120 = ssub.s32 %s30, %s37
      %p121 = scmp.eq.s32.totalorder %s120, 0
      %s123 = sadd.s32 %s122, 1
      %s124 = scalar_select %p121, %s122, %s123
      %p127 = pneg %p121
      %p128 = scmp.eq.s32.totalorder %s22, 1
      %p129 = por %p127, %p128
      %p130 = scmp.ne.s32.totalorder %s122, %s125
      %p131 = scmp.eq.s32.totalorder %s22, 0
      %p132 = por %p130, %p131
      %p133 = scmp.ne.s32.totalorder %s122, %s125
      %p134 = scmp.eq.s32.totalorder %s27, 1
      %p135 = por %p133, %p134
      %p136 = scmp.ne.s32.totalorder %s125, %s126
      %p137 = scmp.eq.s32.totalorder %s27, 0
      %p138 = por %p136, %p137
      %p139 = scmp.ne.s32.totalorder %s125, %s126
      %p140 = scmp.eq.s32.totalorder %s28, 1
      %p141 = por %p139, %p140
      %p143 = scmp.ne.s32.totalorder %s126, %s142
      %p144 = scmp.eq.s32.totalorder %s28, 0
      %p145 = por %p143, %p144
      %s147 = sadd.s32 %s146, 1
      %p150 = scmp.eq.s32.totalorder %s22, 1
      %p151 = scmp.ne.s32.totalorder %s146, %s148
      %p152 = scmp.eq.s32.totalorder %s22, 0
      %p153 = por %p151, %p152
      %p154 = scmp.ne.s32.totalorder %s146, %s148
      %p155 = scmp.eq.s32.totalorder %s27, 1
      %p156 = por %p154, %p155
      %p157 = scmp.ne.s32.totalorder %s148, %s149
      %p158 = scmp.eq.s32.totalorder %s27, 0
      %p159 = por %p157, %p158
      %p160 = scmp.ne.s32.totalorder %s148, %s149
      %p161 = scmp.eq.s32.totalorder %s28, 1
      %p162 = por %p160, %p161
      %p164 = scmp.ne.s32.totalorder %s149, %s163
      %p165 = scmp.eq.s32.totalorder %s28, 0
      %p166 = por %p164, %p165
      %s168 = sadd.s32 %s167, 1
      %p171 = scmp.eq.s32.totalorder %s22, 1
      %p172 = scmp.ne.s32.totalorder %s167, %s169
      %p173 = scmp.eq.s32.totalorder %s22, 0
      %p174 = por %p172, %p173
      %p175 = scmp.ne.s32.totalorder %s167, %s169
      %p176 = scmp.eq.s32.totalorder %s27, 1
      %p177 = por %p175, %p176
      %p178 = scmp.ne.s32.totalorder %s169, %s170
      %p179 = scmp.eq.s32.totalorder %s27, 0
      %p180 = por %p178, %p179
      %p181 = scmp.ne.s32.totalorder %s169, %s170
      %p182 = scmp.eq.s32.totalorder %s28, 1
      %p183 = por %p181, %p182
      %p185 = scmp.ne.s32.totalorder %s170, %s184
      %p186 = scmp.eq.s32.totalorder %s28, 0
      %p187 = por %p185, %p186
      %s189 = sadd.s32 %s188, 1
      %p192 = scmp.eq.s32.totalorder %s22, 1
      %p193 = scmp.ne.s32.totalorder %s188, %s190
      %p194 = scmp.eq.s32.totalorder %s22, 0
      %p195 = por %p193, %p194
      %p196 = scmp.ne.s32.totalorder %s188, %s190
      %p197 = scmp.eq.s32.totalorder %s27, 1
      %p198 = por %p196, %p197
      %p199 = scmp.ne.s32.totalorder %s190, %s191
      %p200 = scmp.eq.s32.totalorder %s27, 0
      %p201 = por %p199, %p200
      %p202 = scmp.ne.s32.totalorder %s190, %s191
      %p203 = scmp.eq.s32.totalorder %s28, 1
      %p204 = por %p202, %p203
      %p206 = scmp.ne.s32.totalorder %s191, %s205
      %p207 = scmp.eq.s32.totalorder %s28, 0
      %p208 = por %p206, %p207
      %s209 = ssub.s32 %s29, %s41
      %p210 = scmp.eq.s32.totalorder %s209, 0
      %s212 = sadd.s32 %s211, 1
      %s213 = scalar_select %p210, %s211, %s212
      %p216 = pneg %p210
      %p217 = scmp.eq.s32.totalorder %s22, 1
      %p218 = por %p216, %p217
      %p219 = scmp.ne.s32.totalorder %s211, %s214
      %p220 = scmp.eq.s32.totalorder %s22, 0
      %p221 = por %p219, %p220
      %p222 = scmp.ne.s32.totalorder %s211, %s214
      %p223 = scmp.eq.s32.totalorder %s27, 1
      %p224 = por %p222, %p223
      %p225 = scmp.ne.s32.totalorder %s214, %s215
      %p226 = scmp.eq.s32.totalorder %s27, 0
      %p227 = por %p225, %p226
      %p228 = scmp.ne.s32.totalorder %s214, %s215
      %p229 = scmp.eq.s32.totalorder %s28, 1
      %p230 = por %p228, %p229
      %p232 = scmp.ne.s32.totalorder %s215, %s231
      %p233 = scmp.eq.s32.totalorder %s28, 0
      %p234 = por %p232, %p233
      %p235 = scmp.le.s32.totalorder 1, %s22
      %p236 = scmp.lt.s32.totalorder %s22, 3
      %p237 = pnand %p235, %p236
      %p238 = pneg %p237
      // Predicated region
      $region9: #{rel_partial_decoder_layer.9} parent=5 // pred_check
        _
      $region10: #{rel_partial_decoder_layer.9} parent=5 // pred_check_branch
        %240 = sbr.rel (%p237) target = $region12
      $region11: #{rel_partial_decoder_layer.9} parent=5 // pred_region
        %s241 = ssub.s32 %s22, 1
        // Predicated region
        $region13: #{rel_partial_decoder_layer.9} parent=11 // pred_check
          %p242 = pneg %p60
        $region14: #{rel_partial_decoder_layer.9} parent=11 // pred_check_branch
          %244 = sbr.rel (%p242) target = $region16
        $region15: #{rel_partial_decoder_layer.9} parent=11 // pred_region
          %s245 = smul.u32 32, %s31
          %s247 = ssub.s32 4096, 4096
          %248 = vsyncadd [#allocation4], %s247
          %s249 = smul.addr %s245, 128
          %s250 = scalar_lea.hbm %s0, %s249
          %s251 = sshll.u32 [#allocation3], 4
          %s252 = int_to_ptr.vmem [resolvable:$true] %s251
          %257 = dma.hbm_to_vmem [thread:$0]  %s250, 4096, %s252, [#allocation4], 128, 128, 8
        $region16: #{rel_partial_decoder_layer.9} parent=11 // pred_fallthru
          _
        // Predicated region
        $region17: #{rel_partial_decoder_layer.9} parent=11 // pred_check
          %p258 = pneg %p159
        $region18: #{rel_partial_decoder_layer.9} parent=11 // pred_check_branch
          %260 = sbr.rel (%p258) target = $region20
        $region19: #{rel_partial_decoder_layer.9} parent=11 // pred_region
          %s262 = ssub.s32 16, 16
          %263 = vsyncadd [#allocation10], %s262
          %s265 = sshll.u32 [#allocation11], 4
          %s266 = int_to_ptr.vmem [resolvable:$true] %s265
          %268 = dma.hbm_to_vmem [thread:$0]  %s4, 16, %s266, [#allocation10]
        $region20: #{rel_partial_decoder_layer.9} parent=11 // pred_fallthru
          _
        // Predicated region
        $region21: #{rel_partial_decoder_layer.9} parent=11 // pred_check
          %p269 = pneg %p180
        $region22: #{rel_partial_decoder_layer.9} parent=11 // pred_check_branch
          %271 = sbr.rel (%p269) target = $region24
        $region23: #{rel_partial_decoder_layer.9} parent=11 // pred_region
          %s273 = ssub.s32 16, 16
          %274 = vsyncadd [#allocation13], %s273
          %s276 = sshll.u32 [#allocation12], 4
          %s277 = int_to_ptr.vmem [resolvable:$true] %s276
          %279 = dma.hbm_to_vmem [thread:$0]  %s5, 16, %s277, [#allocation13]
        $region24: #{rel_partial_decoder_layer.9} parent=11 // pred_fallthru
          _
        // Predicated region
        $region25: #{rel_partial_decoder_layer.9} parent=11 // pred_check
          %p280 = pneg %p201
        $region26: #{rel_partial_decoder_layer.9} parent=11 // pred_check_branch
          %282 = sbr.rel (%p280) target = $region28
        $region27: #{rel_partial_decoder_layer.9} parent=11 // pred_region
          %s284 = ssub.s32 16, 16
          %285 = vsyncadd [#allocation13], %s284
          %s287 = sshll.u32 [#allocation14], 4
          %s288 = int_to_ptr.vmem [resolvable:$true] %s287
          %290 = dma.hbm_to_vmem [thread:$0]  %s6, 16, %s288, [#allocation13]
        $region28: #{rel_partial_decoder_layer.9} parent=11 // pred_fallthru
          _
      $region12: #{rel_partial_decoder_layer.9} parent=5 // pred_fallthru
        _
      %p291 = scmp.lt.s32.totalorder %s22, 2
      // Predicated region
      $region29: #{rel_partial_decoder_layer.9} parent=5 // pred_check
        %p292 = pneg %p291
      $region30: #{rel_partial_decoder_layer.9} parent=5 // pred_check_branch
        %294 = sbr.rel (%p292) target = $region32
      $region31: #{rel_partial_decoder_layer.9} parent=5 // pred_region
        // Predicated region
        $region33: #{rel_partial_decoder_layer.9} parent=31 // pred_check
          %p295 = pneg %p80
        $region34: #{rel_partial_decoder_layer.9} parent=31 // pred_check_branch
          %297 = sbr.rel (%p295) target = $region36
        $region35: #{rel_partial_decoder_layer.9} parent=31 // pred_region
          %s298 = sand.u32 %s22, 1
          %s299 = scalar_lea.sflag [#allocation7], %s298
          %s300 = sand.u32 %s70, 1
          %s301 = smul.addr %s300, 64
          %s302 = scalar_lea.vmem [#allocation6], %s301
          %s304 = ssub.s32 1024, 1024
          %305 = vsyncadd %s299, %s304
          %s306 = smul.addr %s30, 64
          %s307 = scalar_lea.hbm %s1, %s306
          %s308 = sshll.u32 %s302, 4
          %s309 = int_to_ptr.vmem [resolvable:$true] %s308
          %314 = dma.hbm_to_vmem [thread:$0]  %s307, 1024, %s309, %s299, 128, 64, 4
        $region36: #{rel_partial_decoder_layer.9} parent=31 // pred_fallthru
          _
        // Predicated region
        $region37: #{rel_partial_decoder_layer.9} parent=31 // pred_check
          %p315 = pneg %p106
        $region38: #{rel_partial_decoder_layer.9} parent=31 // pred_check_branch
          %317 = sbr.rel (%p315) target = $region40
        $region39: #{rel_partial_decoder_layer.9} parent=31 // pred_region
          %s318 = sand.u32 %s22, 1
          %s319 = scalar_lea.sflag [#allocation7], %s318
          %s320 = sand.u32 %s96, 1
          %s321 = scalar_lea.vmem [#allocation8], %s320
          %s323 = ssub.s32 16, 16
          %324 = vsyncadd %s319, %s323
          %s325 = smul.addr %s30, 16
          %s326 = scalar_lea.hbm %s2, %s325
          %s328 = sshll.u32 %s321, 4
          %s329 = int_to_ptr.vmem [resolvable:$true] %s328
          %331 = dma.hbm_to_vmem [thread:$0]  %s326, 16, %s329, %s319
        $region40: #{rel_partial_decoder_layer.9} parent=31 // pred_fallthru
          _
        // Predicated region
        $region41: #{rel_partial_decoder_layer.9} parent=31 // pred_check
          %p332 = pneg %p132
        $region42: #{rel_partial_decoder_layer.9} parent=31 // pred_check_branch
          %334 = sbr.rel (%p332) target = $region44
        $region43: #{rel_partial_decoder_layer.9} parent=31 // pred_region
          %s335 = sand.u32 %s22, 1
          %s336 = scalar_lea.sflag [#allocation10], %s335
          %s337 = sand.u32 %s122, 1
          %s338 = smul.addr %s337, 64
          %s339 = scalar_lea.vmem [#allocation9], %s338
          %s340 = smul.u32 16, %s30
          %s342 = ssub.s32 1024, 1024
          %343 = vsyncadd %s336, %s342
          %s344 = smul.addr %s340, 64
          %s345 = scalar_lea.hbm %s3, %s344
          %s346 = sshll.u32 %s339, 4
          %s347 = int_to_ptr.vmem [resolvable:$true] %s346
          %352 = dma.hbm_to_vmem [thread:$0]  %s345, 1024, %s347, %s336, 64, 64, 4
        $region44: #{rel_partial_decoder_layer.9} parent=31 // pred_fallthru
          _
      $region32: #{rel_partial_decoder_layer.9} parent=5 // pred_fallthru
        _
      %p353 = scmp.le.s32.totalorder 1, %s22
      %p354 = scmp.lt.s32.totalorder %s22, 3
      %p355 = pnand %p353, %p354
      %p356 = pneg %p355
      // Predicated region
      $region45: #{rel_partial_decoder_layer.9} parent=5 // pred_check
        _
      $region46: #{rel_partial_decoder_layer.9} parent=5 // pred_check_branch
        %358 = sbr.rel (%p355) target = $region48
      $region47: #{rel_partial_decoder_layer.9} parent=5 // pred_region
        %s359 = ssub.s32 %s22, 1
        // Predicated region
        $region49: #{rel_partial_decoder_layer.9} parent=47 // pred_check
          %p360 = pneg %p60
        $region50: #{rel_partial_decoder_layer.9} parent=47 // pred_check_branch
          %362 = sbr.rel (%p360) target = $region52
        $region51: #{rel_partial_decoder_layer.9} parent=47 // pred_region
          %363 = dma.done [#allocation4], 4096
        $region52: #{rel_partial_decoder_layer.9} parent=47 // pred_fallthru
          _
        %s364 = sand.u32 %s27, 1
        %s365 = scalar_lea.sflag [#allocation7], %s364
        %s366 = sand.u32 %s73, 1
        %s367 = smul.addr %s366, 64
        %s368 = scalar_lea.vmem [#allocation6], %s367
        // Predicated region
        $region53: #{rel_partial_decoder_layer.9} parent=47 // pred_check
          %p369 = pneg %p86
        $region54: #{rel_partial_decoder_layer.9} parent=47 // pred_check_branch
          %371 = sbr.rel (%p369) target = $region56
        $region55: #{rel_partial_decoder_layer.9} parent=47 // pred_region
          %372 = dma.done %s365, 1024
        $region56: #{rel_partial_decoder_layer.9} parent=47 // pred_fallthru
          _
        %s373 = sand.u32 %s27, 1
        %s374 = scalar_lea.sflag [#allocation7], %s373
        %s375 = sand.u32 %s99, 1
        %s376 = scalar_lea.vmem [#allocation8], %s375
        // Predicated region
        $region57: #{rel_partial_decoder_layer.9} parent=47 // pred_check
          %p377 = pneg %p112
        $region58: #{rel_partial_decoder_layer.9} parent=47 // pred_check_branch
          %379 = sbr.rel (%p377) target = $region60
        $region59: #{rel_partial_decoder_layer.9} parent=47 // pred_region
          %380 = dma.done %s374, 16
        $region60: #{rel_partial_decoder_layer.9} parent=47 // pred_fallthru
          _
        %s381 = sand.u32 %s27, 1
        %s382 = scalar_lea.sflag [#allocation10], %s381
        %s383 = sand.u32 %s125, 1
        %s384 = smul.addr %s383, 64
        %s385 = scalar_lea.vmem [#allocation9], %s384
        // Predicated region
        $region61: #{rel_partial_decoder_layer.9} parent=47 // pred_check
          %p386 = pneg %p138
        $region62: #{rel_partial_decoder_layer.9} parent=47 // pred_check_branch
          %388 = sbr.rel (%p386) target = $region64
        $region63: #{rel_partial_decoder_layer.9} parent=47 // pred_region
          %389 = dma.done %s382, 1024
        $region64: #{rel_partial_decoder_layer.9} parent=47 // pred_fallthru
          _
        // Predicated region
        $region65: #{rel_partial_decoder_layer.9} parent=47 // pred_check
          %p390 = pneg %p159
        $region66: #{rel_partial_decoder_layer.9} parent=47 // pred_check_branch
          %392 = sbr.rel (%p390) target = $region68
        $region67: #{rel_partial_decoder_layer.9} parent=47 // pred_region
          %393 = dma.done [#allocation10], 16
        $region68: #{rel_partial_decoder_layer.9} parent=47 // pred_fallthru
          _
        // Predicated region
        $region69: #{rel_partial_decoder_layer.9} parent=47 // pred_check
          %p394 = pneg %p180
        $region70: #{rel_partial_decoder_layer.9} parent=47 // pred_check_branch
          %396 = sbr.rel (%p394) target = $region72
        $region71: #{rel_partial_decoder_layer.9} parent=47 // pred_region
          %397 = dma.done [#allocation13], 16
        $region72: #{rel_partial_decoder_layer.9} parent=47 // pred_fallthru
          _
        // Predicated region
        $region73: #{rel_partial_decoder_layer.9} parent=47 // pred_check
          %p398 = pneg %p201
        $region74: #{rel_partial_decoder_layer.9} parent=47 // pred_check_branch
          %400 = sbr.rel (%p398) target = $region76
        $region75: #{rel_partial_decoder_layer.9} parent=47 // pred_region
          %401 = dma.done [#allocation13], 16
        $region76: #{rel_partial_decoder_layer.9} parent=47 // pred_fallthru
          _
        %p402 = pneg %p60
        %p403 = pneg %p57
        %s404 = sand.u32 %s27, 1
        %s405 = scalar_lea.sflag [#allocation7], %s404
        %s406 = sand.u32 %s73, 1
        %s407 = smul.addr %s406, 64
        %s408 = scalar_lea.vmem [#allocation6], %s407
        %p409 = pneg %p86
        %p410 = pneg %p83
        %s411 = sand.u32 %s27, 1
        %s412 = scalar_lea.sflag [#allocation7], %s411
        %s413 = sand.u32 %s99, 1
        %s414 = scalar_lea.vmem [#allocation8], %s413
        %p415 = pneg %p112
        %p416 = pneg %p109
        %s417 = sand.u32 %s27, 1
        %s418 = scalar_lea.sflag [#allocation10], %s417
        %s419 = sand.u32 %s125, 1
        %s420 = smul.addr %s419, 64
        %s421 = scalar_lea.vmem [#allocation9], %s420
        %p422 = pneg %p138
        %p423 = pneg %p135
        %p424 = pneg %p159
        %p425 = pneg %p156
        %p426 = pneg %p180
        %p427 = pneg %p177
        %p428 = pneg %p201
        %p429 = pneg %p198
        %p430 = pneg %p227
        %p431 = pneg %p224
        %s432 = smul.u32 32, %s31
        %s433 = smul.u32 16, %s32
        %s434 = smul.u32 32, %s31
        %p436 = scmp.eq.s32.totalorder %s32, 0
        // Predicated region
        $region77: #{rel_partial_decoder_layer.9} parent=47 // pred_check
          %p437 = pneg %p436
        $region78: #{rel_partial_decoder_layer.9} parent=47 // pred_check_branch
          %439 = sbr.rel (%p437) target = $region80
        $region79: #{rel_partial_decoder_layer.9} parent=47 // pred_region
          %440 = vst [vmem:[#allocation2] sm:$0xff] 0.0
          %441 = vst [vmem:[#allocation2 + $0x8] sm:$0xff] 0.0
          %442 = vst [vmem:[#allocation2 + $0x10] sm:$0xff] 0.0
          %443 = vst [vmem:[#allocation2 + $0x18] sm:$0xff] 0.0
          %444 = vst [vmem:[#allocation2 + $0x20] sm:$0xff] 0.0
          %445 = vst [vmem:[#allocation2 + $0x28] sm:$0xff] 0.0
          %446 = vst [vmem:[#allocation2 + $0x30] sm:$0xff] 0.0
          %447 = vst [vmem:[#allocation2 + $0x38] sm:$0xff] 0.0
          %448 = vst [vmem:[#allocation2 + $0x40] sm:$0xff] 0.0
          %449 = vst [vmem:[#allocation2 + $0x48] sm:$0xff] 0.0
          %450 = vst [vmem:[#allocation2 + $0x50] sm:$0xff] 0.0
          %451 = vst [vmem:[#allocation2 + $0x58] sm:$0xff] 0.0
          %452 = vst [vmem:[#allocation2 + $0x60] sm:$0xff] 0.0
          %453 = vst [vmem:[#allocation2 + $0x68] sm:$0xff] 0.0
          %454 = vst [vmem:[#allocation2 + $0x70] sm:$0xff] 0.0
          %455 = vst [vmem:[#allocation2 + $0x78] sm:$0xff] 0.0
          %456 = vst [vmem:[#allocation2 + $0x80] sm:$0xff] 0.0
          %457 = vst [vmem:[#allocation2 + $0x88] sm:$0xff] 0.0
          %458 = vst [vmem:[#allocation2 + $0x90] sm:$0xff] 0.0
          %459 = vst [vmem:[#allocation2 + $0x98] sm:$0xff] 0.0
          %460 = vst [vmem:[#allocation2 + $0xa0] sm:$0xff] 0.0
          %461 = vst [vmem:[#allocation2 + $0xa8] sm:$0xff] 0.0
          %462 = vst [vmem:[#allocation2 + $0xb0] sm:$0xff] 0.0
          %463 = vst [vmem:[#allocation2 + $0xb8] sm:$0xff] 0.0
          %464 = vst [vmem:[#allocation2 + $0xc0] sm:$0xff] 0.0
          %465 = vst [vmem:[#allocation2 + $0xc8] sm:$0xff] 0.0
          %466 = vst [vmem:[#allocation2 + $0xd0] sm:$0xff] 0.0
          %467 = vst [vmem:[#allocation2 + $0xd8] sm:$0xff] 0.0
          %468 = vst [vmem:[#allocation2 + $0xe0] sm:$0xff] 0.0
          %469 = vst [vmem:[#allocation2 + $0xe8] sm:$0xff] 0.0
          %470 = vst [vmem:[#allocation2 + $0xf0] sm:$0xff] 0.0
          %471 = vst [vmem:[#allocation2 + $0xf8] sm:$0xff] 0.0
        $region80: #{rel_partial_decoder_layer.9} parent=47 // pred_fallthru
          _
        %v472 = vld [vmem:[#allocation3] sm:$0xff]
        %v473 = vld [vmem:[#allocation3 + $0x8] sm:$0xff]
        %v474 = vld [vmem:[#allocation3 + $0x10] sm:$0xff]
        %v475 = vld [vmem:[#allocation3 + $0x18] sm:$0xff]
        %v476 = vld [vmem:[#allocation3 + $0x20] sm:$0xff]
        %v477 = vld [vmem:[#allocation3 + $0x28] sm:$0xff]
        %v478 = vld [vmem:[#allocation3 + $0x30] sm:$0xff]
        %v479 = vld [vmem:[#allocation3 + $0x38] sm:$0xff]
        %v480 = vld [vmem:[#allocation3 + $0x40] sm:$0xff]
        %v481 = vld [vmem:[#allocation3 + $0x48] sm:$0xff]
        %v482 = vld [vmem:[#allocation3 + $0x50] sm:$0xff]
        %v483 = vld [vmem:[#allocation3 + $0x58] sm:$0xff]
        %v484 = vld [vmem:[#allocation3 + $0x60] sm:$0xff]
        %v485 = vld [vmem:[#allocation3 + $0x68] sm:$0xff]
        %v486 = vld [vmem:[#allocation3 + $0x70] sm:$0xff]
        %v487 = vld [vmem:[#allocation3 + $0x78] sm:$0xff]
        %v488 = vld [vmem:[#allocation3 + $0x80] sm:$0xff]
        %v489 = vld [vmem:[#allocation3 + $0x88] sm:$0xff]
        %v490 = vld [vmem:[#allocation3 + $0x90] sm:$0xff]
        %v491 = vld [vmem:[#allocation3 + $0x98] sm:$0xff]
        %v492 = vld [vmem:[#allocation3 + $0xa0] sm:$0xff]
        %v493 = vld [vmem:[#allocation3 + $0xa8] sm:$0xff]
        %v494 = vld [vmem:[#allocation3 + $0xb0] sm:$0xff]
        %v495 = vld [vmem:[#allocation3 + $0xb8] sm:$0xff]
        %v496 = vld [vmem:[#allocation3 + $0xc0] sm:$0xff]
        %v497 = vld [vmem:[#allocation3 + $0xc8] sm:$0xff]
        %v498 = vld [vmem:[#allocation3 + $0xd0] sm:$0xff]
        %v499 = vld [vmem:[#allocation3 + $0xd8] sm:$0xff]
        %v500 = vld [vmem:[#allocation3 + $0xe0] sm:$0xff]
        %v501 = vld [vmem:[#allocation3 + $0xe8] sm:$0xff]
        %v502 = vld [vmem:[#allocation3 + $0xf0] sm:$0xff]
        %v503 = vld [vmem:[#allocation3 + $0xf8] sm:$0xff]
        %v504 = vpack.c.bf16 %v473, %v472
        %v505 = vpack.c.bf16 %v475, %v474
        %v506 = vpack.c.bf16 %v477, %v476
        %v507 = vpack.c.bf16 %v479, %v478
        %v508 = vpack.c.bf16 %v481, %v480
        %v509 = vpack.c.bf16 %v483, %v482
        %v510 = vpack.c.bf16 %v485, %v484
        %v511 = vpack.c.bf16 %v487, %v486
        %v512 = vpack.c.bf16 %v489, %v488
        %v513 = vpack.c.bf16 %v491, %v490
        %v514 = vpack.c.bf16 %v493, %v492
        %v515 = vpack.c.bf16 %v495, %v494
        %v516 = vpack.c.bf16 %v497, %v496
        %v517 = vpack.c.bf16 %v499, %v498
        %v518 = vpack.c.bf16 %v501, %v500
        %v519 = vpack.c.bf16 %v503, %v502
        %v520 = vld [vmem:[%s368] sm:$0xf]
        %v521 = vld [vmem:[%s368 + $0x4] sm:$0xf]
        %v522 = vld [vmem:[%s368 + $0x8] sm:$0xf]
        %v523 = vld [vmem:[%s368 + $0xc] sm:$0xf]
        %v524 = vld [vmem:[%s368 + $0x10] sm:$0xf]
        %v525 = vld [vmem:[%s368 + $0x14] sm:$0xf]
        %v526 = vld [vmem:[%s368 + $0x18] sm:$0xf]
        %v527 = vld [vmem:[%s368 + $0x1c] sm:$0xf]
        %v528 = vld [vmem:[%s368 + $0x20] sm:$0xf]
        %v529 = vld [vmem:[%s368 + $0x24] sm:$0xf]
        %v530 = vld [vmem:[%s368 + $0x28] sm:$0xf]
        %v531 = vld [vmem:[%s368 + $0x2c] sm:$0xf]
        %v532 = vld [vmem:[%s368 + $0x30] sm:$0xf]
        %v533 = vld [vmem:[%s368 + $0x34] sm:$0xf]
        %v534 = vld [vmem:[%s368 + $0x38] sm:$0xf]
        %v535 = vld [vmem:[%s368 + $0x3c] sm:$0xf]
        %v536 = vld [vmem:[%s376] sm:$0x1]
        %v538 = vlaneseq
        %v539 = vshrl.u32 %v538, 7
        %v540 = vsub.s32 0, %v539
        %v541 = vrot.slane %v536, %v540
        %v559 = vunpack.c.l.b16 %v520
        %v560 = vunpack.c.l.b16 %v521
        %v561 = vunpack.c.l.b16 %v522
        %v562 = vunpack.c.l.b16 %v523
        %v563 = vunpack.c.l.b16 %v524
        %v564 = vunpack.c.l.b16 %v525
        %v565 = vunpack.c.l.b16 %v526
        %v566 = vunpack.c.l.b16 %v527
        %v567 = vunpack.c.l.b16 %v528
        %v568 = vunpack.c.l.b16 %v529
        %v569 = vunpack.c.l.b16 %v530
        %v570 = vunpack.c.l.b16 %v531
        %v571 = vunpack.c.l.b16 %v532
        %v572 = vunpack.c.l.b16 %v533
        %v573 = vunpack.c.l.b16 %v534
        %v574 = vunpack.c.l.b16 %v535
        %v575 = vpack.c.b16 %v560, %v559
        %v576 = vpack.c.b16 %v562, %v561
        %v577 = vpack.c.b16 %v564, %v563
        %v578 = vpack.c.b16 %v566, %v565
        %v579 = vpack.c.b16 %v568, %v567
        %v580 = vpack.c.b16 %v570, %v569
        %v581 = vpack.c.b16 %v572, %v571
        %v582 = vpack.c.b16 %v574, %v573
        %591 = vmatprep.subr.bf16.mxu0 0
        %592 = vmatpush1.bf16.msra.mxu0 %v575
        %593 = vmatprep.subr.bf16.mxu0 0
        %594 = vmatpush1.bf16.msra.mxu0 %v576
        %595 = vmatprep.subr.bf16.mxu0 0
        %596 = vmatpush1.bf16.msra.mxu0 %v577
        %597 = vmatprep.subr.bf16.mxu0 0
        %598 = vmatpush1.bf16.msra.mxu0 %v578
        %599 = vmatprep.subr.bf16.mxu0 0
        %600 = vmatpush1.bf16.msra.mxu0 %v579
        %601 = vmatprep.subr.bf16.mxu0 0
        %602 = vmatpush1.bf16.msra.mxu0 %v580
        %603 = vmatprep.subr.bf16.mxu0 0
        %604 = vmatpush1.bf16.msra.mxu0 %v581
        %605 = vmatprep.subr.bf16.mxu0 0
        %606 = vmatpush1.bf16.msra.mxu0 %v582
        %607 = vmatprep.subr.bf16.mxu0 0
        %608 = vmatpush1.bf16.msra.mxu0 0
        %609 = vmatprep.subr.bf16.mxu0 0
        %610 = vmatpush1.bf16.msra.mxu0 0
        %611 = vmatprep.subr.bf16.mxu0 0
        %612 = vmatpush1.bf16.msra.mxu0 0
        %613 = vmatprep.subr.bf16.mxu0 0
        %614 = vmatpush1.bf16.msra.mxu0 0
        %615 = vmatprep.subr.bf16.mxu0 0
        %616 = vmatpush1.bf16.msra.mxu0 0
        %617 = vmatprep.subr.bf16.mxu0 0
        %618 = vmatpush1.bf16.msra.mxu0 0
        %619 = vmatprep.subr.bf16.mxu0 0
        %620 = vmatpush1.bf16.msra.mxu0 0
        %621 = vmatprep.subr.bf16.mxu0 0
        %622 = vmatpush1.bf16.msra.mxu0 0
        %623 = vmatprep.mubr.bf16.mxu0 0
        %624 = vmatmul.mubr.bf16.gmra.mrb[0].mxu0 %v504
        %v625 = vpop.f32.mrb[0].mxu0
        %v626 = vadd.f32 %v541, %v625
        %v627 = vpop.f32.mrb[0].mxu0
        %v628 = vpop.f32.mrb[0].mxu0
        %v629 = vadd.f32 %v541, %v628
        %v630 = vpop.f32.mrb[0].mxu0
        %631 = vmatprep.mubr.bf16.mxu0 0
        %632 = vmatmul.mubr.bf16.gmra.mrb[0].mxu0 %v505
        %v633 = vpop.f32.mrb[0].mxu0
        %v634 = vadd.f32 %v541, %v633
        %v635 = vpop.f32.mrb[0].mxu0
        %v636 = vpop.f32.mrb[0].mxu0
        %v637 = vadd.f32 %v541, %v636
        %v638 = vpop.f32.mrb[0].mxu0
        %639 = vmatprep.mubr.bf16.mxu0 0
        %640 = vmatmul.mubr.bf16.gmra.mrb[0].mxu0 %v506
        %v641 = vpop.f32.mrb[0].mxu0
        %v642 = vadd.f32 %v541, %v641
        %v643 = vpop.f32.mrb[0].mxu0
        %v644 = vpop.f32.mrb[0].mxu0
        %v645 = vadd.f32 %v541, %v644
        %v646 = vpop.f32.mrb[0].mxu0
        %647 = vmatprep.mubr.bf16.mxu0 0
        %648 = vmatmul.mubr.bf16.gmra.mrb[0].mxu0 %v507
        %v649 = vpop.f32.mrb[0].mxu0
        %v650 = vadd.f32 %v541, %v649
        %v651 = vpop.f32.mrb[0].mxu0
        %v652 = vpop.f32.mrb[0].mxu0
        %v653 = vadd.f32 %v541, %v652
        %v654 = vpop.f32.mrb[0].mxu0
        %655 = vmatprep.mubr.bf16.mxu0 0
        %656 = vmatmul.mubr.bf16.gmra.mrb[0].mxu0 %v508
        %v657 = vpop.f32.mrb[0].mxu0
        %v658 = vadd.f32 %v541, %v657
        %v659 = vpop.f32.mrb[0].mxu0
        %v660 = vpop.f32.mrb[0].mxu0
        %v661 = vadd.f32 %v541, %v660
        %v662 = vpop.f32.mrb[0].mxu0
        %663 = vmatprep.mubr.bf16.mxu0 0
        %664 = vmatmul.mubr.bf16.gmra.mrb[0].mxu0 %v509
        %v665 = vpop.f32.mrb[0].mxu0
        %v666 = vadd.f32 %v541, %v665
        %v667 = vpop.f32.mrb[0].mxu0
        %v668 = vpop.f32.mrb[0].mxu0
        %v669 = vadd.f32 %v541, %v668
        %v670 = vpop.f32.mrb[0].mxu0
        %671 = vmatprep.mubr.bf16.mxu0 0
        %672 = vmatmul.mubr.bf16.gmra.mrb[0].mxu0 %v510
        %v673 = vpop.f32.mrb[0].mxu0
        %v674 = vadd.f32 %v541, %v673
        %v675 = vpop.f32.mrb[0].mxu0
        %v676 = vpop.f32.mrb[0].mxu0
        %v677 = vadd.f32 %v541, %v676
        %v678 = vpop.f32.mrb[0].mxu0
        %679 = vmatprep.mubr.bf16.mxu0 0
        %680 = vmatmul.mubr.bf16.gmra.mrb[0].mxu0 %v511
        %v681 = vpop.f32.mrb[0].mxu0
        %v682 = vadd.f32 %v541, %v681
        %v683 = vpop.f32.mrb[0].mxu0
        %v684 = vpop.f32.mrb[0].mxu0
        %v685 = vadd.f32 %v541, %v684
        %v686 = vpop.f32.mrb[0].mxu0
        %687 = vmatprep.mubr.bf16.mxu0 0
        %688 = vmatmul.mubr.bf16.gmra.mrb[0].mxu0 %v512
        %v689 = vpop.f32.mrb[0].mxu0
        %v690 = vadd.f32 %v541, %v689
        %v691 = vpop.f32.mrb[0].mxu0
        %v692 = vpop.f32.mrb[0].mxu0
        %v693 = vadd.f32 %v541, %v692
        %v694 = vpop.f32.mrb[0].mxu0
        %695 = vmatprep.mubr.bf16.mxu0 0
        %696 = vmatmul.mubr.bf16.gmra.mrb[0].mxu0 %v513
        %v697 = vpop.f32.mrb[0].mxu0
        %v698 = vadd.f32 %v541, %v697
        %v699 = vpop.f32.mrb[0].mxu0
        %v700 = vpop.f32.mrb[0].mxu0
        %v701 = vadd.f32 %v541, %v700
        %v702 = vpop.f32.mrb[0].mxu0
        %703 = vmatprep.mubr.bf16.mxu0 0
        %704 = vmatmul.mubr.bf16.gmra.mrb[0].mxu0 %v514
        %v705 = vpop.f32.mrb[0].mxu0
        %v706 = vadd.f32 %v541, %v705
        %v707 = vpop.f32.mrb[0].mxu0
        %v708 = vpop.f32.mrb[0].mxu0
        %v709 = vadd.f32 %v541, %v708
        %v710 = vpop.f32.mrb[0].mxu0
        %711 = vmatprep.mubr.bf16.mxu0 0
        %712 = vmatmul.mubr.bf16.gmra.mrb[0].mxu0 %v515
        %v713 = vpop.f32.mrb[0].mxu0
        %v714 = vadd.f32 %v541, %v713
        %v715 = vpop.f32.mrb[0].mxu0
        %v716 = vpop.f32.mrb[0].mxu0
        %v717 = vadd.f32 %v541, %v716
        %v718 = vpop.f32.mrb[0].mxu0
        %719 = vmatprep.mubr.bf16.mxu0 0
        %720 = vmatmul.mubr.bf16.gmra.mrb[0].mxu0 %v516
        %v721 = vpop.f32.mrb[0].mxu0
        %v722 = vadd.f32 %v541, %v721
        %v723 = vpop.f32.mrb[0].mxu0
        %v724 = vpop.f32.mrb[0].mxu0
        %v725 = vadd.f32 %v541, %v724
        %v726 = vpop.f32.mrb[0].mxu0
        %727 = vmatprep.mubr.bf16.mxu0 0
        %728 = vmatmul.mubr.bf16.gmra.mrb[0].mxu0 %v517
        %v729 = vpop.f32.mrb[0].mxu0
        %v730 = vadd.f32 %v541, %v729
        %v731 = vpop.f32.mrb[0].mxu0
        %v732 = vpop.f32.mrb[0].mxu0
        %v733 = vadd.f32 %v541, %v732
        %v734 = vpop.f32.mrb[0].mxu0
        %735 = vmatprep.mubr.bf16.mxu0 0
        %736 = vmatmul.mubr.bf16.gmra.mrb[0].mxu0 %v518
        %v737 = vpop.f32.mrb[0].mxu0
        %v738 = vadd.f32 %v541, %v737
        %v739 = vpop.f32.mrb[0].mxu0
        %v740 = vpop.f32.mrb[0].mxu0
        %v741 = vadd.f32 %v541, %v740
        %v742 = vpop.f32.mrb[0].mxu0
        %743 = vmatprep.mubr.bf16.mxu0 0
        %744 = vmatmul.mubr.bf16.gmra.mrb[0].mxu0 %v519
        %v745 = vpop.f32.mrb[0].mxu0
        %v746 = vadd.f32 %v541, %v745
        %v747 = vpop.f32.mrb[0].mxu0
        %v748 = vpop.f32.mrb[0].mxu0
        %v749 = vadd.f32 %v541, %v748
        %v750 = vpop.f32.mrb[0].mxu0
        %751 = vdwg.mxu0
        %v752 = vmax.f32 %v626, 0.0
        %v753 = vmax.f32 %v629, 0.0
        %v754 = vmax.f32 %v634, 0.0
        %v755 = vmax.f32 %v637, 0.0
        %v756 = vmax.f32 %v642, 0.0
        %v757 = vmax.f32 %v645, 0.0
        %v758 = vmax.f32 %v650, 0.0
        %v759 = vmax.f32 %v653, 0.0
        %v760 = vmax.f32 %v658, 0.0
        %v761 = vmax.f32 %v661, 0.0
        %v762 = vmax.f32 %v666, 0.0
        %v763 = vmax.f32 %v669, 0.0
        %v764 = vmax.f32 %v674, 0.0
        %v765 = vmax.f32 %v677, 0.0
        %v766 = vmax.f32 %v682, 0.0
        %v767 = vmax.f32 %v685, 0.0
        %v768 = vmax.f32 %v690, 0.0
        %v769 = vmax.f32 %v693, 0.0
        %v770 = vmax.f32 %v698, 0.0
        %v771 = vmax.f32 %v701, 0.0
        %v772 = vmax.f32 %v706, 0.0
        %v773 = vmax.f32 %v709, 0.0
        %v774 = vmax.f32 %v714, 0.0
        %v775 = vmax.f32 %v717, 0.0
        %v776 = vmax.f32 %v722, 0.0
        %v777 = vmax.f32 %v725, 0.0
        %v778 = vmax.f32 %v730, 0.0
        %v779 = vmax.f32 %v733, 0.0
        %v780 = vmax.f32 %v738, 0.0
        %v781 = vmax.f32 %v741, 0.0
        %v782 = vmax.f32 %v746, 0.0
        %v783 = vmax.f32 %v749, 0.0
        %v784 = vld [vmem:[#allocation2] sm:$0xff]
        %v785 = vld [vmem:[#allocation2 + $0x8] sm:$0xff]
        %v786 = vld [vmem:[#allocation2 + $0x10] sm:$0xff]
        %v787 = vld [vmem:[#allocation2 + $0x18] sm:$0xff]
        %v788 = vld [vmem:[#allocation2 + $0x20] sm:$0xff]
        %v789 = vld [vmem:[#allocation2 + $0x28] sm:$0xff]
        %v790 = vld [vmem:[#allocation2 + $0x30] sm:$0xff]
        %v791 = vld [vmem:[#allocation2 + $0x38] sm:$0xff]
        %v792 = vld [vmem:[#allocation2 + $0x40] sm:$0xff]
        %v793 = vld [vmem:[#allocation2 + $0x48] sm:$0xff]
        %v794 = vld [vmem:[#allocation2 + $0x50] sm:$0xff]
        %v795 = vld [vmem:[#allocation2 + $0x58] sm:$0xff]
        %v796 = vld [vmem:[#allocation2 + $0x60] sm:$0xff]
        %v797 = vld [vmem:[#allocation2 + $0x68] sm:$0xff]
        %v798 = vld [vmem:[#allocation2 + $0x70] sm:$0xff]
        %v799 = vld [vmem:[#allocation2 + $0x78] sm:$0xff]
        %v800 = vld [vmem:[#allocation2 + $0x80] sm:$0xff]
        %v801 = vld [vmem:[#allocation2 + $0x88] sm:$0xff]
        %v802 = vld [vmem:[#allocation2 + $0x90] sm:$0xff]
        %v803 = vld [vmem:[#allocation2 + $0x98] sm:$0xff]
        %v804 = vld [vmem:[#allocation2 + $0xa0] sm:$0xff]
        %v805 = vld [vmem:[#allocation2 + $0xa8] sm:$0xff]
        %v806 = vld [vmem:[#allocation2 + $0xb0] sm:$0xff]
        %v807 = vld [vmem:[#allocation2 + $0xb8] sm:$0xff]
        %v808 = vld [vmem:[#allocation2 + $0xc0] sm:$0xff]
        %v809 = vld [vmem:[#allocation2 + $0xc8] sm:$0xff]
        %v810 = vld [vmem:[#allocation2 + $0xd0] sm:$0xff]
        %v811 = vld [vmem:[#allocation2 + $0xd8] sm:$0xff]
        %v812 = vld [vmem:[#allocation2 + $0xe0] sm:$0xff]
        %v813 = vld [vmem:[#allocation2 + $0xe8] sm:$0xff]
        %v814 = vld [vmem:[#allocation2 + $0xf0] sm:$0xff]
        %v815 = vld [vmem:[#allocation2 + $0xf8] sm:$0xff]
        %v816 = vpack.c.bf16 %v753, %v752
        %v817 = vpack.c.bf16 %v755, %v754
        %v818 = vpack.c.bf16 %v757, %v756
        %v819 = vpack.c.bf16 %v759, %v758
        %v820 = vpack.c.bf16 %v761, %v760
        %v821 = vpack.c.bf16 %v763, %v762
        %v822 = vpack.c.bf16 %v765, %v764
        %v823 = vpack.c.bf16 %v767, %v766
        %v824 = vpack.c.bf16 %v769, %v768
        %v825 = vpack.c.bf16 %v771, %v770
        %v826 = vpack.c.bf16 %v773, %v772
        %v827 = vpack.c.bf16 %v775, %v774
        %v828 = vpack.c.bf16 %v777, %v776
        %v829 = vpack.c.bf16 %v779, %v778
        %v830 = vpack.c.bf16 %v781, %v780
        %v831 = vpack.c.bf16 %v783, %v782
        %v832 = vld [vmem:[%s385] sm:$0xf]
        %v833 = vld [vmem:[%s385 + $0x4] sm:$0xf]
        %v834 = vld [vmem:[%s385 + $0x8] sm:$0xf]
        %v835 = vld [vmem:[%s385 + $0xc] sm:$0xf]
        %v836 = vld [vmem:[%s385 + $0x10] sm:$0xf]
        %v837 = vld [vmem:[%s385 + $0x14] sm:$0xf]
        %v838 = vld [vmem:[%s385 + $0x18] sm:$0xf]
        %v839 = vld [vmem:[%s385 + $0x1c] sm:$0xf]
        %v840 = vld [vmem:[%s385 + $0x20] sm:$0xf]
        %v841 = vld [vmem:[%s385 + $0x24] sm:$0xf]
        %v842 = vld [vmem:[%s385 + $0x28] sm:$0xf]
        %v843 = vld [vmem:[%s385 + $0x2c] sm:$0xf]
        %v844 = vld [vmem:[%s385 + $0x30] sm:$0xf]
        %v845 = vld [vmem:[%s385 + $0x34] sm:$0xf]
        %v846 = vld [vmem:[%s385 + $0x38] sm:$0xf]
        %v847 = vld [vmem:[%s385 + $0x3c] sm:$0xf]
        %v864 = vunpack.c.l.b16 %v832
        %v865 = vunpack.c.l.b16 %v833
        %v866 = vunpack.c.l.b16 %v834
        %v867 = vunpack.c.l.b16 %v835
        %v868 = vunpack.c.l.b16 %v836
        %v869 = vunpack.c.l.b16 %v837
        %v870 = vunpack.c.l.b16 %v838
        %v871 = vunpack.c.l.b16 %v839
        %v872 = vunpack.c.l.b16 %v840
        %v873 = vunpack.c.l.b16 %v841
        %v874 = vunpack.c.l.b16 %v842
        %v875 = vunpack.c.l.b16 %v843
        %v876 = vunpack.c.l.b16 %v844
        %v877 = vunpack.c.l.b16 %v845
        %v878 = vunpack.c.l.b16 %v846
        %v879 = vunpack.c.l.b16 %v847
        %v880 = vpack.c.b16 %v865, %v864
        %v881 = vpack.c.b16 %v867, %v866
        %v882 = vpack.c.b16 %v869, %v868
        %v883 = vpack.c.b16 %v871, %v870
        %v884 = vpack.c.b16 %v873, %v872
        %v885 = vpack.c.b16 %v875, %v874
        %v886 = vpack.c.b16 %v877, %v876
        %v887 = vpack.c.b16 %v879, %v878
        %896 = vmatprep.subr.bf16.mxu0 0
        %897 = vmatpush1.bf16.msra.mxu0 %v880
        %898 = vmatprep.subr.bf16.mxu0 0
        %899 = vmatpush1.bf16.msra.mxu0 %v881
        %900 = vmatprep.subr.bf16.mxu0 0
        %901 = vmatpush1.bf16.msra.mxu0 %v882
        %902 = vmatprep.subr.bf16.mxu0 0
        %903 = vmatpush1.bf16.msra.mxu0 %v883
        %904 = vmatprep.subr.bf16.mxu0 0
        %905 = vmatpush1.bf16.msra.mxu0 %v884
        %906 = vmatprep.subr.bf16.mxu0 0
        %907 = vmatpush1.bf16.msra.mxu0 %v885
        %908 = vmatprep.subr.bf16.mxu0 0
        %909 = vmatpush1.bf16.msra.mxu0 %v886
        %910 = vmatprep.subr.bf16.mxu0 0
        %911 = vmatpush1.bf16.msra.mxu0 %v887
        %912 = vmatprep.subr.bf16.mxu0 0
        %913 = vmatpush1.bf16.msra.mxu0 0
        %914 = vmatprep.subr.bf16.mxu0 0
        %915 = vmatpush1.bf16.msra.mxu0 0
        %916 = vmatprep.subr.bf16.mxu0 0
        %917 = vmatpush1.bf16.msra.mxu0 0
        %918 = vmatprep.subr.bf16.mxu0 0
        %919 = vmatpush1.bf16.msra.mxu0 0
        %920 = vmatprep.subr.bf16.mxu0 0
        %921 = vmatpush1.bf16.msra.mxu0 0
        %922 = vmatprep.subr.bf16.mxu0 0
        %923 = vmatpush1.bf16.msra.mxu0 0
        %924 = vmatprep.subr.bf16.mxu0 0
        %925 = vmatpush1.bf16.msra.mxu0 0
        %926 = vmatprep.subr.bf16.mxu0 0
        %927 = vmatpush1.bf16.msra.mxu0 0
        %928 = vmatprep.mubr.bf16.mxu0 0
        %929 = vmatmul.mubr.bf16.gmra.mrb[0].mxu0 %v816
        %v930 = vpop.f32.mrb[0].mxu0
        %v931 = vadd.f32 0.0, %v930
        %v932 = vpop.f32.mrb[0].mxu0
        %v933 = vpop.f32.mrb[0].mxu0
        %v934 = vadd.f32 0.0, %v933
        %v935 = vpop.f32.mrb[0].mxu0
        %936 = vmatprep.mubr.bf16.mxu0 0
        %937 = vmatmul.mubr.bf16.gmra.mrb[0].mxu0 %v817
        %v938 = vpop.f32.mrb[0].mxu0
        %v939 = vadd.f32 0.0, %v938
        %v940 = vpop.f32.mrb[0].mxu0
        %v941 = vpop.f32.mrb[0].mxu0
        %v942 = vadd.f32 0.0, %v941
        %v943 = vpop.f32.mrb[0].mxu0
        %944 = vmatprep.mubr.bf16.mxu0 0
        %945 = vmatmul.mubr.bf16.gmra.mrb[0].mxu0 %v818
        %v946 = vpop.f32.mrb[0].mxu0
        %v947 = vadd.f32 0.0, %v946
        %v948 = vpop.f32.mrb[0].mxu0
        %v949 = vpop.f32.mrb[0].mxu0
        %v950 = vadd.f32 0.0, %v949
        %v951 = vpop.f32.mrb[0].mxu0
        %952 = vmatprep.mubr.bf16.mxu0 0
        %953 = vmatmul.mubr.bf16.gmra.mrb[0].mxu0 %v819
        %v954 = vpop.f32.mrb[0].mxu0
        %v955 = vadd.f32 0.0, %v954
        %v956 = vpop.f32.mrb[0].mxu0
        %v957 = vpop.f32.mrb[0].mxu0
        %v958 = vadd.f32 0.0, %v957
        %v959 = vpop.f32.mrb[0].mxu0
        %960 = vmatprep.mubr.bf16.mxu0 0
        %961 = vmatmul.mubr.bf16.gmra.mrb[0].mxu0 %v820
        %v962 = vpop.f32.mrb[0].mxu0
        %v963 = vadd.f32 0.0, %v962
        %v964 = vpop.f32.mrb[0].mxu0
        %v965 = vpop.f32.mrb[0].mxu0
        %v966 = vadd.f32 0.0, %v965
        %v967 = vpop.f32.mrb[0].mxu0
        %968 = vmatprep.mubr.bf16.mxu0 0
        %969 = vmatmul.mubr.bf16.gmra.mrb[0].mxu0 %v821
        %v970 = vpop.f32.mrb[0].mxu0
        %v971 = vadd.f32 0.0, %v970
        %v972 = vpop.f32.mrb[0].mxu0
        %v973 = vpop.f32.mrb[0].mxu0
        %v974 = vadd.f32 0.0, %v973
        %v975 = vpop.f32.mrb[0].mxu0
        %976 = vmatprep.mubr.bf16.mxu0 0
        %977 = vmatmul.mubr.bf16.gmra.mrb[0].mxu0 %v822
        %v978 = vpop.f32.mrb[0].mxu0
        %v979 = vadd.f32 0.0, %v978
        %v980 = vpop.f32.mrb[0].mxu0
        %v981 = vpop.f32.mrb[0].mxu0
        %v982 = vadd.f32 0.0, %v981
        %v983 = vpop.f32.mrb[0].mxu0
        %984 = vmatprep.mubr.bf16.mxu0 0
        %985 = vmatmul.mubr.bf16.gmra.mrb[0].mxu0 %v823
        %v986 = vpop.f32.mrb[0].mxu0
        %v987 = vadd.f32 0.0, %v986
        %v988 = vpop.f32.mrb[0].mxu0
        %v989 = vpop.f32.mrb[0].mxu0
        %v990 = vadd.f32 0.0, %v989
        %v991 = vpop.f32.mrb[0].mxu0
        %992 = vmatprep.mubr.bf16.mxu0 0
        %993 = vmatmul.mubr.bf16.gmra.mrb[0].mxu0 %v824
        %v994 = vpop.f32.mrb[0].mxu0
        %v995 = vadd.f32 0.0, %v994
        %v996 = vpop.f32.mrb[0].mxu0
        %v997 = vpop.f32.mrb[0].mxu0
        %v998 = vadd.f32 0.0, %v997
        %v999 = vpop.f32.mrb[0].mxu0
        %1000 = vmatprep.mubr.bf16.mxu0 0
        %1001 = vmatmul.mubr.bf16.gmra.mrb[0].mxu0 %v825
        %v1002 = vpop.f32.mrb[0].mxu0
        %v1003 = vadd.f32 0.0, %v1002
        %v1004 = vpop.f32.mrb[0].mxu0
        %v1005 = vpop.f32.mrb[0].mxu0
        %v1006 = vadd.f32 0.0, %v1005
        %v1007 = vpop.f32.mrb[0].mxu0
        %1008 = vmatprep.mubr.bf16.mxu0 0
        %1009 = vmatmul.mubr.bf16.gmra.mrb[0].mxu0 %v826
        %v1010 = vpop.f32.mrb[0].mxu0
        %v1011 = vadd.f32 0.0, %v1010
        %v1012 = vpop.f32.mrb[0].mxu0
        %v1013 = vpop.f32.mrb[0].mxu0
        %v1014 = vadd.f32 0.0, %v1013
        %v1015 = vpop.f32.mrb[0].mxu0
        %1016 = vmatprep.mubr.bf16.mxu0 0
        %1017 = vmatmul.mubr.bf16.gmra.mrb[0].mxu0 %v827
        %v1018 = vpop.f32.mrb[0].mxu0
        %v1019 = vadd.f32 0.0, %v1018
        %v1020 = vpop.f32.mrb[0].mxu0
        %v1021 = vpop.f32.mrb[0].mxu0
        %v1022 = vadd.f32 0.0, %v1021
        %v1023 = vpop.f32.mrb[0].mxu0
        %1024 = vmatprep.mubr.bf16.mxu0 0
        %1025 = vmatmul.mubr.bf16.gmra.mrb[0].mxu0 %v828
        %v1026 = vpop.f32.mrb[0].mxu0
        %v1027 = vadd.f32 0.0, %v1026
        %v1028 = vpop.f32.mrb[0].mxu0
        %v1029 = vpop.f32.mrb[0].mxu0
        %v1030 = vadd.f32 0.0, %v1029
        %v1031 = vpop.f32.mrb[0].mxu0
        %1032 = vmatprep.mubr.bf16.mxu0 0
        %1033 = vmatmul.mubr.bf16.gmra.mrb[0].mxu0 %v829
        %v1034 = vpop.f32.mrb[0].mxu0
        %v1035 = vadd.f32 0.0, %v1034
        %v1036 = vpop.f32.mrb[0].mxu0
        %v1037 = vpop.f32.mrb[0].mxu0
        %v1038 = vadd.f32 0.0, %v1037
        %v1039 = vpop.f32.mrb[0].mxu0
        %1040 = vmatprep.mubr.bf16.mxu0 0
        %1041 = vmatmul.mubr.bf16.gmra.mrb[0].mxu0 %v830
        %v1042 = vpop.f32.mrb[0].mxu0
        %v1043 = vadd.f32 0.0, %v1042
        %v1044 = vpop.f32.mrb[0].mxu0
        %v1045 = vpop.f32.mrb[0].mxu0
        %v1046 = vadd.f32 0.0, %v1045
        %v1047 = vpop.f32.mrb[0].mxu0
        %1048 = vmatprep.mubr.bf16.mxu0 0
        %1049 = vmatmul.mubr.bf16.gmra.mrb[0].mxu0 %v831
        %v1050 = vpop.f32.mrb[0].mxu0
        %v1051 = vadd.f32 0.0, %v1050
        %v1052 = vpop.f32.mrb[0].mxu0
        %v1053 = vpop.f32.mrb[0].mxu0
        %v1054 = vadd.f32 0.0, %v1053
        %v1055 = vpop.f32.mrb[0].mxu0
        %1056 = vdwg.mxu0
        %v1057 = vadd.f32 %v784, %v931
        %v1058 = vadd.f32 %v785, %v934
        %v1059 = vadd.f32 %v786, %v939
        %v1060 = vadd.f32 %v787, %v942
        %v1061 = vadd.f32 %v788, %v947
        %v1062 = vadd.f32 %v789, %v950
        %v1063 = vadd.f32 %v790, %v955
        %v1064 = vadd.f32 %v791, %v958
        %v1065 = vadd.f32 %v792, %v963
        %v1066 = vadd.f32 %v793, %v966
        %v1067 = vadd.f32 %v794, %v971
        %v1068 = vadd.f32 %v795, %v974
        %v1069 = vadd.f32 %v796, %v979
        %v1070 = vadd.f32 %v797, %v982
        %v1071 = vadd.f32 %v798, %v987
        %v1072 = vadd.f32 %v799, %v990
        %v1073 = vadd.f32 %v800, %v995
        %v1074 = vadd.f32 %v801, %v998
        %v1075 = vadd.f32 %v802, %v1003
        %v1076 = vadd.f32 %v803, %v1006
        %v1077 = vadd.f32 %v804, %v1011
        %v1078 = vadd.f32 %v805, %v1014
        %v1079 = vadd.f32 %v806, %v1019
        %v1080 = vadd.f32 %v807, %v1022
        %v1081 = vadd.f32 %v808, %v1027
        %v1082 = vadd.f32 %v809, %v1030
        %v1083 = vadd.f32 %v810, %v1035
        %v1084 = vadd.f32 %v811, %v1038
        %v1085 = vadd.f32 %v812, %v1043
        %v1086 = vadd.f32 %v813, %v1046
        %v1087 = vadd.f32 %v814, %v1051
        %v1088 = vadd.f32 %v815, %v1054
        %1089 = vst [vmem:[#allocation2] sm:$0xff] %v1057
        %1090 = vst [vmem:[#allocation2 + $0x8] sm:$0xff] %v1058
        %1091 = vst [vmem:[#allocation2 + $0x10] sm:$0xff] %v1059
        %1092 = vst [vmem:[#allocation2 + $0x18] sm:$0xff] %v1060
        %1093 = vst [vmem:[#allocation2 + $0x20] sm:$0xff] %v1061
        %1094 = vst [vmem:[#allocation2 + $0x28] sm:$0xff] %v1062
        %1095 = vst [vmem:[#allocation2 + $0x30] sm:$0xff] %v1063
        %1096 = vst [vmem:[#allocation2 + $0x38] sm:$0xff] %v1064
        %1097 = vst [vmem:[#allocation2 + $0x40] sm:$0xff] %v1065
        %1098 = vst [vmem:[#allocation2 + $0x48] sm:$0xff] %v1066
        %1099 = vst [vmem:[#allocation2 + $0x50] sm:$0xff] %v1067
        %1100 = vst [vmem:[#allocation2 + $0x58] sm:$0xff] %v1068
        %1101 = vst [vmem:[#allocation2 + $0x60] sm:$0xff] %v1069
        %1102 = vst [vmem:[#allocation2 + $0x68] sm:$0xff] %v1070
        %1103 = vst [vmem:[#allocation2 + $0x70] sm:$0xff] %v1071
        %1104 = vst [vmem:[#allocation2 + $0x78] sm:$0xff] %v1072
        %1105 = vst [vmem:[#allocation2 + $0x80] sm:$0xff] %v1073
        %1106 = vst [vmem:[#allocation2 + $0x88] sm:$0xff] %v1074
        %1107 = vst [vmem:[#allocation2 + $0x90] sm:$0xff] %v1075
        %1108 = vst [vmem:[#allocation2 + $0x98] sm:$0xff] %v1076
        %1109 = vst [vmem:[#allocation2 + $0xa0] sm:$0xff] %v1077
        %1110 = vst [vmem:[#allocation2 + $0xa8] sm:$0xff] %v1078
        %1111 = vst [vmem:[#allocation2 + $0xb0] sm:$0xff] %v1079
        %1112 = vst [vmem:[#allocation2 + $0xb8] sm:$0xff] %v1080
        %1113 = vst [vmem:[#allocation2 + $0xc0] sm:$0xff] %v1081
        %1114 = vst [vmem:[#allocation2 + $0xc8] sm:$0xff] %v1082
        %1115 = vst [vmem:[#allocation2 + $0xd0] sm:$0xff] %v1083
        %1116 = vst [vmem:[#allocation2 + $0xd8] sm:$0xff] %v1084
        %1117 = vst [vmem:[#allocation2 + $0xe0] sm:$0xff] %v1085
        %1118 = vst [vmem:[#allocation2 + $0xe8] sm:$0xff] %v1086
        %1119 = vst [vmem:[#allocation2 + $0xf0] sm:$0xff] %v1087
        %1120 = vst [vmem:[#allocation2 + $0xf8] sm:$0xff] %v1088
        %p1121 = scmp.eq.s32.totalorder %s32, 1
        // Predicated region
        $region81: #{rel_partial_decoder_layer.9} parent=47 // pred_check
          %p1122 = pneg %p1121
        $region82: #{rel_partial_decoder_layer.9} parent=47 // pred_check_branch
          %1124 = sbr.rel (%p1122) target = $region84
        $region83: #{rel_partial_decoder_layer.9} parent=47 // pred_region
          %v1125 = vld [vmem:[#allocation2] sm:$0xff]
          %v1126 = vld [vmem:[#allocation2 + $0x8] sm:$0xff]
          %v1127 = vld [vmem:[#allocation2 + $0x10] sm:$0xff]
          %v1128 = vld [vmem:[#allocation2 + $0x18] sm:$0xff]
          %v1129 = vld [vmem:[#allocation2 + $0x20] sm:$0xff]
          %v1130 = vld [vmem:[#allocation2 + $0x28] sm:$0xff]
          %v1131 = vld [vmem:[#allocation2 + $0x30] sm:$0xff]
          %v1132 = vld [vmem:[#allocation2 + $0x38] sm:$0xff]
          %v1133 = vld [vmem:[#allocation2 + $0x40] sm:$0xff]
          %v1134 = vld [vmem:[#allocation2 + $0x48] sm:$0xff]
          %v1135 = vld [vmem:[#allocation2 + $0x50] sm:$0xff]
          %v1136 = vld [vmem:[#allocation2 + $0x58] sm:$0xff]
          %v1137 = vld [vmem:[#allocation2 + $0x60] sm:$0xff]
          %v1138 = vld [vmem:[#allocation2 + $0x68] sm:$0xff]
          %v1139 = vld [vmem:[#allocation2 + $0x70] sm:$0xff]
          %v1140 = vld [vmem:[#allocation2 + $0x78] sm:$0xff]
          %v1141 = vld [vmem:[#allocation2 + $0x80] sm:$0xff]
          %v1142 = vld [vmem:[#allocation2 + $0x88] sm:$0xff]
          %v1143 = vld [vmem:[#allocation2 + $0x90] sm:$0xff]
          %v1144 = vld [vmem:[#allocation2 + $0x98] sm:$0xff]
          %v1145 = vld [vmem:[#allocation2 + $0xa0] sm:$0xff]
          %v1146 = vld [vmem:[#allocation2 + $0xa8] sm:$0xff]
          %v1147 = vld [vmem:[#allocation2 + $0xb0] sm:$0xff]
          %v1148 = vld [vmem:[#allocation2 + $0xb8] sm:$0xff]
          %v1149 = vld [vmem:[#allocation2 + $0xc0] sm:$0xff]
          %v1150 = vld [vmem:[#allocation2 + $0xc8] sm:$0xff]
          %v1151 = vld [vmem:[#allocation2 + $0xd0] sm:$0xff]
          %v1152 = vld [vmem:[#allocation2 + $0xd8] sm:$0xff]
          %v1153 = vld [vmem:[#allocation2 + $0xe0] sm:$0xff]
          %v1154 = vld [vmem:[#allocation2 + $0xe8] sm:$0xff]
          %v1155 = vld [vmem:[#allocation2 + $0xf0] sm:$0xff]
          %v1156 = vld [vmem:[#allocation2 + $0xf8] sm:$0xff]
          %v1157 = vadd.f32 %v472, %v1125
          %v1158 = vadd.f32 %v473, %v1126
          %v1159 = vadd.f32 %v474, %v1127
          %v1160 = vadd.f32 %v475, %v1128
          %v1161 = vadd.f32 %v476, %v1129
          %v1162 = vadd.f32 %v477, %v1130
          %v1163 = vadd.f32 %v478, %v1131
          %v1164 = vadd.f32 %v479, %v1132
          %v1165 = vadd.f32 %v480, %v1133
          %v1166 = vadd.f32 %v481, %v1134
          %v1167 = vadd.f32 %v482, %v1135
          %v1168 = vadd.f32 %v483, %v1136
          %v1169 = vadd.f32 %v484, %v1137
          %v1170 = vadd.f32 %v485, %v1138
          %v1171 = vadd.f32 %v486, %v1139
          %v1172 = vadd.f32 %v487, %v1140
          %v1173 = vadd.f32 %v488, %v1141
          %v1174 = vadd.f32 %v489, %v1142
          %v1175 = vadd.f32 %v490, %v1143
          %v1176 = vadd.f32 %v491, %v1144
          %v1177 = vadd.f32 %v492, %v1145
          %v1178 = vadd.f32 %v493, %v1146
          %v1179 = vadd.f32 %v494, %v1147
          %v1180 = vadd.f32 %v495, %v1148
          %v1181 = vadd.f32 %v496, %v1149
          %v1182 = vadd.f32 %v497, %v1150
          %v1183 = vadd.f32 %v498, %v1151
          %v1184 = vadd.f32 %v499, %v1152
          %v1185 = vadd.f32 %v500, %v1153
          %v1186 = vadd.f32 %v501, %v1154
          %v1187 = vadd.f32 %v502, %v1155
          %v1188 = vadd.f32 %v503, %v1156
          %v1189 = vld [vmem:[#allocation11] sm:$0x1]
          %v1191 = vlaneseq
          %v1192 = vshrl.u32 %v1191, 7
          %v1193 = vsub.s32 0, %v1192
          %v1194 = vrot.slane %v1189, %v1193
          %v1196 = vadd.f32 %v1157, %v1194
          %v1197 = vadd.f32 %v1158, %v1194
          %v1198 = vadd.f32 %v1159, %v1194
          %v1199 = vadd.f32 %v1160, %v1194
          %v1200 = vadd.f32 %v1161, %v1194
          %v1201 = vadd.f32 %v1162, %v1194
          %v1202 = vadd.f32 %v1163, %v1194
          %v1203 = vadd.f32 %v1164, %v1194
          %v1204 = vadd.f32 %v1165, %v1194
          %v1205 = vadd.f32 %v1166, %v1194
          %v1206 = vadd.f32 %v1167, %v1194
          %v1207 = vadd.f32 %v1168, %v1194
          %v1208 = vadd.f32 %v1169, %v1194
          %v1209 = vadd.f32 %v1170, %v1194
          %v1210 = vadd.f32 %v1171, %v1194
          %v1211 = vadd.f32 %v1172, %v1194
          %v1212 = vadd.f32 %v1173, %v1194
          %v1213 = vadd.f32 %v1174, %v1194
          %v1214 = vadd.f32 %v1175, %v1194
          %v1215 = vadd.f32 %v1176, %v1194
          %v1216 = vadd.f32 %v1177, %v1194
          %v1217 = vadd.f32 %v1178, %v1194
          %v1218 = vadd.f32 %v1179, %v1194
          %v1219 = vadd.f32 %v1180, %v1194
          %v1220 = vadd.f32 %v1181, %v1194
          %v1221 = vadd.f32 %v1182, %v1194
          %v1222 = vadd.f32 %v1183, %v1194
          %v1223 = vadd.f32 %v1184, %v1194
          %v1224 = vadd.f32 %v1185, %v1194
          %v1225 = vadd.f32 %v1186, %v1194
          %v1226 = vadd.f32 %v1187, %v1194
          %v1227 = vadd.f32 %v1188, %v1194
          %1228 = vadd.xlane.f32.xlu0 %v1196
          %v1229 = vpop.xlane.xlu0 %1228
          %1230 = vadd.xlane.f32.xlu0 %v1197
          %v1231 = vpop.xlane.xlu0 %1230
          %1232 = vadd.xlane.f32.xlu0 %v1198
          %v1233 = vpop.xlane.xlu0 %1232
          %1234 = vadd.xlane.f32.xlu0 %v1199
          %v1235 = vpop.xlane.xlu0 %1234
          %1236 = vadd.xlane.f32.xlu0 %v1200
          %v1237 = vpop.xlane.xlu0 %1236
          %1238 = vadd.xlane.f32.xlu0 %v1201
          %v1239 = vpop.xlane.xlu0 %1238
          %1240 = vadd.xlane.f32.xlu0 %v1202
          %v1241 = vpop.xlane.xlu0 %1240
          %1242 = vadd.xlane.f32.xlu0 %v1203
          %v1243 = vpop.xlane.xlu0 %1242
          %1244 = vadd.xlane.f32.xlu0 %v1204
          %v1245 = vpop.xlane.xlu0 %1244
          %1246 = vadd.xlane.f32.xlu0 %v1205
          %v1247 = vpop.xlane.xlu0 %1246
          %1248 = vadd.xlane.f32.xlu0 %v1206
          %v1249 = vpop.xlane.xlu0 %1248
          %1250 = vadd.xlane.f32.xlu0 %v1207
          %v1251 = vpop.xlane.xlu0 %1250
          %1252 = vadd.xlane.f32.xlu0 %v1208
          %v1253 = vpop.xlane.xlu0 %1252
          %1254 = vadd.xlane.f32.xlu0 %v1209
          %v1255 = vpop.xlane.xlu0 %1254
          %1256 = vadd.xlane.f32.xlu0 %v1210
          %v1257 = vpop.xlane.xlu0 %1256
          %1258 = vadd.xlane.f32.xlu0 %v1211
          %v1259 = vpop.xlane.xlu0 %1258
          %1260 = vadd.xlane.f32.xlu0 %v1212
          %v1261 = vpop.xlane.xlu0 %1260
          %1262 = vadd.xlane.f32.xlu0 %v1213
          %v1263 = vpop.xlane.xlu0 %1262
          %1264 = vadd.xlane.f32.xlu0 %v1214
          %v1265 = vpop.xlane.xlu0 %1264
          %1266 = vadd.xlane.f32.xlu0 %v1215
          %v1267 = vpop.xlane.xlu0 %1266
          %1268 = vadd.xlane.f32.xlu0 %v1216
          %v1269 = vpop.xlane.xlu0 %1268
          %1270 = vadd.xlane.f32.xlu0 %v1217
          %v1271 = vpop.xlane.xlu0 %1270
          %1272 = vadd.xlane.f32.xlu0 %v1218
          %v1273 = vpop.xlane.xlu0 %1272
          %1274 = vadd.xlane.f32.xlu0 %v1219
          %v1275 = vpop.xlane.xlu0 %1274
          %1276 = vadd.xlane.f32.xlu0 %v1220
          %v1277 = vpop.xlane.xlu0 %1276
          %1278 = vadd.xlane.f32.xlu0 %v1221
          %v1279 = vpop.xlane.xlu0 %1278
          %1280 = vadd.xlane.f32.xlu0 %v1222
          %v1281 = vpop.xlane.xlu0 %1280
          %1282 = vadd.xlane.f32.xlu0 %v1223
          %v1283 = vpop.xlane.xlu0 %1282
          %1284 = vadd.xlane.f32.xlu0 %v1224
          %v1285 = vpop.xlane.xlu0 %1284
          %1286 = vadd.xlane.f32.xlu0 %v1225
          %v1287 = vpop.xlane.xlu0 %1286
          %1288 = vadd.xlane.f32.xlu0 %v1226
          %v1289 = vpop.xlane.xlu0 %1288
          %1290 = vadd.xlane.f32.xlu0 %v1227
          %v1291 = vpop.xlane.xlu0 %1290
          %v1292 = vrcp.pop 128.0
          %v1293 = vmul.f32 %v1229, %v1292
          %v1294 = vmul.f32 %v1231, %v1292
          %v1295 = vmul.f32 %v1233, %v1292
          %v1296 = vmul.f32 %v1235, %v1292
          %v1297 = vmul.f32 %v1237, %v1292
          %v1298 = vmul.f32 %v1239, %v1292
          %v1299 = vmul.f32 %v1241, %v1292
          %v1300 = vmul.f32 %v1243, %v1292
          %v1301 = vmul.f32 %v1245, %v1292
          %v1302 = vmul.f32 %v1247, %v1292
          %v1303 = vmul.f32 %v1249, %v1292
          %v1304 = vmul.f32 %v1251, %v1292
          %v1305 = vmul.f32 %v1253, %v1292
          %v1306 = vmul.f32 %v1255, %v1292
          %v1307 = vmul.f32 %v1257, %v1292
          %v1308 = vmul.f32 %v1259, %v1292
          %v1309 = vmul.f32 %v1261, %v1292
          %v1310 = vmul.f32 %v1263, %v1292
          %v1311 = vmul.f32 %v1265, %v1292
          %v1312 = vmul.f32 %v1267, %v1292
          %v1313 = vmul.f32 %v1269, %v1292
          %v1314 = vmul.f32 %v1271, %v1292
          %v1315 = vmul.f32 %v1273, %v1292
          %v1316 = vmul.f32 %v1275, %v1292
          %v1317 = vmul.f32 %v1277, %v1292
          %v1318 = vmul.f32 %v1279, %v1292
          %v1319 = vmul.f32 %v1281, %v1292
          %v1320 = vmul.f32 %v1283, %v1292
          %v1321 = vmul.f32 %v1285, %v1292
          %v1322 = vmul.f32 %v1287, %v1292
          %v1323 = vmul.f32 %v1289, %v1292
          %v1324 = vmul.f32 %v1291, %v1292
          %v1325 = vsub.f32 %v1196, %v1293
          %v1326 = vsub.f32 %v1197, %v1294
          %v1327 = vsub.f32 %v1198, %v1295
          %v1328 = vsub.f32 %v1199, %v1296
          %v1329 = vsub.f32 %v1200, %v1297
          %v1330 = vsub.f32 %v1201, %v1298
          %v1331 = vsub.f32 %v1202, %v1299
          %v1332 = vsub.f32 %v1203, %v1300
          %v1333 = vsub.f32 %v1204, %v1301
          %v1334 = vsub.f32 %v1205, %v1302
          %v1335 = vsub.f32 %v1206, %v1303
          %v1336 = vsub.f32 %v1207, %v1304
          %v1337 = vsub.f32 %v1208, %v1305
          %v1338 = vsub.f32 %v1209, %v1306
          %v1339 = vsub.f32 %v1210, %v1307
          %v1340 = vsub.f32 %v1211, %v1308
          %v1341 = vsub.f32 %v1212, %v1309
          %v1342 = vsub.f32 %v1213, %v1310
          %v1343 = vsub.f32 %v1214, %v1311
          %v1344 = vsub.f32 %v1215, %v1312
          %v1345 = vsub.f32 %v1216, %v1313
          %v1346 = vsub.f32 %v1217, %v1314
          %v1347 = vsub.f32 %v1218, %v1315
          %v1348 = vsub.f32 %v1219, %v1316
          %v1349 = vsub.f32 %v1220, %v1317
          %v1350 = vsub.f32 %v1221, %v1318
          %v1351 = vsub.f32 %v1222, %v1319
          %v1352 = vsub.f32 %v1223, %v1320
          %v1353 = vsub.f32 %v1224, %v1321
          %v1354 = vsub.f32 %v1225, %v1322
          %v1355 = vsub.f32 %v1226, %v1323
          %v1356 = vsub.f32 %v1227, %v1324
          %v1357 = vmul.f32 %v1325, %v1325
          %v1358 = vmul.f32 %v1326, %v1326
          %v1359 = vmul.f32 %v1327, %v1327
          %v1360 = vmul.f32 %v1328, %v1328
          %v1361 = vmul.f32 %v1329, %v1329
          %v1362 = vmul.f32 %v1330, %v1330
          %v1363 = vmul.f32 %v1331, %v1331
          %v1364 = vmul.f32 %v1332, %v1332
          %v1365 = vmul.f32 %v1333, %v1333
          %v1366 = vmul.f32 %v1334, %v1334
          %v1367 = vmul.f32 %v1335, %v1335
          %v1368 = vmul.f32 %v1336, %v1336
          %v1369 = vmul.f32 %v1337, %v1337
          %v1370 = vmul.f32 %v1338, %v1338
          %v1371 = vmul.f32 %v1339, %v1339
          %v1372 = vmul.f32 %v1340, %v1340
          %v1373 = vmul.f32 %v1341, %v1341
          %v1374 = vmul.f32 %v1342, %v1342
          %v1375 = vmul.f32 %v1343, %v1343
          %v1376 = vmul.f32 %v1344, %v1344
          %v1377 = vmul.f32 %v1345, %v1345
          %v1378 = vmul.f32 %v1346, %v1346
          %v1379 = vmul.f32 %v1347, %v1347
          %v1380 = vmul.f32 %v1348, %v1348
          %v1381 = vmul.f32 %v1349, %v1349
          %v1382 = vmul.f32 %v1350, %v1350
          %v1383 = vmul.f32 %v1351, %v1351
          %v1384 = vmul.f32 %v1352, %v1352
          %v1385 = vmul.f32 %v1353, %v1353
          %v1386 = vmul.f32 %v1354, %v1354
          %v1387 = vmul.f32 %v1355, %v1355
          %v1388 = vmul.f32 %v1356, %v1356
          %1389 = vadd.xlane.f32.xlu0 %v1357
          %v1390 = vpop.xlane.xlu0 %1389
          %1391 = vadd.xlane.f32.xlu0 %v1358
          %v1392 = vpop.xlane.xlu0 %1391
          %1393 = vadd.xlane.f32.xlu0 %v1359
          %v1394 = vpop.xlane.xlu0 %1393
          %1395 = vadd.xlane.f32.xlu0 %v1360
          %v1396 = vpop.xlane.xlu0 %1395
          %1397 = vadd.xlane.f32.xlu0 %v1361
          %v1398 = vpop.xlane.xlu0 %1397
          %1399 = vadd.xlane.f32.xlu0 %v1362
          %v1400 = vpop.xlane.xlu0 %1399
          %1401 = vadd.xlane.f32.xlu0 %v1363
          %v1402 = vpop.xlane.xlu0 %1401
          %1403 = vadd.xlane.f32.xlu0 %v1364
          %v1404 = vpop.xlane.xlu0 %1403
          %1405 = vadd.xlane.f32.xlu0 %v1365
          %v1406 = vpop.xlane.xlu0 %1405
          %1407 = vadd.xlane.f32.xlu0 %v1366
          %v1408 = vpop.xlane.xlu0 %1407
          %1409 = vadd.xlane.f32.xlu0 %v1367
          %v1410 = vpop.xlane.xlu0 %1409
          %1411 = vadd.xlane.f32.xlu0 %v1368
          %v1412 = vpop.xlane.xlu0 %1411
          %1413 = vadd.xlane.f32.xlu0 %v1369
          %v1414 = vpop.xlane.xlu0 %1413
          %1415 = vadd.xlane.f32.xlu0 %v1370
          %v1416 = vpop.xlane.xlu0 %1415
          %1417 = vadd.xlane.f32.xlu0 %v1371
          %v1418 = vpop.xlane.xlu0 %1417
          %1419 = vadd.xlane.f32.xlu0 %v1372
          %v1420 = vpop.xlane.xlu0 %1419
          %1421 = vadd.xlane.f32.xlu0 %v1373
          %v1422 = vpop.xlane.xlu0 %1421
          %1423 = vadd.xlane.f32.xlu0 %v1374
          %v1424 = vpop.xlane.xlu0 %1423
          %1425 = vadd.xlane.f32.xlu0 %v1375
          %v1426 = vpop.xlane.xlu0 %1425
          %1427 = vadd.xlane.f32.xlu0 %v1376
          %v1428 = vpop.xlane.xlu0 %1427
          %1429 = vadd.xlane.f32.xlu0 %v1377
          %v1430 = vpop.xlane.xlu0 %1429
          %1431 = vadd.xlane.f32.xlu0 %v1378
          %v1432 = vpop.xlane.xlu0 %1431
          %1433 = vadd.xlane.f32.xlu0 %v1379
          %v1434 = vpop.xlane.xlu0 %1433
          %1435 = vadd.xlane.f32.xlu0 %v1380
          %v1436 = vpop.xlane.xlu0 %1435
          %1437 = vadd.xlane.f32.xlu0 %v1381
          %v1438 = vpop.xlane.xlu0 %1437
          %1439 = vadd.xlane.f32.xlu0 %v1382
          %v1440 = vpop.xlane.xlu0 %1439
          %1441 = vadd.xlane.f32.xlu0 %v1383
          %v1442 = vpop.xlane.xlu0 %1441
          %1443 = vadd.xlane.f32.xlu0 %v1384
          %v1444 = vpop.xlane.xlu0 %1443
          %1445 = vadd.xlane.f32.xlu0 %v1385
          %v1446 = vpop.xlane.xlu0 %1445
          %1447 = vadd.xlane.f32.xlu0 %v1386
          %v1448 = vpop.xlane.xlu0 %1447
          %1449 = vadd.xlane.f32.xlu0 %v1387
          %v1450 = vpop.xlane.xlu0 %1449
          %1451 = vadd.xlane.f32.xlu0 %v1388
          %v1452 = vpop.xlane.xlu0 %1451
          %v1453 = vmul.f32 %v1390, %v1292
          %v1454 = vmul.f32 %v1392, %v1292
          %v1455 = vmul.f32 %v1394, %v1292
          %v1456 = vmul.f32 %v1396, %v1292
          %v1457 = vmul.f32 %v1398, %v1292
          %v1458 = vmul.f32 %v1400, %v1292
          %v1459 = vmul.f32 %v1402, %v1292
          %v1460 = vmul.f32 %v1404, %v1292
          %v1461 = vmul.f32 %v1406, %v1292
          %v1462 = vmul.f32 %v1408, %v1292
          %v1463 = vmul.f32 %v1410, %v1292
          %v1464 = vmul.f32 %v1412, %v1292
          %v1465 = vmul.f32 %v1414, %v1292
          %v1466 = vmul.f32 %v1416, %v1292
          %v1467 = vmul.f32 %v1418, %v1292
          %v1468 = vmul.f32 %v1420, %v1292
          %v1469 = vmul.f32 %v1422, %v1292
          %v1470 = vmul.f32 %v1424, %v1292
          %v1471 = vmul.f32 %v1426, %v1292
          %v1472 = vmul.f32 %v1428, %v1292
          %v1473 = vmul.f32 %v1430, %v1292
          %v1474 = vmul.f32 %v1432, %v1292
          %v1475 = vmul.f32 %v1434, %v1292
          %v1476 = vmul.f32 %v1436, %v1292
          %v1477 = vmul.f32 %v1438, %v1292
          %v1478 = vmul.f32 %v1440, %v1292
          %v1479 = vmul.f32 %v1442, %v1292
          %v1480 = vmul.f32 %v1444, %v1292
          %v1481 = vmul.f32 %v1446, %v1292
          %v1482 = vmul.f32 %v1448, %v1292
          %v1483 = vmul.f32 %v1450, %v1292
          %v1484 = vmul.f32 %v1452, %v1292
          %v1485 = vadd.f32 %v1453, 1e-05
          %v1486 = vadd.f32 %v1454, 1e-05
          %v1487 = vadd.f32 %v1455, 1e-05
          %v1488 = vadd.f32 %v1456, 1e-05
          %v1489 = vadd.f32 %v1457, 1e-05
          %v1490 = vadd.f32 %v1458, 1e-05
          %v1491 = vadd.f32 %v1459, 1e-05
          %v1492 = vadd.f32 %v1460, 1e-05
          %v1493 = vadd.f32 %v1461, 1e-05
          %v1494 = vadd.f32 %v1462, 1e-05
          %v1495 = vadd.f32 %v1463, 1e-05
          %v1496 = vadd.f32 %v1464, 1e-05
          %v1497 = vadd.f32 %v1465, 1e-05
          %v1498 = vadd.f32 %v1466, 1e-05
          %v1499 = vadd.f32 %v1467, 1e-05
          %v1500 = vadd.f32 %v1468, 1e-05
          %v1501 = vadd.f32 %v1469, 1e-05
          %v1502 = vadd.f32 %v1470, 1e-05
          %v1503 = vadd.f32 %v1471, 1e-05
          %v1504 = vadd.f32 %v1472, 1e-05
          %v1505 = vadd.f32 %v1473, 1e-05
          %v1506 = vadd.f32 %v1474, 1e-05
          %v1507 = vadd.f32 %v1475, 1e-05
          %v1508 = vadd.f32 %v1476, 1e-05
          %v1509 = vadd.f32 %v1477, 1e-05
          %v1510 = vadd.f32 %v1478, 1e-05
          %v1511 = vadd.f32 %v1479, 1e-05
          %v1512 = vadd.f32 %v1480, 1e-05
          %v1513 = vadd.f32 %v1481, 1e-05
          %v1514 = vadd.f32 %v1482, 1e-05
          %v1515 = vadd.f32 %v1483, 1e-05
          %v1516 = vadd.f32 %v1484, 1e-05
          %v1517 = vrsqrt.pop %v1485
          %v1518 = vrsqrt.pop %v1486
          %v1519 = vrsqrt.pop %v1487
          %v1520 = vrsqrt.pop %v1488
          %v1521 = vrsqrt.pop %v1489
          %v1522 = vrsqrt.pop %v1490
          %v1523 = vrsqrt.pop %v1491
          %v1524 = vrsqrt.pop %v1492
          %v1525 = vrsqrt.pop %v1493
          %v1526 = vrsqrt.pop %v1494
          %v1527 = vrsqrt.pop %v1495
          %v1528 = vrsqrt.pop %v1496
          %v1529 = vrsqrt.pop %v1497
          %v1530 = vrsqrt.pop %v1498
          %v1531 = vrsqrt.pop %v1499
          %v1532 = vrsqrt.pop %v1500
          %v1533 = vrsqrt.pop %v1501
          %v1534 = vrsqrt.pop %v1502
          %v1535 = vrsqrt.pop %v1503
          %v1536 = vrsqrt.pop %v1504
          %v1537 = vrsqrt.pop %v1505
          %v1538 = vrsqrt.pop %v1506
          %v1539 = vrsqrt.pop %v1507
          %v1540 = vrsqrt.pop %v1508
          %v1541 = vrsqrt.pop %v1509
          %v1542 = vrsqrt.pop %v1510
          %v1543 = vrsqrt.pop %v1511
          %v1544 = vrsqrt.pop %v1512
          %v1545 = vrsqrt.pop %v1513
          %v1546 = vrsqrt.pop %v1514
          %v1547 = vrsqrt.pop %v1515
          %v1548 = vrsqrt.pop %v1516
          %v1549 = vmul.f32 %v1325, %v1517
          %v1550 = vmul.f32 %v1326, %v1518
          %v1551 = vmul.f32 %v1327, %v1519
          %v1552 = vmul.f32 %v1328, %v1520
          %v1553 = vmul.f32 %v1329, %v1521
          %v1554 = vmul.f32 %v1330, %v1522
          %v1555 = vmul.f32 %v1331, %v1523
          %v1556 = vmul.f32 %v1332, %v1524
          %v1557 = vmul.f32 %v1333, %v1525
          %v1558 = vmul.f32 %v1334, %v1526
          %v1559 = vmul.f32 %v1335, %v1527
          %v1560 = vmul.f32 %v1336, %v1528
          %v1561 = vmul.f32 %v1337, %v1529
          %v1562 = vmul.f32 %v1338, %v1530
          %v1563 = vmul.f32 %v1339, %v1531
          %v1564 = vmul.f32 %v1340, %v1532
          %v1565 = vmul.f32 %v1341, %v1533
          %v1566 = vmul.f32 %v1342, %v1534
          %v1567 = vmul.f32 %v1343, %v1535
          %v1568 = vmul.f32 %v1344, %v1536
          %v1569 = vmul.f32 %v1345, %v1537
          %v1570 = vmul.f32 %v1346, %v1538
          %v1571 = vmul.f32 %v1347, %v1539
          %v1572 = vmul.f32 %v1348, %v1540
          %v1573 = vmul.f32 %v1349, %v1541
          %v1574 = vmul.f32 %v1350, %v1542
          %v1575 = vmul.f32 %v1351, %v1543
          %v1576 = vmul.f32 %v1352, %v1544
          %v1577 = vmul.f32 %v1353, %v1545
          %v1578 = vmul.f32 %v1354, %v1546
          %v1579 = vmul.f32 %v1355, %v1547
          %v1580 = vmul.f32 %v1356, %v1548
          %v1581 = vld [vmem:[#allocation12] sm:$0x1]
          %v1583 = vlaneseq
          %v1584 = vshrl.u32 %v1583, 7
          %v1585 = vsub.s32 0, %v1584
          %v1586 = vrot.slane %v1581, %v1585
          %v1588 = vmul.f32 %v1549, %v1586
          %v1589 = vmul.f32 %v1550, %v1586
          %v1590 = vmul.f32 %v1551, %v1586
          %v1591 = vmul.f32 %v1552, %v1586
          %v1592 = vmul.f32 %v1553, %v1586
          %v1593 = vmul.f32 %v1554, %v1586
          %v1594 = vmul.f32 %v1555, %v1586
          %v1595 = vmul.f32 %v1556, %v1586
          %v1596 = vmul.f32 %v1557, %v1586
          %v1597 = vmul.f32 %v1558, %v1586
          %v1598 = vmul.f32 %v1559, %v1586
          %v1599 = vmul.f32 %v1560, %v1586
          %v1600 = vmul.f32 %v1561, %v1586
          %v1601 = vmul.f32 %v1562, %v1586
          %v1602 = vmul.f32 %v1563, %v1586
          %v1603 = vmul.f32 %v1564, %v1586
          %v1604 = vmul.f32 %v1565, %v1586
          %v1605 = vmul.f32 %v1566, %v1586
          %v1606 = vmul.f32 %v1567, %v1586
          %v1607 = vmul.f32 %v1568, %v1586
          %v1608 = vmul.f32 %v1569, %v1586
          %v1609 = vmul.f32 %v1570, %v1586
          %v1610 = vmul.f32 %v1571, %v1586
          %v1611 = vmul.f32 %v1572, %v1586
          %v1612 = vmul.f32 %v1573, %v1586
          %v1613 = vmul.f32 %v1574, %v1586
          %v1614 = vmul.f32 %v1575, %v1586
          %v1615 = vmul.f32 %v1576, %v1586
          %v1616 = vmul.f32 %v1577, %v1586
          %v1617 = vmul.f32 %v1578, %v1586
          %v1618 = vmul.f32 %v1579, %v1586
          %v1619 = vmul.f32 %v1580, %v1586
          %v1620 = vld [vmem:[#allocation14] sm:$0x1]
          %v1622 = vlaneseq
          %v1623 = vshrl.u32 %v1622, 7
          %v1624 = vsub.s32 0, %v1623
          %v1625 = vrot.slane %v1620, %v1624
          %v1627 = vadd.f32 %v1588, %v1625
          %v1628 = vadd.f32 %v1589, %v1625
          %v1629 = vadd.f32 %v1590, %v1625
          %v1630 = vadd.f32 %v1591, %v1625
          %v1631 = vadd.f32 %v1592, %v1625
          %v1632 = vadd.f32 %v1593, %v1625
          %v1633 = vadd.f32 %v1594, %v1625
          %v1634 = vadd.f32 %v1595, %v1625
          %v1635 = vadd.f32 %v1596, %v1625
          %v1636 = vadd.f32 %v1597, %v1625
          %v1637 = vadd.f32 %v1598, %v1625
          %v1638 = vadd.f32 %v1599, %v1625
          %v1639 = vadd.f32 %v1600, %v1625
          %v1640 = vadd.f32 %v1601, %v1625
          %v1641 = vadd.f32 %v1602, %v1625
          %v1642 = vadd.f32 %v1603, %v1625
          %v1643 = vadd.f32 %v1604, %v1625
          %v1644 = vadd.f32 %v1605, %v1625
          %v1645 = vadd.f32 %v1606, %v1625
          %v1646 = vadd.f32 %v1607, %v1625
          %v1647 = vadd.f32 %v1608, %v1625
          %v1648 = vadd.f32 %v1609, %v1625
          %v1649 = vadd.f32 %v1610, %v1625
          %v1650 = vadd.f32 %v1611, %v1625
          %v1651 = vadd.f32 %v1612, %v1625
          %v1652 = vadd.f32 %v1613, %v1625
          %v1653 = vadd.f32 %v1614, %v1625
          %v1654 = vadd.f32 %v1615, %v1625
          %v1655 = vadd.f32 %v1616, %v1625
          %v1656 = vadd.f32 %v1617, %v1625
          %v1657 = vadd.f32 %v1618, %v1625
          %v1658 = vadd.f32 %v1619, %v1625
          %1659 = vst [vmem:[#allocation15] sm:$0xff] %v1627
          %1660 = vst [vmem:[#allocation15 + $0x8] sm:$0xff] %v1628
          %1661 = vst [vmem:[#allocation15 + $0x10] sm:$0xff] %v1629
          %1662 = vst [vmem:[#allocation15 + $0x18] sm:$0xff] %v1630
          %1663 = vst [vmem:[#allocation15 + $0x20] sm:$0xff] %v1631
          %1664 = vst [vmem:[#allocation15 + $0x28] sm:$0xff] %v1632
          %1665 = vst [vmem:[#allocation15 + $0x30] sm:$0xff] %v1633
          %1666 = vst [vmem:[#allocation15 + $0x38] sm:$0xff] %v1634
          %1667 = vst [vmem:[#allocation15 + $0x40] sm:$0xff] %v1635
          %1668 = vst [vmem:[#allocation15 + $0x48] sm:$0xff] %v1636
          %1669 = vst [vmem:[#allocation15 + $0x50] sm:$0xff] %v1637
          %1670 = vst [vmem:[#allocation15 + $0x58] sm:$0xff] %v1638
          %1671 = vst [vmem:[#allocation15 + $0x60] sm:$0xff] %v1639
          %1672 = vst [vmem:[#allocation15 + $0x68] sm:$0xff] %v1640
          %1673 = vst [vmem:[#allocation15 + $0x70] sm:$0xff] %v1641
          %1674 = vst [vmem:[#allocation15 + $0x78] sm:$0xff] %v1642
          %1675 = vst [vmem:[#allocation15 + $0x80] sm:$0xff] %v1643
          %1676 = vst [vmem:[#allocation15 + $0x88] sm:$0xff] %v1644
          %1677 = vst [vmem:[#allocation15 + $0x90] sm:$0xff] %v1645
          %1678 = vst [vmem:[#allocation15 + $0x98] sm:$0xff] %v1646
          %1679 = vst [vmem:[#allocation15 + $0xa0] sm:$0xff] %v1647
          %1680 = vst [vmem:[#allocation15 + $0xa8] sm:$0xff] %v1648
          %1681 = vst [vmem:[#allocation15 + $0xb0] sm:$0xff] %v1649
          %1682 = vst [vmem:[#allocation15 + $0xb8] sm:$0xff] %v1650
          %1683 = vst [vmem:[#allocation15 + $0xc0] sm:$0xff] %v1651
          %1684 = vst [vmem:[#allocation15 + $0xc8] sm:$0xff] %v1652
          %1685 = vst [vmem:[#allocation15 + $0xd0] sm:$0xff] %v1653
          %1686 = vst [vmem:[#allocation15 + $0xd8] sm:$0xff] %v1654
          %1687 = vst [vmem:[#allocation15 + $0xe0] sm:$0xff] %v1655
          %1688 = vst [vmem:[#allocation15 + $0xe8] sm:$0xff] %v1656
          %1689 = vst [vmem:[#allocation15 + $0xf0] sm:$0xff] %v1657
          %1690 = vst [vmem:[#allocation15 + $0xf8] sm:$0xff] %v1658
        $region84: #{rel_partial_decoder_layer.9} parent=47 // pred_fallthru
          _
        // Predicated region
        $region85: #{rel_partial_decoder_layer.9} parent=47 // pred_check
          %p1691 = pneg %p224
        $region86: #{rel_partial_decoder_layer.9} parent=47 // pred_check_branch
          %1693 = sbr.rel (%p1691) target = $region88
        $region87: #{rel_partial_decoder_layer.9} parent=47 // pred_region
          %s1694 = smul.u32 32, %s31
          %s1696 = ssub.s32 4096, 4096
          %1697 = vsyncadd [#allocation5], %s1696
          %s1698 = smul.addr %s1694, 128
          %s1699 = scalar_lea.hbm %s7, %s1698
          %s1700 = sshll.u32 [#allocation15], 4
          %s1701 = int_to_ptr.vmem [resolvable:$true] %s1700
          %1706 = dma.vmem_to_hbm [thread:$0]  %s1701, 4096, %s1699, [#allocation5], 128, 128, 8
        $region88: #{rel_partial_decoder_layer.9} parent=47 // pred_fallthru
          _
        // Predicated region
        $region89: #{rel_partial_decoder_layer.9} parent=47 // pred_check
          %p1707 = pneg %p224
        $region90: #{rel_partial_decoder_layer.9} parent=47 // pred_check_branch
          %1709 = sbr.rel (%p1707) target = $region92
        $region91: #{rel_partial_decoder_layer.9} parent=47 // pred_region
          %1710 = dma.done [#allocation5], 4096
        $region92: #{rel_partial_decoder_layer.9} parent=47 // pred_fallthru
          _
      $region48: #{rel_partial_decoder_layer.9} parent=5 // pred_fallthru
        _
      %p1711 = scmp.le.s32.totalorder 2, %s22
      // Predicated region
      $region93: #{rel_partial_decoder_layer.9} parent=5 // pred_check
        %p1712 = pneg %p1711
      $region94: #{rel_partial_decoder_layer.9} parent=5 // pred_check_branch
        %1714 = sbr.rel (%p1712) target = $region96
      $region95: #{rel_partial_decoder_layer.9} parent=5 // pred_region
        %s1715 = ssub.s32 %s22, 2
      $region96: #{rel_partial_decoder_layer.9} parent=5 // pred_fallthru
        _
    $region6: #{rel_partial_decoder_layer.9} parent=1 // loop_footer
      %s26 = sadd.s32 1, %s22
    $region7: #{rel_partial_decoder_layer.9} parent=1 // loop_footer_branch
      %21 = sbr.rel target = $region3
    $region8: #{rel_partial_decoder_layer.9} parent=1 // loop_exit
      _
    %1716 = vsyncpa [#allocation4], 1
    %s1717 = scalar_lea.sflag [#allocation4], 1
    %1718 = vsyncpa %s1717, 1
    %1719 = vsyncpa [#allocation7], 1
    %s1720 = scalar_lea.sflag [#allocation7], 1
    %1721 = vsyncpa %s1720, 1
    %1722 = vsyncpa [#allocation10], 1
    %s1723 = scalar_lea.sflag [#allocation10], 1
    %1724 = vsyncpa %s1723, 1
    %1725 = vsyncpa [#allocation13], 1
    %1726 = vsyncpa [#allocation5], 1
    %s1727 = scalar_lea.sflag [#allocation5], 1
    %1728 = vsyncpa %s1727, 1

</llo_original>
